<compile_context>
chip_gen: v6e
topology: v6e:2x2x1
jax: 0.10.0
libtpu: 0.0.40
codegen_flags: <defaults>
</compile_context>

<pallas_src>
import functools

import jax
import jax.numpy as jnp
from jax.experimental import pallas as pl
from jax.experimental.pallas import tpu as pltpu

_LN_EPS = 1e-5
_NEG_INF = -1e30


# ----------------------------------------------------------------------------
# Generation-aware tuning helpers (v5e/v6e: 128 MiB VMEM, v7x: 64 MiB).
# ----------------------------------------------------------------------------
_HW_CACHE = {}


def _vmem_capacity_bytes():
    if "cap" not in _HW_CACHE:
        try:
            _HW_CACHE["cap"] = int(pltpu.get_tpu_info().vmem_capacity_bytes)
        except Exception:
            _HW_CACHE["cap"] = None
    return _HW_CACHE["cap"]


def _vmem_limit_bytes():
    cap = _vmem_capacity_bytes()
    if cap is None:
        return None  # backend default if the hardware query is unavailable
    return int(min(cap * 3 // 4, 100 * 1024 * 1024))


def _prefer_bf16_exp():
    # bf16 EUP exp on v6e/v7x; v5e's EUP has no bf16 (keep f32 exp there).
    if "bf16exp" not in _HW_CACHE:
        try:
            kind = jax.devices()[0].device_kind.lower()
            _HW_CACHE["bf16exp"] = not ("v5 lite" in kind or "v5e" in kind
                                        or "v5lite" in kind)
        except Exception:
            _HW_CACHE["bf16exp"] = True
    return _HW_CACHE["bf16exp"]


def _round_up(x, m):
    return (x + m - 1) // m * m


def _pick_tile_and_pad(S):
    """Sequence tile T and padded length S_pad (a multiple of T).

    The live f32 (T, S_pad) score/prob temporaries inside the per-head loop
    dominate kernel-2 VMEM, so T is sized against a generation-aware budget
    (smaller on v7x's 64 MiB part).
    """
    if S <= 256:
        return int(S), int(S)
    cap = _vmem_capacity_bytes() or (128 << 20)
    budget = (6 << 20) if cap <= (80 << 20) else (12 << 20)
    s128 = _round_up(S, 128)
    t = (budget // (8 * s128)) // 128 * 128
    t = int(max(128, min(512, t)))
    return t, int(_round_up(S, t))


def _layer_norm(v, w, b):
    mu = jnp.mean(v, axis=-1, keepdims=True)
    var = jnp.mean((v - mu) ** 2, axis=-1, keepdims=True)
    return (v - mu) * jax.lax.rsqrt(var + _LN_EPS) * w + b


# ----------------------------------------------------------------------------
# Kernel 1: LayerNorm1 + fused [Q|K] projection (+ folded scale) + V projection.
# Outputs lane-dense (S, C) bf16 Q / K / V slabs (no head-major relayout).
# ----------------------------------------------------------------------------
def _qkv_proj_kernel(x_ref, pos_ref, ln1_w_ref, ln1_b_ref,
                     wqk_ref, bqk_ref, wv_ref, bv_ref,
                     q_ref, k_ref, v_ref):
    C = q_ref.shape[-1]
    x = x_ref[...].astype(jnp.float32)                         # (TS, C)
    pos = pos_ref[...].astype(jnp.float32)                     # (TS, C) bf16 in HBM

    x2 = _layer_norm(x, ln1_w_ref[...], ln1_b_ref[...])        # f32 LN
    qk_in = (x2 + pos).astype(jnp.bfloat16)                    # with_pos_embed

    # Fused [Q|K] projection: one (TS, C) x (C, 2C) MXU dot, bf16 in / f32 acc.
    qk = jnp.dot(qk_in, wqk_ref[...],
                 preferred_element_type=jnp.float32) + bqk_ref[...]
    v = jnp.dot(x2.astype(jnp.bfloat16), wv_ref[...],
                preferred_element_type=jnp.float32) + bv_ref[...]

    q_ref[...] = qk[:, :C].astype(q_ref.dtype)                 # lane-dense stores
    k_ref[...] = qk[:, C:].astype(k_ref.dtype)
    v_ref[...] = v.astype(v_ref.dtype)


# ----------------------------------------------------------------------------
# Kernel 2: multi-head attention (lane-dense K/V resident per batch element,
# static per-head lane slices) + full-C output projection + FFN, per q-tile.
# ----------------------------------------------------------------------------
def _attn_ffn_kernel(x_ref, q_ref, k_ref, v_ref,
                     wo_ref, bo_ref, ln2_w_ref, ln2_b_ref,
                     w1_ref, b1_ref, w2_ref, b2_ref, out_ref,
                     *, nhead, s_real, bf16_exp):
    x = x_ref[...].astype(jnp.float32)        # (TQ, C) residual stream
    q = q_ref[...]                            # (TQ, C) bf16, pre-scaled by 1/sqrt(dh)
    k = k_ref[...]                            # (S_pad, C) bf16 (resident per batch)
    v = v_ref[...]                            # (S_pad, C) bf16

    tq, C = q.shape
    s_pad = k.shape[0]
    dh = C // nhead

    if s_pad != s_real:
        kidx = jax.lax.broadcasted_iota(jnp.int32, (tq, s_pad), 1)
        kmask = jnp.where(kidx < s_real, 0.0, _NEG_INF).astype(jnp.float32)
    else:
        kmask = None

    o_parts = []
    for h in range(nhead):                    # static head loop (lane slices in VMEM)
        lo = h * dh
        qh = q[:, lo:lo + dh]                 # (TQ, dh) bf16
        kh = k[:, lo:lo + dh]                 # (S_pad, dh)
        vh = v[:, lo:lo + dh]

        s = jax.lax.dot_general(qh, kh, (((1,), (1,)), ((), ())),
                                preferred_element_type=jnp.float32)   # (TQ, S_pad)
        if kmask is not None:
            s = s + kmask
        s = s - jnp.max(s, axis=-1, keepdims=True)
        p = jnp.exp(s.astype(jnp.bfloat16)) if bf16_exp else jnp.exp(s)
        denom = jnp.sum(p.astype(jnp.float32), axis=-1, keepdims=True)  # f32 row-sum
        oh = jnp.dot(p.astype(jnp.bfloat16), vh,
                     preferred_element_type=jnp.float32)              # (TQ, dh)
        # Normalize the small (TQ, dh) output instead of the (TQ, S) probs.
        oh = oh * pl.reciprocal(denom, approx=True)
        o_parts.append(oh.astype(jnp.bfloat16))

    o = jnp.concatenate(o_parts, axis=-1) if nhead > 1 else o_parts[0]  # (TQ, C)

    # One full-C output projection (un-split Wo) -> full MXU contraction width.
    attn = jnp.dot(o, wo_ref[...], preferred_element_type=jnp.float32) + bo_ref[...]
    x = x + attn                              # dropout1 == identity (eval)

    # --- pre-norm feed-forward ------------------------------------------------
    x2 = _layer_norm(x, ln2_w_ref[...], ln2_b_ref[...])
    h1 = jnp.dot(x2.astype(jnp.bfloat16), w1_ref[...],
                 preferred_element_type=jnp.float32) + b1_ref[...]
    h1 = jnp.maximum(h1, 0.0)                 # ReLU
    h2 = jnp.dot(h1.astype(jnp.bfloat16), w2_ref[...],
                 preferred_element_type=jnp.float32) + b2_ref[...]
    out_ref[...] = (x + h2).astype(out_ref.dtype)   # dropout2 == identity


# ----------------------------------------------------------------------------
# Wrappers around pallas_call.
# ----------------------------------------------------------------------------
def qkv_projection_pallas(x, pos, p, tile):
    B, S_pad, C = x.shape
    ns = S_pad // tile
    tok = lambda b, si: (b, si, 0)

    def wspec(shape):
        return pl.BlockSpec(shape, lambda b, si: (0,) * len(shape),
                            pipeline_mode=pl.Buffered(1))

    in_specs = [
        pl.BlockSpec((None, tile, C), tok),          # x (f32 residual)
        pl.BlockSpec((None, tile, C), tok),          # pos (bf16)
        wspec((1, C)), wspec((1, C)),                # ln1 w/b
        wspec((C, 2 * C)), wspec((1, 2 * C)),        # fused [Wq|Wk] (bf16), bias
        wspec((C, C)), wspec((1, C)),                # Wv (bf16), bias
    ]
    out_specs = (pl.BlockSpec((None, tile, C), tok),
                 pl.BlockSpec((None, tile, C), tok),
                 pl.BlockSpec((None, tile, C), tok))
    out_shape = (jax.ShapeDtypeStruct((B, S_pad, C), jnp.bfloat16),
                 jax.ShapeDtypeStruct((B, S_pad, C), jnp.bfloat16),
                 jax.ShapeDtypeStruct((B, S_pad, C), jnp.bfloat16))

    flops = int(6 * B * S_pad * C * C)
    bytes_accessed = int(B * S_pad * C * (4 + 2 + 3 * 2) + (3 * C * C + 6 * C) * 2)
    return pl.pallas_call(
        _qkv_proj_kernel,
        out_shape=out_shape,
        grid=(B, ns),
        in_specs=in_specs,
        out_specs=out_specs,
        compiler_params=pltpu.CompilerParams(
            dimension_semantics=("parallel", "parallel"),
            vmem_limit_bytes=_vmem_limit_bytes()),
        cost_estimate=pl.CostEstimate(flops=flops, transcendentals=int(B * S_pad),
                                      bytes_accessed=bytes_accessed),
    )(x, pos, p["ln1_w"], p["ln1_b"], p["wqk"], p["bqk"], p["wv"], p["bv"])


def attn_ffn_pallas(x, q, k, v, p, nhead, s_real, tile):
    B, S_pad, C = x.shape
    F = p["w1"].shape[1]
    nq = S_pad // tile
    tok = lambda b, qi: (b, qi, 0)
    full = lambda b, qi: (b, 0, 0)

    def wspec(shape):
        return pl.BlockSpec(shape, lambda b, qi: (0,) * len(shape),
                            pipeline_mode=pl.Buffered(1))

    in_specs = [
        pl.BlockSpec((None, tile, C), tok),                                  # x
        pl.BlockSpec((None, tile, C), tok),                                  # q tile
        pl.BlockSpec((None, S_pad, C), full, pipeline_mode=pl.Buffered(1)),  # K resident
        pl.BlockSpec((None, S_pad, C), full, pipeline_mode=pl.Buffered(1)),  # V resident
        wspec((C, C)), wspec((1, C)),          # Wo (un-split, bf16), bo
        wspec((1, C)), wspec((1, C)),          # ln2 w/b
        wspec((C, F)), wspec((1, F)),          # W1 (bf16), b1
        wspec((F, C)), wspec((1, C)),          # W2 (bf16), b2
    ]

    kern = functools.partial(_attn_ffn_kernel, nhead=nhead, s_real=s_real,
                             bf16_exp=_prefer_bf16_exp())

    flops = int(4 * B * S_pad * S_pad * C + 2 * B * S_pad * C * C
                + 4 * B * S_pad * C * F)
    transcendentals = int(B * S_pad * S_pad + 3 * B * S_pad)
    bytes_accessed = int(B * S_pad * C * (4 + 2 + 4) + 4 * B * S_pad * C
                         + (C * C + 2 * C * F) * 2)
    return pl.pallas_call(
        kern,
        out_shape=jax.ShapeDtypeStruct((B, S_pad, C), x.dtype),
        grid=(B, nq),
        in_specs=in_specs,
        out_specs=pl.BlockSpec((None, tile, C), tok),
        compiler_params=pltpu.CompilerParams(
            dimension_semantics=("parallel", "parallel"),
            vmem_limit_bytes=_vmem_limit_bytes()),
        cost_estimate=pl.CostEstimate(flops=flops, transcendentals=transcendentals,
                                      bytes_accessed=bytes_accessed),
    )(x, q, k, v, p["wo"], p["bo"], p["ln2_w"], p["ln2_b"],
      p["w1"], p["b1"], p["w2"], p["b2"])


def encoder_layer_pallas(x, pos, packed, nhead, s_real, tile):
    q, k, v = qkv_projection_pallas(x, pos, packed, tile)
    return attn_ffn_pallas(x, q, k, v, packed, nhead, s_real, tile)


# ----------------------------------------------------------------------------
# Host-side parameter packing (call ONCE, outside the jitted forward):
# fold 1/sqrt(dh) into Wq/bq, fuse [Wq|Wk], store matmul weights bf16.
# ----------------------------------------------------------------------------
def pack_layer_params(p, nhead):
    C = p["wq"].shape[0]
    dh = C // nhead
    scale = 1.0 / (dh ** 0.5)
    wqk = jnp.concatenate([p["wq"] * scale, p["wk"]], axis=1)
    bqk = jnp.concatenate([p["bq"] * scale, p["bk"]], axis=1)
    return dict(
        ln1_w=p["ln1_w"].astype(jnp.float32), ln1_b=p["ln1_b"].astype(jnp.float32),
        wqk=wqk.astype(jnp.bfloat16), bqk=bqk.astype(jnp.float32),
        wv=p["wv"].astype(jnp.bfloat16), bv=p["bv"].astype(jnp.float32),
        wo=p["wo"].astype(jnp.bfloat16), bo=p["bo"].astype(jnp.float32),
        ln2_w=p["ln2_w"].astype(jnp.float32), ln2_b=p["ln2_b"].astype(jnp.float32),
        w1=p["w1"].astype(jnp.bfloat16), b1=p["b1"].astype(jnp.float32),
        w2=p["w2"].astype(jnp.bfloat16), b2=p["b2"].astype(jnp.float32),
    )


# ----------------------------------------------------------------------------
# TransformerEncoder.forward(src, pos=pos, transpose_swap=True)
# `packed_layers` must already be produced by pack_layer_params (hoisted out
# of the per-call path).
# ----------------------------------------------------------------------------
def transformer_encoder_forward(src_nchw, pos_nchw, packed_layers, nhead):
    B, C, H, W = src_nchw.shape
    S = H * W
    # src.flatten(2).permute(2,0,1) -> tokens; kept as (B, S, C) internally
    # (attention is per-batch, so (S,B,C) vs (B,S,C) ordering is equivalent).
    x = src_nchw.reshape(B, C, S).transpose(0, 2, 1)                       # f32
    pos = pos_nchw.reshape(B, C, S).transpose(0, 2, 1).astype(jnp.bfloat16)

    tile, s_pad = _pick_tile_and_pad(S)
    if s_pad != S:
        x = jnp.pad(x, ((0, 0), (0, s_pad - S), (0, 0)))
        pos = jnp.pad(pos, ((0, 0), (0, s_pad - S), (0, 0)))

    for packed in packed_layers:               # sequential layer stack (glue)
        x = encoder_layer_pallas(x, pos, packed, nhead, S, tile)

    # self.norm is None in this configuration.
    # output.permute(1,2,0).view(bs, c, h, w)
    out = x[:, :S, :].transpose(0, 2, 1).reshape(B, C, H, W)
    xyz = None
    xyz_inds = None
    return xyz, out, xyz_inds


# ----------------------------------------------------------------------------
# Pure-JAX reference (f32 math, standard unfused attention).  Weights and pos
# are rounded to bf16-and-back to match the kernel's deliberate bf16 storage.
# ----------------------------------------------------------------------------
def _bf16_round(w):
    return w.astype(jnp.bfloat16).astype(jnp.float32)


def _ref_layer(x, pos, p, nhead):
    def ln(v, w, b):
        mu = jnp.mean(v, -1, keepdims=True)
        var = jnp.mean((v - mu) ** 2, -1, keepdims=True)
        return (v - mu) * jax.lax.rsqrt(var + _LN_EPS) * w + b

    B, S, C = x.shape
    dh = C // nhead
    x2 = ln(x, p["ln1_w"], p["ln1_b"])
    qk = x2 + pos
    q = (qk @ _bf16_round(p["wq"]) + p["bq"]).reshape(B, S, nhead, dh) * (dh ** -0.5)
    k = (qk @ _bf16_round(p["wk"]) + p["bk"]).reshape(B, S, nhead, dh)
    v = (x2 @ _bf16_round(p["wv"]) + p["bv"]).reshape(B, S, nhead, dh)
    s = jnp.einsum("bqhd,bkhd->bhqk", q, k)
    a = jax.nn.softmax(s, axis=-1)
    o = jnp.einsum("bhqk,bkhd->bqhd", a, v).reshape(B, S, C)
    x = x + (o @ _bf16_round(p["wo"]) + p["bo"])
    x2 = ln(x, p["ln2_w"], p["ln2_b"])
    h = jnp.maximum(x2 @ _bf16_round(p["w1"]) + p["b1"], 0.0)
    return x + (h @ _bf16_round(p["w2"]) + p["b2"])


def reference_forward(src_nchw, pos_nchw, layer_params, nhead):
    B, C, H, W = src_nchw.shape
    S = H * W
    x = src_nchw.reshape(B, C, S).transpose(0, 2, 1)
    pos = _bf16_round(pos_nchw.reshape(B, C, S).transpose(0, 2, 1))
    for p in layer_params:
        x = _ref_layer(x, pos, p, nhead)
    return x.transpose(0, 2, 1).reshape(B, C, H, W)


# ----------------------------------------------------------------------------
# Deterministic synthetic parameter init (mirrors xavier_uniform on dim>1).
# ----------------------------------------------------------------------------
def xavier_uniform(key, shape, dtype=jnp.float32):
    fan_in, fan_out = shape
    limit = (6.0 / (fan_in + fan_out)) ** 0.5
    return jax.random.uniform(key, shape, dtype, -limit, limit)


def make_layer_params(key, d_model, dff):
    ks = jax.random.split(key, 6)
    C = d_model
    return dict(
        ln1_w=jnp.ones((1, C), jnp.float32), ln1_b=jnp.zeros((1, C), jnp.float32),
        wq=xavier_uniform(ks[0], (C, C)), bq=jnp.zeros((1, C), jnp.float32),
        wk=xavier_uniform(ks[1], (C, C)), bk=jnp.zeros((1, C), jnp.float32),
        wv=xavier_uniform(ks[2], (C, C)), bv=jnp.zeros((1, C), jnp.float32),
        wo=xavier_uniform(ks[3], (C, C)), bo=jnp.zeros((1, C), jnp.float32),
        ln2_w=jnp.ones((1, C), jnp.float32), ln2_b=jnp.zeros((1, C), jnp.float32),
        w1=xavier_uniform(ks[4], (C, dff)), b1=jnp.zeros((1, dff), jnp.float32),
        w2=xavier_uniform(ks[5], (dff, C)), b2=jnp.zeros((1, C), jnp.float32),
    )


if __name__ == "__main__":
    key = jax.random.PRNGKey(0)
    B, d_model, H, W = 2, 32, 4, 4          # src is NCHW (transpose_swap=True path)
    nhead, dff, num_layers = 4, 64, 2

    k_src, k_pos, k_par = jax.random.split(key, 3)
    src = jax.random.normal(k_src, (B, d_model, H, W), jnp.float32)
    pos = jax.random.normal(k_pos, (B, d_model, H, W), jnp.float32)

    layer_params = [make_layer_params(k, d_model, dff)
                    for k in jax.random.split(k_par, num_layers)]
    # Pack once, outside the jitted per-call path (perf-review item #1).
    packed_layers = [pack_layer_params(p, nhead) for p in layer_params]

    fwd = jax.jit(transformer_encoder_forward, static_argnums=(3,))
    xyz, out, xyz_inds = fwd(src, pos, packed_layers, nhead)
    out = jax.block_until_ready(out)

    ref = jax.block_until_ready(reference_forward(src, pos, layer_params, nhead))
    assert out.shape == (B, d_model, H, W) and xyz is None and xyz_inds is None
    max_ref = float(jnp.max(jnp.abs(ref)))
    max_err = float(jnp.max(jnp.abs(out - ref)))
    # bf16 matmul operands / bf16 q,k,v,p intermediates vs f32 reference:
    # allow a small relative L-inf tolerance.
    assert max_err <= 5e-2 * max(1.0, max_ref), (
        f"kernel/reference mismatch: max_err={max_err}, max_ref={max_ref}")
    print("KERNEL_OK")
</pallas_src>

<mosaic_0001>
module attributes {stable_mosaic.version = 11 : i64} {
  func.func @_attn_ffn_kernel(%arg0: i32, %arg1: i32, %arg2: memref<1x16x32xf32, #tpu.memory_space<vmem>>, %arg3: memref<1x16x32xbf16, #tpu.memory_space<vmem>>, %arg4: memref<1x16x32xbf16, #tpu.memory_space<vmem>>, %arg5: memref<1x16x32xbf16, #tpu.memory_space<vmem>>, %arg6: memref<32x32xbf16, #tpu.memory_space<vmem>>, %arg7: memref<1x32xf32, #tpu.memory_space<vmem>>, %arg8: memref<1x32xf32, #tpu.memory_space<vmem>>, %arg9: memref<1x32xf32, #tpu.memory_space<vmem>>, %arg10: memref<32x64xbf16, #tpu.memory_space<vmem>>, %arg11: memref<1x64xf32, #tpu.memory_space<vmem>>, %arg12: memref<64x32xbf16, #tpu.memory_space<vmem>>, %arg13: memref<1x32xf32, #tpu.memory_space<vmem>>, %arg14: memref<1x16x32xf32, #tpu.memory_space<vmem>>) attributes {dimension_semantics = [#tpu.dimension_semantics<parallel>, #tpu.dimension_semantics<parallel>], iteration_bounds = array<i64: 2, 1>, scalar_prefetch = 0 : i64, scratch_operands = 0 : i64, tpu.core_type = #tpu.core_type<tc>, window_params = [{transform_indices = @transform_0, window_bounds = array<i64: 1, 16, 32>}, {transform_indices = @transform_1, window_bounds = array<i64: 1, 16, 32>}, {pipeline_mode = #tpu.pipeline_mode<synchronous>, transform_indices = @transform_2, window_bounds = array<i64: 1, 16, 32>}, {pipeline_mode = #tpu.pipeline_mode<synchronous>, transform_indices = @transform_3, window_bounds = array<i64: 1, 16, 32>}, {pipeline_mode = #tpu.pipeline_mode<synchronous>, transform_indices = @transform_4, window_bounds = array<i64: 32, 32>}, {pipeline_mode = #tpu.pipeline_mode<synchronous>, transform_indices = @transform_5, window_bounds = array<i64: 1, 32>}, {pipeline_mode = #tpu.pipeline_mode<synchronous>, transform_indices = @transform_6, window_bounds = array<i64: 1, 32>}, {pipeline_mode = #tpu.pipeline_mode<synchronous>, transform_indices = @transform_7, window_bounds = array<i64: 1, 32>}, {pipeline_mode = #tpu.pipeline_mode<synchronous>, transform_indices = @transform_8, window_bounds = array<i64: 32, 64>}, {pipeline_mode = #tpu.pipeline_mode<synchronous>, transform_indices = @transform_9, window_bounds = array<i64: 1, 64>}, {pipeline_mode = #tpu.pipeline_mode<synchronous>, transform_indices = @transform_10, window_bounds = array<i64: 64, 32>}, {pipeline_mode = #tpu.pipeline_mode<synchronous>, transform_indices = @transform_11, window_bounds = array<i64: 1, 32>}, {transform_indices = @transform_12, window_bounds = array<i64: 1, 16, 32>}]} {
    %c0 = arith.constant 0 : index
    %c0_0 = arith.constant 0 : index
    %c0_1 = arith.constant 0 : index
    %0 = vector.load %arg2[%c0, %c0_0, %c0_1] : memref<1x16x32xf32, #tpu.memory_space<vmem>>, vector<1x16x32xf32>
    %1 = vector.shape_cast %0 : vector<1x16x32xf32> to vector<16x32xf32>
    %c0_2 = arith.constant 0 : index
    %c0_3 = arith.constant 0 : index
    %c0_4 = arith.constant 0 : index
    %2 = vector.load %arg3[%c0_2, %c0_3, %c0_4] : memref<1x16x32xbf16, #tpu.memory_space<vmem>>, vector<1x16x32xbf16>
    %3 = vector.shape_cast %2 : vector<1x16x32xbf16> to vector<16x32xbf16>
    %c0_5 = arith.constant 0 : index
    %c0_6 = arith.constant 0 : index
    %c0_7 = arith.constant 0 : index
    %4 = vector.load %arg4[%c0_5, %c0_6, %c0_7] : memref<1x16x32xbf16, #tpu.memory_space<vmem>>, vector<1x16x32xbf16>
    %5 = vector.shape_cast %4 : vector<1x16x32xbf16> to vector<16x32xbf16>
    %c0_8 = arith.constant 0 : index
    %c0_9 = arith.constant 0 : index
    %c0_10 = arith.constant 0 : index
    %6 = vector.load %arg5[%c0_8, %c0_9, %c0_10] : memref<1x16x32xbf16, #tpu.memory_space<vmem>>, vector<1x16x32xbf16>
    %7 = vector.shape_cast %6 : vector<1x16x32xbf16> to vector<16x32xbf16>
    %8 = vector.extract_strided_slice %3 {offsets = [0, 0], sizes = [16, 8], strides = [1, 1]} : vector<16x32xbf16> to vector<16x8xbf16>
    %9 = vector.extract_strided_slice %5 {offsets = [0, 0], sizes = [16, 8], strides = [1, 1]} : vector<16x32xbf16> to vector<16x8xbf16>
    %10 = vector.extract_strided_slice %7 {offsets = [0, 0], sizes = [16, 8], strides = [1, 1]} : vector<16x32xbf16> to vector<16x8xbf16>
    %cst = arith.constant dense<0.000000e+00> : vector<16x16xf32>
    %11 = tpu.matmul %8, %9, %cst {dimension_numbers = #tpu.dot_dimension_numbers<[1], [1], [0], [0], [0, 0, 1, 0], [], []>} : vector<16x8xbf16>, vector<16x8xbf16>, vector<16x16xf32> -> vector<16x16xf32>
    %cst_11 = arith.constant dense<0xFF800000> : vector<16xf32>
    %12 = vector.multi_reduction <maximumf>, %11, %cst_11 [1] : vector<16x16xf32> to vector<16xf32>
    %13 = vector.shape_cast %12 : vector<16xf32> to vector<16x1xf32>
    %14 = vector.broadcast %13 : vector<16x1xf32> to vector<16x16xf32>
    %15 = arith.subf %11, %14 : vector<16x16xf32>
    %16 = arith.truncf %15 : vector<16x16xf32> to vector<16x16xbf16>
    %17 = math.exp %16 : vector<16x16xbf16>
    %18 = arith.extf %17 : vector<16x16xbf16> to vector<16x16xf32>
    %cst_12 = arith.constant dense<0.000000e+00> : vector<16xf32>
    %19 = vector.multi_reduction <add>, %18, %cst_12 [1] : vector<16x16xf32> to vector<16xf32>
    %20 = vector.shape_cast %19 : vector<16xf32> to vector<16x1xf32>
    %cst_13 = arith.constant dense<0.000000e+00> : vector<16x8xf32>
    %21 = tpu.matmul %17, %10, %cst_13 {dimension_numbers = #tpu.dot_dimension_numbers<[1], [0], [0], [1], [0, 0, 1, 1], [], []>} : vector<16x16xbf16>, vector<16x8xbf16>, vector<16x8xf32> -> vector<16x8xf32>
    %22 = tpu.reciprocal %20 {approx = true} : vector<16x1xf32> -> vector<16x1xf32>
    %23 = vector.broadcast %22 : vector<16x1xf32> to vector<16x8xf32>
    %24 = arith.mulf %21, %23 : vector<16x8xf32>
    %25 = arith.truncf %24 : vector<16x8xf32> to vector<16x8xbf16>
    %26 = vector.extract_strided_slice %3 {offsets = [0, 8], sizes = [16, 8], strides = [1, 1]} : vector<16x32xbf16> to vector<16x8xbf16>
    %27 = vector.extract_strided_slice %5 {offsets = [0, 8], sizes = [16, 8], strides = [1, 1]} : vector<16x32xbf16> to vector<16x8xbf16>
    %28 = vector.extract_strided_slice %7 {offsets = [0, 8], sizes = [16, 8], strides = [1, 1]} : vector<16x32xbf16> to vector<16x8xbf16>
    %cst_14 = arith.constant dense<0.000000e+00> : vector<16x16xf32>
    %29 = tpu.matmul %26, %27, %cst_14 {dimension_numbers = #tpu.dot_dimension_numbers<[1], [1], [0], [0], [0, 0, 1, 0], [], []>} : vector<16x8xbf16>, vector<16x8xbf16>, vector<16x16xf32> -> vector<16x16xf32>
    %cst_15 = arith.constant dense<0xFF800000> : vector<16xf32>
    %30 = vector.multi_reduction <maximumf>, %29, %cst_15 [1] : vector<16x16xf32> to vector<16xf32>
    %31 = vector.shape_cast %30 : vector<16xf32> to vector<16x1xf32>
    %32 = vector.broadcast %31 : vector<16x1xf32> to vector<16x16xf32>
    %33 = arith.subf %29, %32 : vector<16x16xf32>
    %34 = arith.truncf %33 : vector<16x16xf32> to vector<16x16xbf16>
    %35 = math.exp %34 : vector<16x16xbf16>
    %36 = arith.extf %35 : vector<16x16xbf16> to vector<16x16xf32>
    %cst_16 = arith.constant dense<0.000000e+00> : vector<16xf32>
    %37 = vector.multi_reduction <add>, %36, %cst_16 [1] : vector<16x16xf32> to vector<16xf32>
    %38 = vector.shape_cast %37 : vector<16xf32> to vector<16x1xf32>
    %cst_17 = arith.constant dense<0.000000e+00> : vector<16x8xf32>
    %39 = tpu.matmul %35, %28, %cst_17 {dimension_numbers = #tpu.dot_dimension_numbers<[1], [0], [0], [1], [0, 0, 1, 1], [], []>} : vector<16x16xbf16>, vector<16x8xbf16>, vector<16x8xf32> -> vector<16x8xf32>
    %40 = tpu.reciprocal %38 {approx = true} : vector<16x1xf32> -> vector<16x1xf32>
    %41 = vector.broadcast %40 : vector<16x1xf32> to vector<16x8xf32>
    %42 = arith.mulf %39, %41 : vector<16x8xf32>
    %43 = arith.truncf %42 : vector<16x8xf32> to vector<16x8xbf16>
    %44 = vector.extract_strided_slice %3 {offsets = [0, 16], sizes = [16, 8], strides = [1, 1]} : vector<16x32xbf16> to vector<16x8xbf16>
    %45 = vector.extract_strided_slice %5 {offsets = [0, 16], sizes = [16, 8], strides = [1, 1]} : vector<16x32xbf16> to vector<16x8xbf16>
    %46 = vector.extract_strided_slice %7 {offsets = [0, 16], sizes = [16, 8], strides = [1, 1]} : vector<16x32xbf16> to vector<16x8xbf16>
    %cst_18 = arith.constant dense<0.000000e+00> : vector<16x16xf32>
    %47 = tpu.matmul %44, %45, %cst_18 {dimension_numbers = #tpu.dot_dimension_numbers<[1], [1], [0], [0], [0, 0, 1, 0], [], []>} : vector<16x8xbf16>, vector<16x8xbf16>, vector<16x16xf32> -> vector<16x16xf32>
    %cst_19 = arith.constant dense<0xFF800000> : vector<16xf32>
    %48 = vector.multi_reduction <maximumf>, %47, %cst_19 [1] : vector<16x16xf32> to vector<16xf32>
    %49 = vector.shape_cast %48 : vector<16xf32> to vector<16x1xf32>
    %50 = vector.broadcast %49 : vector<16x1xf32> to vector<16x16xf32>
    %51 = arith.subf %47, %50 : vector<16x16xf32>
    %52 = arith.truncf %51 : vector<16x16xf32> to vector<16x16xbf16>
    %53 = math.exp %52 : vector<16x16xbf16>
    %54 = arith.extf %53 : vector<16x16xbf16> to vector<16x16xf32>
    %cst_20 = arith.constant dense<0.000000e+00> : vector<16xf32>
    %55 = vector.multi_reduction <add>, %54, %cst_20 [1] : vector<16x16xf32> to vector<16xf32>
    %56 = vector.shape_cast %55 : vector<16xf32> to vector<16x1xf32>
    %cst_21 = arith.constant dense<0.000000e+00> : vector<16x8xf32>
    %57 = tpu.matmul %53, %46, %cst_21 {dimension_numbers = #tpu.dot_dimension_numbers<[1], [0], [0], [1], [0, 0, 1, 1], [], []>} : vector<16x16xbf16>, vector<16x8xbf16>, vector<16x8xf32> -> vector<16x8xf32>
    %58 = tpu.reciprocal %56 {approx = true} : vector<16x1xf32> -> vector<16x1xf32>
    %59 = vector.broadcast %58 : vector<16x1xf32> to vector<16x8xf32>
    %60 = arith.mulf %57, %59 : vector<16x8xf32>
    %61 = arith.truncf %60 : vector<16x8xf32> to vector<16x8xbf16>
    %62 = vector.extract_strided_slice %3 {offsets = [0, 24], sizes = [16, 8], strides = [1, 1]} : vector<16x32xbf16> to vector<16x8xbf16>
    %63 = vector.extract_strided_slice %5 {offsets = [0, 24], sizes = [16, 8], strides = [1, 1]} : vector<16x32xbf16> to vector<16x8xbf16>
    %64 = vector.extract_strided_slice %7 {offsets = [0, 24], sizes = [16, 8], strides = [1, 1]} : vector<16x32xbf16> to vector<16x8xbf16>
    %cst_22 = arith.constant dense<0.000000e+00> : vector<16x16xf32>
    %65 = tpu.matmul %62, %63, %cst_22 {dimension_numbers = #tpu.dot_dimension_numbers<[1], [1], [0], [0], [0, 0, 1, 0], [], []>} : vector<16x8xbf16>, vector<16x8xbf16>, vector<16x16xf32> -> vector<16x16xf32>
    %cst_23 = arith.constant dense<0xFF800000> : vector<16xf32>
    %66 = vector.multi_reduction <maximumf>, %65, %cst_23 [1] : vector<16x16xf32> to vector<16xf32>
    %67 = vector.shape_cast %66 : vector<16xf32> to vector<16x1xf32>
    %68 = vector.broadcast %67 : vector<16x1xf32> to vector<16x16xf32>
    %69 = arith.subf %65, %68 : vector<16x16xf32>
    %70 = arith.truncf %69 : vector<16x16xf32> to vector<16x16xbf16>
    %71 = math.exp %70 : vector<16x16xbf16>
    %72 = arith.extf %71 : vector<16x16xbf16> to vector<16x16xf32>
    %cst_24 = arith.constant dense<0.000000e+00> : vector<16xf32>
    %73 = vector.multi_reduction <add>, %72, %cst_24 [1] : vector<16x16xf32> to vector<16xf32>
    %74 = vector.shape_cast %73 : vector<16xf32> to vector<16x1xf32>
    %cst_25 = arith.constant dense<0.000000e+00> : vector<16x8xf32>
    %75 = tpu.matmul %71, %64, %cst_25 {dimension_numbers = #tpu.dot_dimension_numbers<[1], [0], [0], [1], [0, 0, 1, 1], [], []>} : vector<16x16xbf16>, vector<16x8xbf16>, vector<16x8xf32> -> vector<16x8xf32>
    %76 = tpu.reciprocal %74 {approx = true} : vector<16x1xf32> -> vector<16x1xf32>
    %77 = vector.broadcast %76 : vector<16x1xf32> to vector<16x8xf32>
    %78 = arith.mulf %75, %77 : vector<16x8xf32>
    %79 = arith.truncf %78 : vector<16x8xf32> to vector<16x8xbf16>
    %80 = tpu.concatenate %25, %43, %61, %79 in 1 : vector<16x8xbf16>, vector<16x8xbf16>, vector<16x8xbf16>, vector<16x8xbf16> -> vector<16x32xbf16>
    %c0_26 = arith.constant 0 : index
    %c0_27 = arith.constant 0 : index
    %81 = vector.load %arg6[%c0_26, %c0_27] : memref<32x32xbf16, #tpu.memory_space<vmem>>, vector<32x32xbf16>
    %cst_28 = arith.constant dense<0.000000e+00> : vector<16x32xf32>
    %82 = tpu.matmul %80, %81, %cst_28 {dimension_numbers = #tpu.dot_dimension_numbers<[1], [0], [0], [1], [0, 0, 1, 1], [], []>} : vector<16x32xbf16>, vector<32x32xbf16>, vector<16x32xf32> -> vector<16x32xf32>
    %c0_29 = arith.constant 0 : index
    %c0_30 = arith.constant 0 : index
    %83 = vector.load %arg7[%c0_29, %c0_30] : memref<1x32xf32, #tpu.memory_space<vmem>>, vector<1x32xf32>
    %84 = vector.broadcast %83 : vector<1x32xf32> to vector<16x32xf32>
    %85 = arith.addf %82, %84 : vector<16x32xf32>
    %86 = arith.addf %1, %85 : vector<16x32xf32>
    %c0_31 = arith.constant 0 : index
    %c0_32 = arith.constant 0 : index
    %87 = vector.load %arg8[%c0_31, %c0_32] : memref<1x32xf32, #tpu.memory_space<vmem>>, vector<1x32xf32>
    %c0_33 = arith.constant 0 : index
    %c0_34 = arith.constant 0 : index
    %88 = vector.load %arg9[%c0_33, %c0_34] : memref<1x32xf32, #tpu.memory_space<vmem>>, vector<1x32xf32>
    %cst_35 = arith.constant dense<0.000000e+00> : vector<16xf32>
    %89 = vector.multi_reduction <add>, %86, %cst_35 [1] : vector<16x32xf32> to vector<16xf32>
    %90 = vector.shape_cast %89 : vector<16xf32> to vector<16x1xf32>
    %cst_36 = arith.constant 3.200000e+01 : f32
    %91 = vector.broadcast %cst_36 : f32 to vector<16x1xf32>
    %92 = arith.divf %90, %91 : vector<16x1xf32>
    %93 = vector.broadcast %92 : vector<16x1xf32> to vector<16x32xf32>
    %94 = arith.subf %86, %93 : vector<16x32xf32>
    %95 = arith.mulf %94, %94 : vector<16x32xf32>
    %cst_37 = arith.constant dense<0.000000e+00> : vector<16xf32>
    %96 = vector.multi_reduction <add>, %95, %cst_37 [1] : vector<16x32xf32> to vector<16xf32>
    %97 = vector.shape_cast %96 : vector<16xf32> to vector<16x1xf32>
    %cst_38 = arith.constant 3.200000e+01 : f32
    %98 = vector.broadcast %cst_38 : f32 to vector<16x1xf32>
    %99 = arith.divf %97, %98 : vector<16x1xf32>
    %100 = vector.broadcast %92 : vector<16x1xf32> to vector<16x32xf32>
    %101 = arith.subf %86, %100 : vector<16x32xf32>
    %cst_39 = arith.constant 9.99999974E-6 : f32
    %102 = vector.broadcast %cst_39 : f32 to vector<16x1xf32>
    %103 = arith.addf %99, %102 : vector<16x1xf32>
    %104 = math.rsqrt %103 : vector<16x1xf32>
    %105 = vector.broadcast %104 : vector<16x1xf32> to vector<16x32xf32>
    %106 = arith.mulf %101, %105 : vector<16x32xf32>
    %107 = vector.broadcast %87 : vector<1x32xf32> to vector<16x32xf32>
    %108 = arith.mulf %106, %107 : vector<16x32xf32>
    %109 = vector.broadcast %88 : vector<1x32xf32> to vector<16x32xf32>
    %110 = arith.addf %108, %109 : vector<16x32xf32>
    %111 = arith.truncf %110 : vector<16x32xf32> to vector<16x32xbf16>
    %c0_40 = arith.constant 0 : index
    %c0_41 = arith.constant 0 : index
    %112 = vector.load %arg10[%c0_40, %c0_41] : memref<32x64xbf16, #tpu.memory_space<vmem>>, vector<32x64xbf16>
    %cst_42 = arith.constant dense<0.000000e+00> : vector<16x64xf32>
    %113 = tpu.matmul %111, %112, %cst_42 {dimension_numbers = #tpu.dot_dimension_numbers<[1], [0], [0], [1], [0, 0, 1, 1], [], []>} : vector<16x32xbf16>, vector<32x64xbf16>, vector<16x64xf32> -> vector<16x64xf32>
    %c0_43 = arith.constant 0 : index
    %c0_44 = arith.constant 0 : index
    %114 = vector.load %arg11[%c0_43, %c0_44] : memref<1x64xf32, #tpu.memory_space<vmem>>, vector<1x64xf32>
    %115 = vector.broadcast %114 : vector<1x64xf32> to vector<16x64xf32>
    %116 = arith.addf %113, %115 : vector<16x64xf32>
    %cst_45 = arith.constant 0.000000e+00 : f32
    %117 = vector.broadcast %cst_45 : f32 to vector<16x64xf32>
    %118 = arith.maximumf %116, %117 : vector<16x64xf32>
    %119 = arith.truncf %118 : vector<16x64xf32> to vector<16x64xbf16>
    %c0_46 = arith.constant 0 : index
    %c0_47 = arith.constant 0 : index
    %120 = vector.load %arg12[%c0_46, %c0_47] : memref<64x32xbf16, #tpu.memory_space<vmem>>, vector<64x32xbf16>
    %cst_48 = arith.constant dense<0.000000e+00> : vector<16x32xf32>
    %121 = tpu.matmul %119, %120, %cst_48 {dimension_numbers = #tpu.dot_dimension_numbers<[1], [0], [0], [1], [0, 0, 1, 1], [], []>} : vector<16x64xbf16>, vector<64x32xbf16>, vector<16x32xf32> -> vector<16x32xf32>
    %c0_49 = arith.constant 0 : index
    %c0_50 = arith.constant 0 : index
    %122 = vector.load %arg13[%c0_49, %c0_50] : memref<1x32xf32, #tpu.memory_space<vmem>>, vector<1x32xf32>
    %123 = vector.broadcast %122 : vector<1x32xf32> to vector<16x32xf32>
    %124 = arith.addf %121, %123 : vector<16x32xf32>
    %125 = arith.addf %86, %124 : vector<16x32xf32>
    %c0_51 = arith.constant 0 : index
    %c0_52 = arith.constant 0 : index
    %c0_53 = arith.constant 0 : index
    %126 = vector.load %arg14[%c0_51, %c0_52, %c0_53] : memref<1x16x32xf32, #tpu.memory_space<vmem>>, vector<1x16x32xf32>
    %127 = vector.shape_cast %126 : vector<1x16x32xf32> to vector<16x32xf32>
    %128 = vector.shape_cast %125 : vector<16x32xf32> to vector<1x16x32xf32>
    tpu.vector_store %arg14[%c0_51, %c0_52, %c0_53], %128 {strides = array<i32>} : memref<1x16x32xf32, #tpu.memory_space<vmem>>, vector<1x16x32xf32>,
    return
  }
  func.func @transform_0(%arg0: i32, %arg1: i32) -> (i32, i32, i32) {
    %c0_i32 = arith.constant 0 : i32
    %c0_i32_0 = arith.constant 0 : i32
    return %arg0, %arg1, %c0_i32 : i32, i32, i32
  }
  func.func @transform_1(%arg0: i32, %arg1: i32) -> (i32, i32, i32) {
    %c0_i32 = arith.constant 0 : i32
    %c0_i32_0 = arith.constant 0 : i32
    return %arg0, %arg1, %c0_i32 : i32, i32, i32
  }
  func.func @transform_2(%arg0: i32, %arg1: i32) -> (i32, i32, i32) {
    %c0_i32 = arith.constant 0 : i32
    %c0_i32_0 = arith.constant 0 : i32
    %c0_i32_1 = arith.constant 0 : i32
    return %arg0, %c0_i32, %c0_i32_0 : i32, i32, i32
  }
  func.func @transform_3(%arg0: i32, %arg1: i32) -> (i32, i32, i32) {
    %c0_i32 = arith.constant 0 : i32
    %c0_i32_0 = arith.constant 0 : i32
    %c0_i32_1 = arith.constant 0 : i32
    return %arg0, %c0_i32, %c0_i32_0 : i32, i32, i32
  }
  func.func @transform_4(%arg0: i32, %arg1: i32) -> (i32, i32) {
    %c0_i32 = arith.constant 0 : i32
    %c0_i32_0 = arith.constant 0 : i32
    %c0_i32_1 = arith.constant 0 : i32
    return %c0_i32, %c0_i32_0 : i32, i32
  }
  func.func @transform_5(%arg0: i32, %arg1: i32) -> (i32, i32) {
    %c0_i32 = arith.constant 0 : i32
    %c0_i32_0 = arith.constant 0 : i32
    %c0_i32_1 = arith.constant 0 : i32
    return %c0_i32, %c0_i32_0 : i32, i32
  }
  func.func @transform_6(%arg0: i32, %arg1: i32) -> (i32, i32) {
    %c0_i32 = arith.constant 0 : i32
    %c0_i32_0 = arith.constant 0 : i32
    %c0_i32_1 = arith.constant 0 : i32
    return %c0_i32, %c0_i32_0 : i32, i32
  }
  func.func @transform_7(%arg0: i32, %arg1: i32) -> (i32, i32) {
    %c0_i32 = arith.constant 0 : i32
    %c0_i32_0 = arith.constant 0 : i32
    %c0_i32_1 = arith.constant 0 : i32
    return %c0_i32, %c0_i32_0 : i32, i32
  }
  func.func @transform_8(%arg0: i32, %arg1: i32) -> (i32, i32) {
    %c0_i32 = arith.constant 0 : i32
    %c0_i32_0 = arith.constant 0 : i32
    %c0_i32_1 = arith.constant 0 : i32
    return %c0_i32, %c0_i32_0 : i32, i32
  }
  func.func @transform_9(%arg0: i32, %arg1: i32) -> (i32, i32) {
    %c0_i32 = arith.constant 0 : i32
    %c0_i32_0 = arith.constant 0 : i32
    %c0_i32_1 = arith.constant 0 : i32
    return %c0_i32, %c0_i32_0 : i32, i32
  }
  func.func @transform_10(%arg0: i32, %arg1: i32) -> (i32, i32) {
    %c0_i32 = arith.constant 0 : i32
    %c0_i32_0 = arith.constant 0 : i32
    %c0_i32_1 = arith.constant 0 : i32
    return %c0_i32, %c0_i32_0 : i32, i32
  }
  func.func @transform_11(%arg0: i32, %arg1: i32) -> (i32, i32) {
    %c0_i32 = arith.constant 0 : i32
    %c0_i32_0 = arith.constant 0 : i32
    %c0_i32_1 = arith.constant 0 : i32
    return %c0_i32, %c0_i32_0 : i32, i32
  }
  func.func @transform_12(%arg0: i32, %arg1: i32) -> (i32, i32, i32) {
    %c0_i32 = arith.constant 0 : i32
    %c0_i32_0 = arith.constant 0 : i32
    return %arg0, %arg1, %c0_i32 : i32, i32, i32
  }
}

module attributes {stable_mosaic.version = 11 : i64} {
  func.func @_qkv_proj_kernel(%arg0: i32, %arg1: i32, %arg2: memref<1x16x32xf32, #tpu.memory_space<vmem>>, %arg3: memref<1x16x32xbf16, #tpu.memory_space<vmem>>, %arg4: memref<1x32xf32, #tpu.memory_space<vmem>>, %arg5: memref<1x32xf32, #tpu.memory_space<vmem>>, %arg6: memref<32x64xbf16, #tpu.memory_space<vmem>>, %arg7: memref<1x64xf32, #tpu.memory_space<vmem>>, %arg8: memref<32x32xbf16, #tpu.memory_space<vmem>>, %arg9: memref<1x32xf32, #tpu.memory_space<vmem>>, %arg10: memref<1x16x32xbf16, #tpu.memory_space<vmem>>, %arg11: memref<1x16x32xbf16, #tpu.memory_space<vmem>>, %arg12: memref<1x16x32xbf16, #tpu.memory_space<vmem>>) attributes {dimension_semantics = [#tpu.dimension_semantics<parallel>, #tpu.dimension_semantics<parallel>], iteration_bounds = array<i64: 2, 1>, scalar_prefetch = 0 : i64, scratch_operands = 0 : i64, tpu.core_type = #tpu.core_type<tc>, window_params = [{transform_indices = @transform_0, window_bounds = array<i64: 1, 16, 32>}, {transform_indices = @transform_1, window_bounds = array<i64: 1, 16, 32>}, {pipeline_mode = #tpu.pipeline_mode<synchronous>, transform_indices = @transform_2, window_bounds = array<i64: 1, 32>}, {pipeline_mode = #tpu.pipeline_mode<synchronous>, transform_indices = @transform_3, window_bounds = array<i64: 1, 32>}, {pipeline_mode = #tpu.pipeline_mode<synchronous>, transform_indices = @transform_4, window_bounds = array<i64: 32, 64>}, {pipeline_mode = #tpu.pipeline_mode<synchronous>, transform_indices = @transform_5, window_bounds = array<i64: 1, 64>}, {pipeline_mode = #tpu.pipeline_mode<synchronous>, transform_indices = @transform_6, window_bounds = array<i64: 32, 32>}, {pipeline_mode = #tpu.pipeline_mode<synchronous>, transform_indices = @transform_7, window_bounds = array<i64: 1, 32>}, {transform_indices = @transform_8, window_bounds = array<i64: 1, 16, 32>}, {transform_indices = @transform_9, window_bounds = array<i64: 1, 16, 32>}, {transform_indices = @transform_10, window_bounds = array<i64: 1, 16, 32>}]} {
    %c0 = arith.constant 0 : index
    %c0_0 = arith.constant 0 : index
    %c0_1 = arith.constant 0 : index
    %0 = vector.load %arg2[%c0, %c0_0, %c0_1] : memref<1x16x32xf32, #tpu.memory_space<vmem>>, vector<1x16x32xf32>
    %1 = vector.shape_cast %0 : vector<1x16x32xf32> to vector<16x32xf32>
    %c0_2 = arith.constant 0 : index
    %c0_3 = arith.constant 0 : index
    %c0_4 = arith.constant 0 : index
    %2 = vector.load %arg3[%c0_2, %c0_3, %c0_4] : memref<1x16x32xbf16, #tpu.memory_space<vmem>>, vector<1x16x32xbf16>
    %3 = vector.shape_cast %2 : vector<1x16x32xbf16> to vector<16x32xbf16>
    %4 = arith.extf %3 : vector<16x32xbf16> to vector<16x32xf32>
    %c0_5 = arith.constant 0 : index
    %c0_6 = arith.constant 0 : index
    %5 = vector.load %arg4[%c0_5, %c0_6] : memref<1x32xf32, #tpu.memory_space<vmem>>, vector<1x32xf32>
    %c0_7 = arith.constant 0 : index
    %c0_8 = arith.constant 0 : index
    %6 = vector.load %arg5[%c0_7, %c0_8] : memref<1x32xf32, #tpu.memory_space<vmem>>, vector<1x32xf32>
    %cst = arith.constant dense<0.000000e+00> : vector<16xf32>
    %7 = vector.multi_reduction <add>, %1, %cst [1] : vector<16x32xf32> to vector<16xf32>
    %8 = vector.shape_cast %7 : vector<16xf32> to vector<16x1xf32>
    %cst_9 = arith.constant 3.200000e+01 : f32
    %9 = vector.broadcast %cst_9 : f32 to vector<16x1xf32>
    %10 = arith.divf %8, %9 : vector<16x1xf32>
    %11 = vector.broadcast %10 : vector<16x1xf32> to vector<16x32xf32>
    %12 = arith.subf %1, %11 : vector<16x32xf32>
    %13 = arith.mulf %12, %12 : vector<16x32xf32>
    %cst_10 = arith.constant dense<0.000000e+00> : vector<16xf32>
    %14 = vector.multi_reduction <add>, %13, %cst_10 [1] : vector<16x32xf32> to vector<16xf32>
    %15 = vector.shape_cast %14 : vector<16xf32> to vector<16x1xf32>
    %cst_11 = arith.constant 3.200000e+01 : f32
    %16 = vector.broadcast %cst_11 : f32 to vector<16x1xf32>
    %17 = arith.divf %15, %16 : vector<16x1xf32>
    %18 = vector.broadcast %10 : vector<16x1xf32> to vector<16x32xf32>
    %19 = arith.subf %1, %18 : vector<16x32xf32>
    %cst_12 = arith.constant 9.99999974E-6 : f32
    %20 = vector.broadcast %cst_12 : f32 to vector<16x1xf32>
    %21 = arith.addf %17, %20 : vector<16x1xf32>
    %22 = math.rsqrt %21 : vector<16x1xf32>
    %23 = vector.broadcast %22 : vector<16x1xf32> to vector<16x32xf32>
    %24 = arith.mulf %19, %23 : vector<16x32xf32>
    %25 = vector.broadcast %5 : vector<1x32xf32> to vector<16x32xf32>
    %26 = arith.mulf %24, %25 : vector<16x32xf32>
    %27 = vector.broadcast %6 : vector<1x32xf32> to vector<16x32xf32>
    %28 = arith.addf %26, %27 : vector<16x32xf32>
    %29 = arith.addf %28, %4 : vector<16x32xf32>
    %30 = arith.truncf %29 : vector<16x32xf32> to vector<16x32xbf16>
    %c0_13 = arith.constant 0 : index
    %c0_14 = arith.constant 0 : index
    %31 = vector.load %arg6[%c0_13, %c0_14] : memref<32x64xbf16, #tpu.memory_space<vmem>>, vector<32x64xbf16>
    %cst_15 = arith.constant dense<0.000000e+00> : vector<16x64xf32>
    %32 = tpu.matmul %30, %31, %cst_15 {dimension_numbers = #tpu.dot_dimension_numbers<[1], [0], [0], [1], [0, 0, 1, 1], [], []>} : vector<16x32xbf16>, vector<32x64xbf16>, vector<16x64xf32> -> vector<16x64xf32>
    %c0_16 = arith.constant 0 : index
    %c0_17 = arith.constant 0 : index
    %33 = vector.load %arg7[%c0_16, %c0_17] : memref<1x64xf32, #tpu.memory_space<vmem>>, vector<1x64xf32>
    %34 = vector.broadcast %33 : vector<1x64xf32> to vector<16x64xf32>
    %35 = arith.addf %32, %34 : vector<16x64xf32>
    %36 = arith.truncf %28 : vector<16x32xf32> to vector<16x32xbf16>
    %c0_18 = arith.constant 0 : index
    %c0_19 = arith.constant 0 : index
    %37 = vector.load %arg8[%c0_18, %c0_19] : memref<32x32xbf16, #tpu.memory_space<vmem>>, vector<32x32xbf16>
    %cst_20 = arith.constant dense<0.000000e+00> : vector<16x32xf32>
    %38 = tpu.matmul %36, %37, %cst_20 {dimension_numbers = #tpu.dot_dimension_numbers<[1], [0], [0], [1], [0, 0, 1, 1], [], []>} : vector<16x32xbf16>, vector<32x32xbf16>, vector<16x32xf32> -> vector<16x32xf32>
    %c0_21 = arith.constant 0 : index
    %c0_22 = arith.constant 0 : index
    %39 = vector.load %arg9[%c0_21, %c0_22] : memref<1x32xf32, #tpu.memory_space<vmem>>, vector<1x32xf32>
    %40 = vector.broadcast %39 : vector<1x32xf32> to vector<16x32xf32>
    %41 = arith.addf %38, %40 : vector<16x32xf32>
    %42 = vector.extract_strided_slice %35 {offsets = [0, 0], sizes = [16, 32], strides = [1, 1]} : vector<16x64xf32> to vector<16x32xf32>
    %43 = arith.truncf %42 : vector<16x32xf32> to vector<16x32xbf16>
    %c0_23 = arith.constant 0 : index
    %c0_24 = arith.constant 0 : index
    %c0_25 = arith.constant 0 : index
    %44 = vector.load %arg10[%c0_23, %c0_24, %c0_25] : memref<1x16x32xbf16, #tpu.memory_space<vmem>>, vector<1x16x32xbf16>
    %45 = vector.shape_cast %44 : vector<1x16x32xbf16> to vector<16x32xbf16>
    %46 = vector.shape_cast %43 : vector<16x32xbf16> to vector<1x16x32xbf16>
    tpu.vector_store %arg10[%c0_23, %c0_24, %c0_25], %46 {strides = array<i32>} : memref<1x16x32xbf16, #tpu.memory_space<vmem>>, vector<1x16x32xbf16>,
    %47 = vector.extract_strided_slice %35 {offsets = [0, 32], sizes = [16, 32], strides = [1, 1]} : vector<16x64xf32> to vector<16x32xf32>
    %48 = arith.truncf %47 : vector<16x32xf32> to vector<16x32xbf16>
    %c0_26 = arith.constant 0 : index
    %c0_27 = arith.constant 0 : index
    %c0_28 = arith.constant 0 : index
    %49 = vector.load %arg11[%c0_26, %c0_27, %c0_28] : memref<1x16x32xbf16, #tpu.memory_space<vmem>>, vector<1x16x32xbf16>
    %50 = vector.shape_cast %49 : vector<1x16x32xbf16> to vector<16x32xbf16>
    %51 = vector.shape_cast %48 : vector<16x32xbf16> to vector<1x16x32xbf16>
    tpu.vector_store %arg11[%c0_26, %c0_27, %c0_28], %51 {strides = array<i32>} : memref<1x16x32xbf16, #tpu.memory_space<vmem>>, vector<1x16x32xbf16>,
    %52 = arith.truncf %41 : vector<16x32xf32> to vector<16x32xbf16>
    %c0_29 = arith.constant 0 : index
    %c0_30 = arith.constant 0 : index
    %c0_31 = arith.constant 0 : index
    %53 = vector.load %arg12[%c0_29, %c0_30, %c0_31] : memref<1x16x32xbf16, #tpu.memory_space<vmem>>, vector<1x16x32xbf16>
    %54 = vector.shape_cast %53 : vector<1x16x32xbf16> to vector<16x32xbf16>
    %55 = vector.shape_cast %52 : vector<16x32xbf16> to vector<1x16x32xbf16>
    tpu.vector_store %arg12[%c0_29, %c0_30, %c0_31], %55 {strides = array<i32>} : memref<1x16x32xbf16, #tpu.memory_space<vmem>>, vector<1x16x32xbf16>,
    return
  }
  func.func @transform_0(%arg0: i32, %arg1: i32) -> (i32, i32, i32) {
    %c0_i32 = arith.constant 0 : i32
    %c0_i32_0 = arith.constant 0 : i32
    return %arg0, %arg1, %c0_i32 : i32, i32, i32
  }
  func.func @transform_1(%arg0: i32, %arg1: i32) -> (i32, i32, i32) {
    %c0_i32 = arith.constant 0 : i32
    %c0_i32_0 = arith.constant 0 : i32
    return %arg0, %arg1, %c0_i32 : i32, i32, i32
  }
  func.func @transform_2(%arg0: i32, %arg1: i32) -> (i32, i32) {
    %c0_i32 = arith.constant 0 : i32
    %c0_i32_0 = arith.constant 0 : i32
    %c0_i32_1 = arith.constant 0 : i32
    return %c0_i32, %c0_i32_0 : i32, i32
  }
  func.func @transform_3(%arg0: i32, %arg1: i32) -> (i32, i32) {
    %c0_i32 = arith.constant 0 : i32
    %c0_i32_0 = arith.constant 0 : i32
    %c0_i32_1 = arith.constant 0 : i32
    return %c0_i32, %c0_i32_0 : i32, i32
  }
  func.func @transform_4(%arg0: i32, %arg1: i32) -> (i32, i32) {
    %c0_i32 = arith.constant 0 : i32
    %c0_i32_0 = arith.constant 0 : i32
    %c0_i32_1 = arith.constant 0 : i32
    return %c0_i32, %c0_i32_0 : i32, i32
  }
  func.func @transform_5(%arg0: i32, %arg1: i32) -> (i32, i32) {
    %c0_i32 = arith.constant 0 : i32
    %c0_i32_0 = arith.constant 0 : i32
    %c0_i32_1 = arith.constant 0 : i32
    return %c0_i32, %c0_i32_0 : i32, i32
  }
  func.func @transform_6(%arg0: i32, %arg1: i32) -> (i32, i32) {
    %c0_i32 = arith.constant 0 : i32
    %c0_i32_0 = arith.constant 0 : i32
    %c0_i32_1 = arith.constant 0 : i32
    return %c0_i32, %c0_i32_0 : i32, i32
  }
  func.func @transform_7(%arg0: i32, %arg1: i32) -> (i32, i32) {
    %c0_i32 = arith.constant 0 : i32
    %c0_i32_0 = arith.constant 0 : i32
    %c0_i32_1 = arith.constant 0 : i32
    return %c0_i32, %c0_i32_0 : i32, i32
  }
  func.func @transform_8(%arg0: i32, %arg1: i32) -> (i32, i32, i32) {
    %c0_i32 = arith.constant 0 : i32
    %c0_i32_0 = arith.constant 0 : i32
    return %arg0, %arg1, %c0_i32 : i32, i32, i32
  }
  func.func @transform_9(%arg0: i32, %arg1: i32) -> (i32, i32, i32) {
    %c0_i32 = arith.constant 0 : i32
    %c0_i32_0 = arith.constant 0 : i32
    return %arg0, %arg1, %c0_i32 : i32, i32, i32
  }
  func.func @transform_10(%arg0: i32, %arg1: i32) -> (i32, i32, i32) {
    %c0_i32 = arith.constant 0 : i32
    %c0_i32_0 = arith.constant 0 : i32
    return %arg0, %arg1, %c0_i32 : i32, i32, i32
  }
}

module attributes {stable_mosaic.version = 11 : i64} {
  func.func @_attn_ffn_kernel(%arg0: i32, %arg1: i32, %arg2: memref<1x16x32xf32, #tpu.memory_space<vmem>>, %arg3: memref<1x16x32xbf16, #tpu.memory_space<vmem>>, %arg4: memref<1x16x32xbf16, #tpu.memory_space<vmem>>, %arg5: memref<1x16x32xbf16, #tpu.memory_space<vmem>>, %arg6: memref<32x32xbf16, #tpu.memory_space<vmem>>, %arg7: memref<1x32xf32, #tpu.memory_space<vmem>>, %arg8: memref<1x32xf32, #tpu.memory_space<vmem>>, %arg9: memref<1x32xf32, #tpu.memory_space<vmem>>, %arg10: memref<32x64xbf16, #tpu.memory_space<vmem>>, %arg11: memref<1x64xf32, #tpu.memory_space<vmem>>, %arg12: memref<64x32xbf16, #tpu.memory_space<vmem>>, %arg13: memref<1x32xf32, #tpu.memory_space<vmem>>, %arg14: memref<1x16x32xf32, #tpu.memory_space<vmem>>) attributes {dimension_semantics = [#tpu.dimension_semantics<parallel>, #tpu.dimension_semantics<parallel>], iteration_bounds = array<i64: 2, 1>, scalar_prefetch = 0 : i64, scratch_operands = 0 : i64, tpu.core_type = #tpu.core_type<tc>, window_params = [{transform_indices = @transform_0, window_bounds = array<i64: 1, 16, 32>}, {transform_indices = @transform_1, window_bounds = array<i64: 1, 16, 32>}, {pipeline_mode = #tpu.pipeline_mode<synchronous>, transform_indices = @transform_2, window_bounds = array<i64: 1, 16, 32>}, {pipeline_mode = #tpu.pipeline_mode<synchronous>, transform_indices = @transform_3, window_bounds = array<i64: 1, 16, 32>}, {pipeline_mode = #tpu.pipeline_mode<synchronous>, transform_indices = @transform_4, window_bounds = array<i64: 32, 32>}, {pipeline_mode = #tpu.pipeline_mode<synchronous>, transform_indices = @transform_5, window_bounds = array<i64: 1, 32>}, {pipeline_mode = #tpu.pipeline_mode<synchronous>, transform_indices = @transform_6, window_bounds = array<i64: 1, 32>}, {pipeline_mode = #tpu.pipeline_mode<synchronous>, transform_indices = @transform_7, window_bounds = array<i64: 1, 32>}, {pipeline_mode = #tpu.pipeline_mode<synchronous>, transform_indices = @transform_8, window_bounds = array<i64: 32, 64>}, {pipeline_mode = #tpu.pipeline_mode<synchronous>, transform_indices = @transform_9, window_bounds = array<i64: 1, 64>}, {pipeline_mode = #tpu.pipeline_mode<synchronous>, transform_indices = @transform_10, window_bounds = array<i64: 64, 32>}, {pipeline_mode = #tpu.pipeline_mode<synchronous>, transform_indices = @transform_11, window_bounds = array<i64: 1, 32>}, {transform_indices = @transform_12, window_bounds = array<i64: 1, 16, 32>}]} {
    %c0 = arith.constant 0 : index
    %c0_0 = arith.constant 0 : index
    %c0_1 = arith.constant 0 : index
    %0 = vector.load %arg2[%c0, %c0_0, %c0_1] : memref<1x16x32xf32, #tpu.memory_space<vmem>>, vector<1x16x32xf32>
    %1 = vector.shape_cast %0 : vector<1x16x32xf32> to vector<16x32xf32>
    %c0_2 = arith.constant 0 : index
    %c0_3 = arith.constant 0 : index
    %c0_4 = arith.constant 0 : index
    %2 = vector.load %arg3[%c0_2, %c0_3, %c0_4] : memref<1x16x32xbf16, #tpu.memory_space<vmem>>, vector<1x16x32xbf16>
    %3 = vector.shape_cast %2 : vector<1x16x32xbf16> to vector<16x32xbf16>
    %c0_5 = arith.constant 0 : index
    %c0_6 = arith.constant 0 : index
    %c0_7 = arith.constant 0 : index
    %4 = vector.load %arg4[%c0_5, %c0_6, %c0_7] : memref<1x16x32xbf16, #tpu.memory_space<vmem>>, vector<1x16x32xbf16>
    %5 = vector.shape_cast %4 : vector<1x16x32xbf16> to vector<16x32xbf16>
    %c0_8 = arith.constant 0 : index
    %c0_9 = arith.constant 0 : index
    %c0_10 = arith.constant 0 : index
    %6 = vector.load %arg5[%c0_8, %c0_9, %c0_10] : memref<1x16x32xbf16, #tpu.memory_space<vmem>>, vector<1x16x32xbf16>
    %7 = vector.shape_cast %6 : vector<1x16x32xbf16> to vector<16x32xbf16>
    %8 = vector.extract_strided_slice %3 {offsets = [0, 0], sizes = [16, 8], strides = [1, 1]} : vector<16x32xbf16> to vector<16x8xbf16>
    %9 = vector.extract_strided_slice %5 {offsets = [0, 0], sizes = [16, 8], strides = [1, 1]} : vector<16x32xbf16> to vector<16x8xbf16>
    %10 = vector.extract_strided_slice %7 {offsets = [0, 0], sizes = [16, 8], strides = [1, 1]} : vector<16x32xbf16> to vector<16x8xbf16>
    %cst = arith.constant dense<0.000000e+00> : vector<16x16xf32>
    %11 = tpu.matmul %8, %9, %cst {dimension_numbers = #tpu.dot_dimension_numbers<[1], [1], [0], [0], [0, 0, 1, 0], [], []>} : vector<16x8xbf16>, vector<16x8xbf16>, vector<16x16xf32> -> vector<16x16xf32>
    %cst_11 = arith.constant dense<0xFF800000> : vector<16xf32>
    %12 = vector.multi_reduction <maximumf>, %11, %cst_11 [1] : vector<16x16xf32> to vector<16xf32>
    %13 = vector.shape_cast %12 : vector<16xf32> to vector<16x1xf32>
    %14 = vector.broadcast %13 : vector<16x1xf32> to vector<16x16xf32>
    %15 = arith.subf %11, %14 : vector<16x16xf32>
    %16 = arith.truncf %15 : vector<16x16xf32> to vector<16x16xbf16>
    %17 = math.exp %16 : vector<16x16xbf16>
    %18 = arith.extf %17 : vector<16x16xbf16> to vector<16x16xf32>
    %cst_12 = arith.constant dense<0.000000e+00> : vector<16xf32>
    %19 = vector.multi_reduction <add>, %18, %cst_12 [1] : vector<16x16xf32> to vector<16xf32>
    %20 = vector.shape_cast %19 : vector<16xf32> to vector<16x1xf32>
    %cst_13 = arith.constant dense<0.000000e+00> : vector<16x8xf32>
    %21 = tpu.matmul %17, %10, %cst_13 {dimension_numbers = #tpu.dot_dimension_numbers<[1], [0], [0], [1], [0, 0, 1, 1], [], []>} : vector<16x16xbf16>, vector<16x8xbf16>, vector<16x8xf32> -> vector<16x8xf32>
    %22 = tpu.reciprocal %20 {approx = true} : vector<16x1xf32> -> vector<16x1xf32>
    %23 = vector.broadcast %22 : vector<16x1xf32> to vector<16x8xf32>
    %24 = arith.mulf %21, %23 : vector<16x8xf32>
    %25 = arith.truncf %24 : vector<16x8xf32> to vector<16x8xbf16>
    %26 = vector.extract_strided_slice %3 {offsets = [0, 8], sizes = [16, 8], strides = [1, 1]} : vector<16x32xbf16> to vector<16x8xbf16>
    %27 = vector.extract_strided_slice %5 {offsets = [0, 8], sizes = [16, 8], strides = [1, 1]} : vector<16x32xbf16> to vector<16x8xbf16>
    %28 = vector.extract_strided_slice %7 {offsets = [0, 8], sizes = [16, 8], strides = [1, 1]} : vector<16x32xbf16> to vector<16x8xbf16>
    %cst_14 = arith.constant dense<0.000000e+00> : vector<16x16xf32>
    %29 = tpu.matmul %26, %27, %cst_14 {dimension_numbers = #tpu.dot_dimension_numbers<[1], [1], [0], [0], [0, 0, 1, 0], [], []>} : vector<16x8xbf16>, vector<16x8xbf16>, vector<16x16xf32> -> vector<16x16xf32>
    %cst_15 = arith.constant dense<0xFF800000> : vector<16xf32>
    %30 = vector.multi_reduction <maximumf>, %29, %cst_15 [1] : vector<16x16xf32> to vector<16xf32>
    %31 = vector.shape_cast %30 : vector<16xf32> to vector<16x1xf32>
    %32 = vector.broadcast %31 : vector<16x1xf32> to vector<16x16xf32>
    %33 = arith.subf %29, %32 : vector<16x16xf32>
    %34 = arith.truncf %33 : vector<16x16xf32> to vector<16x16xbf16>
    %35 = math.exp %34 : vector<16x16xbf16>
    %36 = arith.extf %35 : vector<16x16xbf16> to vector<16x16xf32>
    %cst_16 = arith.constant dense<0.000000e+00> : vector<16xf32>
    %37 = vector.multi_reduction <add>, %36, %cst_16 [1] : vector<16x16xf32> to vector<16xf32>
    %38 = vector.shape_cast %37 : vector<16xf32> to vector<16x1xf32>
    %cst_17 = arith.constant dense<0.000000e+00> : vector<16x8xf32>
    %39 = tpu.matmul %35, %28, %cst_17 {dimension_numbers = #tpu.dot_dimension_numbers<[1], [0], [0], [1], [0, 0, 1, 1], [], []>} : vector<16x16xbf16>, vector<16x8xbf16>, vector<16x8xf32> -> vector<16x8xf32>
    %40 = tpu.reciprocal %38 {approx = true} : vector<16x1xf32> -> vector<16x1xf32>
    %41 = vector.broadcast %40 : vector<16x1xf32> to vector<16x8xf32>
    %42 = arith.mulf %39, %41 : vector<16x8xf32>
    %43 = arith.truncf %42 : vector<16x8xf32> to vector<16x8xbf16>
    %44 = vector.extract_strided_slice %3 {offsets = [0, 16], sizes = [16, 8], strides = [1, 1]} : vector<16x32xbf16> to vector<16x8xbf16>
    %45 = vector.extract_strided_slice %5 {offsets = [0, 16], sizes = [16, 8], strides = [1, 1]} : vector<16x32xbf16> to vector<16x8xbf16>
    %46 = vector.extract_strided_slice %7 {offsets = [0, 16], sizes = [16, 8], strides = [1, 1]} : vector<16x32xbf16> to vector<16x8xbf16>
    %cst_18 = arith.constant dense<0.000000e+00> : vector<16x16xf32>
    %47 = tpu.matmul %44, %45, %cst_18 {dimension_numbers = #tpu.dot_dimension_numbers<[1], [1], [0], [0], [0, 0, 1, 0], [], []>} : vector<16x8xbf16>, vector<16x8xbf16>, vector<16x16xf32> -> vector<16x16xf32>
    %cst_19 = arith.constant dense<0xFF800000> : vector<16xf32>
    %48 = vector.multi_reduction <maximumf>, %47, %cst_19 [1] : vector<16x16xf32> to vector<16xf32>
    %49 = vector.shape_cast %48 : vector<16xf32> to vector<16x1xf32>
    %50 = vector.broadcast %49 : vector<16x1xf32> to vector<16x16xf32>
    %51 = arith.subf %47, %50 : vector<16x16xf32>
    %52 = arith.truncf %51 : vector<16x16xf32> to vector<16x16xbf16>
    %53 = math.exp %52 : vector<16x16xbf16>
    %54 = arith.extf %53 : vector<16x16xbf16> to vector<16x16xf32>
    %cst_20 = arith.constant dense<0.000000e+00> : vector<16xf32>
    %55 = vector.multi_reduction <add>, %54, %cst_20 [1] : vector<16x16xf32> to vector<16xf32>
    %56 = vector.shape_cast %55 : vector<16xf32> to vector<16x1xf32>
    %cst_21 = arith.constant dense<0.000000e+00> : vector<16x8xf32>
    %57 = tpu.matmul %53, %46, %cst_21 {dimension_numbers = #tpu.dot_dimension_numbers<[1], [0], [0], [1], [0, 0, 1, 1], [], []>} : vector<16x16xbf16>, vector<16x8xbf16>, vector<16x8xf32> -> vector<16x8xf32>
    %58 = tpu.reciprocal %56 {approx = true} : vector<16x1xf32> -> vector<16x1xf32>
    %59 = vector.broadcast %58 : vector<16x1xf32> to vector<16x8xf32>
    %60 = arith.mulf %57, %59 : vector<16x8xf32>
    %61 = arith.truncf %60 : vector<16x8xf32> to vector<16x8xbf16>
    %62 = vector.extract_strided_slice %3 {offsets = [0, 24], sizes = [16, 8], strides = [1, 1]} : vector<16x32xbf16> to vector<16x8xbf16>
    %63 = vector.extract_strided_slice %5 {offsets = [0, 24], sizes = [16, 8], strides = [1, 1]} : vector<16x32xbf16> to vector<16x8xbf16>
    %64 = vector.extract_strided_slice %7 {offsets = [0, 24], sizes = [16, 8], strides = [1, 1]} : vector<16x32xbf16> to vector<16x8xbf16>
    %cst_22 = arith.constant dense<0.000000e+00> : vector<16x16xf32>
    %65 = tpu.matmul %62, %63, %cst_22 {dimension_numbers = #tpu.dot_dimension_numbers<[1], [1], [0], [0], [0, 0, 1, 0], [], []>} : vector<16x8xbf16>, vector<16x8xbf16>, vector<16x16xf32> -> vector<16x16xf32>
    %cst_23 = arith.constant dense<0xFF800000> : vector<16xf32>
    %66 = vector.multi_reduction <maximumf>, %65, %cst_23 [1] : vector<16x16xf32> to vector<16xf32>
    %67 = vector.shape_cast %66 : vector<16xf32> to vector<16x1xf32>
    %68 = vector.broadcast %67 : vector<16x1xf32> to vector<16x16xf32>
    %69 = arith.subf %65, %68 : vector<16x16xf32>
    %70 = arith.truncf %69 : vector<16x16xf32> to vector<16x16xbf16>
    %71 = math.exp %70 : vector<16x16xbf16>
    %72 = arith.extf %71 : vector<16x16xbf16> to vector<16x16xf32>
    %cst_24 = arith.constant dense<0.000000e+00> : vector<16xf32>
    %73 = vector.multi_reduction <add>, %72, %cst_24 [1] : vector<16x16xf32> to vector<16xf32>
    %74 = vector.shape_cast %73 : vector<16xf32> to vector<16x1xf32>
    %cst_25 = arith.constant dense<0.000000e+00> : vector<16x8xf32>
    %75 = tpu.matmul %71, %64, %cst_25 {dimension_numbers = #tpu.dot_dimension_numbers<[1], [0], [0], [1], [0, 0, 1, 1], [], []>} : vector<16x16xbf16>, vector<16x8xbf16>, vector<16x8xf32> -> vector<16x8xf32>
    %76 = tpu.reciprocal %74 {approx = true} : vector<16x1xf32> -> vector<16x1xf32>
    %77 = vector.broadcast %76 : vector<16x1xf32> to vector<16x8xf32>
    %78 = arith.mulf %75, %77 : vector<16x8xf32>
    %79 = arith.truncf %78 : vector<16x8xf32> to vector<16x8xbf16>
    %80 = tpu.concatenate %25, %43, %61, %79 in 1 : vector<16x8xbf16>, vector<16x8xbf16>, vector<16x8xbf16>, vector<16x8xbf16> -> vector<16x32xbf16>
    %c0_26 = arith.constant 0 : index
    %c0_27 = arith.constant 0 : index
    %81 = vector.load %arg6[%c0_26, %c0_27] : memref<32x32xbf16, #tpu.memory_space<vmem>>, vector<32x32xbf16>
    %cst_28 = arith.constant dense<0.000000e+00> : vector<16x32xf32>
    %82 = tpu.matmul %80, %81, %cst_28 {dimension_numbers = #tpu.dot_dimension_numbers<[1], [0], [0], [1], [0, 0, 1, 1], [], []>} : vector<16x32xbf16>, vector<32x32xbf16>, vector<16x32xf32> -> vector<16x32xf32>
    %c0_29 = arith.constant 0 : index
    %c0_30 = arith.constant 0 : index
    %83 = vector.load %arg7[%c0_29, %c0_30] : memref<1x32xf32, #tpu.memory_space<vmem>>, vector<1x32xf32>
    %84 = vector.broadcast %83 : vector<1x32xf32> to vector<16x32xf32>
    %85 = arith.addf %82, %84 : vector<16x32xf32>
    %86 = arith.addf %1, %85 : vector<16x32xf32>
    %c0_31 = arith.constant 0 : index
    %c0_32 = arith.constant 0 : index
    %87 = vector.load %arg8[%c0_31, %c0_32] : memref<1x32xf32, #tpu.memory_space<vmem>>, vector<1x32xf32>
    %c0_33 = arith.constant 0 : index
    %c0_34 = arith.constant 0 : index
    %88 = vector.load %arg9[%c0_33, %c0_34] : memref<1x32xf32, #tpu.memory_space<vmem>>, vector<1x32xf32>
    %cst_35 = arith.constant dense<0.000000e+00> : vector<16xf32>
    %89 = vector.multi_reduction <add>, %86, %cst_35 [1] : vector<16x32xf32> to vector<16xf32>
    %90 = vector.shape_cast %89 : vector<16xf32> to vector<16x1xf32>
    %cst_36 = arith.constant 3.200000e+01 : f32
    %91 = vector.broadcast %cst_36 : f32 to vector<16x1xf32>
    %92 = arith.divf %90, %91 : vector<16x1xf32>
    %93 = vector.broadcast %92 : vector<16x1xf32> to vector<16x32xf32>
    %94 = arith.subf %86, %93 : vector<16x32xf32>
    %95 = arith.mulf %94, %94 : vector<16x32xf32>
    %cst_37 = arith.constant dense<0.000000e+00> : vector<16xf32>
    %96 = vector.multi_reduction <add>, %95, %cst_37 [1] : vector<16x32xf32> to vector<16xf32>
    %97 = vector.shape_cast %96 : vector<16xf32> to vector<16x1xf32>
    %cst_38 = arith.constant 3.200000e+01 : f32
    %98 = vector.broadcast %cst_38 : f32 to vector<16x1xf32>
    %99 = arith.divf %97, %98 : vector<16x1xf32>
    %100 = vector.broadcast %92 : vector<16x1xf32> to vector<16x32xf32>
    %101 = arith.subf %86, %100 : vector<16x32xf32>
    %cst_39 = arith.constant 9.99999974E-6 : f32
    %102 = vector.broadcast %cst_39 : f32 to vector<16x1xf32>
    %103 = arith.addf %99, %102 : vector<16x1xf32>
    %104 = math.rsqrt %103 : vector<16x1xf32>
    %105 = vector.broadcast %104 : vector<16x1xf32> to vector<16x32xf32>
    %106 = arith.mulf %101, %105 : vector<16x32xf32>
    %107 = vector.broadcast %87 : vector<1x32xf32> to vector<16x32xf32>
    %108 = arith.mulf %106, %107 : vector<16x32xf32>
    %109 = vector.broadcast %88 : vector<1x32xf32> to vector<16x32xf32>
    %110 = arith.addf %108, %109 : vector<16x32xf32>
    %111 = arith.truncf %110 : vector<16x32xf32> to vector<16x32xbf16>
    %c0_40 = arith.constant 0 : index
    %c0_41 = arith.constant 0 : index
    %112 = vector.load %arg10[%c0_40, %c0_41] : memref<32x64xbf16, #tpu.memory_space<vmem>>, vector<32x64xbf16>
    %cst_42 = arith.constant dense<0.000000e+00> : vector<16x64xf32>
    %113 = tpu.matmul %111, %112, %cst_42 {dimension_numbers = #tpu.dot_dimension_numbers<[1], [0], [0], [1], [0, 0, 1, 1], [], []>} : vector<16x32xbf16>, vector<32x64xbf16>, vector<16x64xf32> -> vector<16x64xf32>
    %c0_43 = arith.constant 0 : index
    %c0_44 = arith.constant 0 : index
    %114 = vector.load %arg11[%c0_43, %c0_44] : memref<1x64xf32, #tpu.memory_space<vmem>>, vector<1x64xf32>
    %115 = vector.broadcast %114 : vector<1x64xf32> to vector<16x64xf32>
    %116 = arith.addf %113, %115 : vector<16x64xf32>
    %cst_45 = arith.constant 0.000000e+00 : f32
    %117 = vector.broadcast %cst_45 : f32 to vector<16x64xf32>
    %118 = arith.maximumf %116, %117 : vector<16x64xf32>
    %119 = arith.truncf %118 : vector<16x64xf32> to vector<16x64xbf16>
    %c0_46 = arith.constant 0 : index
    %c0_47 = arith.constant 0 : index
    %120 = vector.load %arg12[%c0_46, %c0_47] : memref<64x32xbf16, #tpu.memory_space<vmem>>, vector<64x32xbf16>
    %cst_48 = arith.constant dense<0.000000e+00> : vector<16x32xf32>
    %121 = tpu.matmul %119, %120, %cst_48 {dimension_numbers = #tpu.dot_dimension_numbers<[1], [0], [0], [1], [0, 0, 1, 1], [], []>} : vector<16x64xbf16>, vector<64x32xbf16>, vector<16x32xf32> -> vector<16x32xf32>
    %c0_49 = arith.constant 0 : index
    %c0_50 = arith.constant 0 : index
    %122 = vector.load %arg13[%c0_49, %c0_50] : memref<1x32xf32, #tpu.memory_space<vmem>>, vector<1x32xf32>
    %123 = vector.broadcast %122 : vector<1x32xf32> to vector<16x32xf32>
    %124 = arith.addf %121, %123 : vector<16x32xf32>
    %125 = arith.addf %86, %124 : vector<16x32xf32>
    %c0_51 = arith.constant 0 : index
    %c0_52 = arith.constant 0 : index
    %c0_53 = arith.constant 0 : index
    %126 = vector.load %arg14[%c0_51, %c0_52, %c0_53] : memref<1x16x32xf32, #tpu.memory_space<vmem>>, vector<1x16x32xf32>
    %127 = vector.shape_cast %126 : vector<1x16x32xf32> to vector<16x32xf32>
    %128 = vector.shape_cast %125 : vector<16x32xf32> to vector<1x16x32xf32>
    tpu.vector_store %arg14[%c0_51, %c0_52, %c0_53], %128 {strides = array<i32>} : memref<1x16x32xf32, #tpu.memory_space<vmem>>, vector<1x16x32xf32>,
    return
  }
  func.func @transform_0(%arg0: i32, %arg1: i32) -> (i32, i32, i32) {
    %c0_i32 = arith.constant 0 : i32
    %c0_i32_0 = arith.constant 0 : i32
    return %arg0, %arg1, %c0_i32 : i32, i32, i32
  }
  func.func @transform_1(%arg0: i32, %arg1: i32) -> (i32, i32, i32) {
    %c0_i32 = arith.constant 0 : i32
    %c0_i32_0 = arith.constant 0 : i32
    return %arg0, %arg1, %c0_i32 : i32, i32, i32
  }
  func.func @transform_2(%arg0: i32, %arg1: i32) -> (i32, i32, i32) {
    %c0_i32 = arith.constant 0 : i32
    %c0_i32_0 = arith.constant 0 : i32
    %c0_i32_1 = arith.constant 0 : i32
    return %arg0, %c0_i32, %c0_i32_0 : i32, i32, i32
  }
  func.func @transform_3(%arg0: i32, %arg1: i32) -> (i32, i32, i32) {
    %c0_i32 = arith.constant 0 : i32
    %c0_i32_0 = arith.constant 0 : i32
    %c0_i32_1 = arith.constant 0 : i32
    return %arg0, %c0_i32, %c0_i32_0 : i32, i32, i32
  }
  func.func @transform_4(%arg0: i32, %arg1: i32) -> (i32, i32) {
    %c0_i32 = arith.constant 0 : i32
    %c0_i32_0 = arith.constant 0 : i32
    %c0_i32_1 = arith.constant 0 : i32
    return %c0_i32, %c0_i32_0 : i32, i32
  }
  func.func @transform_5(%arg0: i32, %arg1: i32) -> (i32, i32) {
    %c0_i32 = arith.constant 0 : i32
    %c0_i32_0 = arith.constant 0 : i32
    %c0_i32_1 = arith.constant 0 : i32
    return %c0_i32, %c0_i32_0 : i32, i32
  }
  func.func @transform_6(%arg0: i32, %arg1: i32) -> (i32, i32) {
    %c0_i32 = arith.constant 0 : i32
    %c0_i32_0 = arith.constant 0 : i32
    %c0_i32_1 = arith.constant 0 : i32
    return %c0_i32, %c0_i32_0 : i32, i32
  }
  func.func @transform_7(%arg0: i32, %arg1: i32) -> (i32, i32) {
    %c0_i32 = arith.constant 0 : i32
    %c0_i32_0 = arith.constant 0 : i32
    %c0_i32_1 = arith.constant 0 : i32
    return %c0_i32, %c0_i32_0 : i32, i32
  }
  func.func @transform_8(%arg0: i32, %arg1: i32) -> (i32, i32) {
    %c0_i32 = arith.constant 0 : i32
    %c0_i32_0 = arith.constant 0 : i32
    %c0_i32_1 = arith.constant 0 : i32
    return %c0_i32, %c0_i32_0 : i32, i32
  }
  func.func @transform_9(%arg0: i32, %arg1: i32) -> (i32, i32) {
    %c0_i32 = arith.constant 0 : i32
    %c0_i32_0 = arith.constant 0 : i32
    %c0_i32_1 = arith.constant 0 : i32
    return %c0_i32, %c0_i32_0 : i32, i32
  }
  func.func @transform_10(%arg0: i32, %arg1: i32) -> (i32, i32) {
    %c0_i32 = arith.constant 0 : i32
    %c0_i32_0 = arith.constant 0 : i32
    %c0_i32_1 = arith.constant 0 : i32
    return %c0_i32, %c0_i32_0 : i32, i32
  }
  func.func @transform_11(%arg0: i32, %arg1: i32) -> (i32, i32) {
    %c0_i32 = arith.constant 0 : i32
    %c0_i32_0 = arith.constant 0 : i32
    %c0_i32_1 = arith.constant 0 : i32
    return %c0_i32, %c0_i32_0 : i32, i32
  }
  func.func @transform_12(%arg0: i32, %arg1: i32) -> (i32, i32, i32) {
    %c0_i32 = arith.constant 0 : i32
    %c0_i32_0 = arith.constant 0 : i32
    return %arg0, %arg1, %c0_i32 : i32, i32, i32
  }
}

</mosaic_0001>

<llo_original>
// kernel: transformer_encoder_forward.4
$region0: #{transformer_encoder_forward.4}
  #allocation0 [shape = 'u32[]', space=smem, size = 0x4, offset = 0x4, fixed_abs, tag = 'smem constant byte address 0x4 - core index']
  #allocation1 [shape = 'u32[144,128]{1,0:T(1,128)}', space=vmem, size = 0x12000, scoped, tag = 'internal scratch']
  %s0 = inlined_call_operand.vmem [shape: f32[2,16,32], index: 0, kind: input, shape index: {}]
  %s1 = inlined_call_operand.vmem [shape: bf16[2,16,32], index: 1, kind: input, shape index: {}]
  %s2 = inlined_call_operand.vmem [shape: f32[1,32], index: 2, kind: input, shape index: {}]
  %s3 = inlined_call_operand.vmem [shape: f32[1,32], index: 3, kind: input, shape index: {}]
  %s4 = inlined_call_operand.vmem [shape: bf16[32,64], index: 4, kind: input, shape index: {}]
  %s5 = inlined_call_operand.vmem [shape: f32[1,64], index: 5, kind: input, shape index: {}]
  %s6 = inlined_call_operand.vmem [shape: bf16[32,32], index: 6, kind: input, shape index: {}]
  %s7 = inlined_call_operand.vmem [shape: f32[1,32], index: 7, kind: input, shape index: {}]
  %s8 = inlined_call_operand.vmem [shape: bf16[2,16,32], index: 8, kind: output, shape index: {0}]
  %s9 = inlined_call_operand.vmem [shape: bf16[2,16,32], index: 9, kind: output, shape index: {1}]
  %s10 = inlined_call_operand.vmem [shape: bf16[2,16,32], index: 10, kind: output, shape index: {2}]
  %11 = xla_tuple %s8, %s9, %s10
  %s12 = sld [smem:[#allocation0]]
  $region81: #{transformer_encoder_forward.4} parent=0
    _
  %s14 = ssub.s32 1, %s12
  %s15 = scalar_select 0, %s14, %s12
  loop: start=0, step=1, limit=4
  $region2: #{transformer_encoder_forward.4} parent=0 // loop_pre_header
    _
  $region3: #{transformer_encoder_forward.4} parent=0 // loop_header
    %s17 = sphi 0, %s21
    %p18 = scmp.ge.s32.totalorder %s17, 4
    %s24 = sphi 0, %s36
    %s25 = sphi 0, %s32
    %s26 = sphi 0, %s24
    %s27 = sphi 0, %s25
    %s28 = sphi 0, %s26
    %s29 = sphi 0, %s27
    %s41 = sphi 0, %s43
    %s44 = sphi 0, %s41
    %s45 = sphi 0, %s44
    %s61 = sphi 0, %s45
    %s69 = sphi 0, %s71
    %s72 = sphi 0, %s69
    %s73 = sphi 0, %s72
    %s89 = sphi 0, %s73
    %s93 = sphi 0, %s93
    %s95 = sphi 0, %s93
    %s96 = sphi 0, %s95
    %s110 = sphi 0, %s96
    %s114 = sphi 0, %s114
    %s116 = sphi 0, %s114
    %s117 = sphi 0, %s116
    %s131 = sphi 0, %s117
    %s135 = sphi 0, %s135
    %s137 = sphi 0, %s135
    %s138 = sphi 0, %s137
    %s152 = sphi 0, %s138
    %s156 = sphi 0, %s156
    %s158 = sphi 0, %s156
    %s159 = sphi 0, %s158
    %s173 = sphi 0, %s159
    %s177 = sphi 0, %s177
    %s179 = sphi 0, %s177
    %s180 = sphi 0, %s179
    %s194 = sphi 0, %s180
    %s198 = sphi 0, %s198
    %s200 = sphi 0, %s198
    %s201 = sphi 0, %s200
    %s215 = sphi 0, %s201
    %s223 = sphi 0, %s225
    %s226 = sphi 0, %s223
    %s227 = sphi 0, %s226
    %s243 = sphi 0, %s227
    %s251 = sphi 0, %s253
    %s254 = sphi 0, %s251
    %s255 = sphi 0, %s254
    %s271 = sphi 0, %s255
    %s279 = sphi 0, %s281
    %s282 = sphi 0, %s279
    %s283 = sphi 0, %s282
    %s299 = sphi 0, %s283
  $region4: #{transformer_encoder_forward.4} parent=0 // loop_header_branch
    %20 = sbr.rel (%p18) target = $region8
  $region5: #{transformer_encoder_forward.4} parent=0 // loop_body
    %s22 = ssub.s32 %s17, 1
    %s23 = ssub.s32 %s17, 2
    %s30 = sadd.s32 1, %s25
    %p31 = scmp.ge.s32.totalorder %s30, 1
    %s32 = scalar_select %p31, 0, %s30
    %s33 = sadd.s32 1, %s24
    %s34 = scalar_select %p31, %s33, %s24
    %p35 = scmp.ge.s32.totalorder %s34, 2
    %s36 = scalar_select %p35, 0, %s34
    %s37 = ssub.s32 %s24, %s36
    %s38 = ssub.s32 %s25, %s32
    %s39 = sor.u32 %s37, %s38
    %p40 = scmp.eq.s32.totalorder %s39, 0
    %s42 = sadd.s32 %s41, 1
    %s43 = scalar_select %p40, %s41, %s42
    %p46 = pneg %p40
    %p47 = scmp.eq.s32.totalorder %s17, 1
    %p48 = por %p46, %p47
    %p49 = scmp.ne.s32.totalorder %s41, %s44
    %p50 = scmp.eq.s32.totalorder %s17, 0
    %p51 = por %p49, %p50
    %p52 = scmp.ne.s32.totalorder %s41, %s44
    %p53 = scmp.eq.s32.totalorder %s22, 1
    %p54 = por %p52, %p53
    %p55 = scmp.ne.s32.totalorder %s44, %s45
    %p56 = scmp.eq.s32.totalorder %s22, 0
    %p57 = por %p55, %p56
    %p58 = scmp.ne.s32.totalorder %s44, %s45
    %p59 = scmp.eq.s32.totalorder %s23, 1
    %p60 = por %p58, %p59
    %p62 = scmp.ne.s32.totalorder %s45, %s61
    %p63 = scmp.eq.s32.totalorder %s23, 0
    %p64 = por %p62, %p63
    %s65 = ssub.s32 %s24, %s36
    %s66 = ssub.s32 %s25, %s32
    %s67 = sor.u32 %s65, %s66
    %p68 = scmp.eq.s32.totalorder %s67, 0
    %s70 = sadd.s32 %s69, 1
    %s71 = scalar_select %p68, %s69, %s70
    %p74 = pneg %p68
    %p75 = scmp.eq.s32.totalorder %s17, 1
    %p76 = por %p74, %p75
    %p77 = scmp.ne.s32.totalorder %s69, %s72
    %p78 = scmp.eq.s32.totalorder %s17, 0
    %p79 = por %p77, %p78
    %p80 = scmp.ne.s32.totalorder %s69, %s72
    %p81 = scmp.eq.s32.totalorder %s22, 1
    %p82 = por %p80, %p81
    %p83 = scmp.ne.s32.totalorder %s72, %s73
    %p84 = scmp.eq.s32.totalorder %s22, 0
    %p85 = por %p83, %p84
    %p86 = scmp.ne.s32.totalorder %s72, %s73
    %p87 = scmp.eq.s32.totalorder %s23, 1
    %p88 = por %p86, %p87
    %p90 = scmp.ne.s32.totalorder %s73, %s89
    %p91 = scmp.eq.s32.totalorder %s23, 0
    %p92 = por %p90, %p91
    %s94 = sadd.s32 %s93, 1
    %p97 = scmp.eq.s32.totalorder %s17, 1
    %p98 = scmp.ne.s32.totalorder %s93, %s95
    %p99 = scmp.eq.s32.totalorder %s17, 0
    %p100 = por %p98, %p99
    %p101 = scmp.ne.s32.totalorder %s93, %s95
    %p102 = scmp.eq.s32.totalorder %s22, 1
    %p103 = por %p101, %p102
    %p104 = scmp.ne.s32.totalorder %s95, %s96
    %p105 = scmp.eq.s32.totalorder %s22, 0
    %p106 = por %p104, %p105
    %p107 = scmp.ne.s32.totalorder %s95, %s96
    %p108 = scmp.eq.s32.totalorder %s23, 1
    %p109 = por %p107, %p108
    %p111 = scmp.ne.s32.totalorder %s96, %s110
    %p112 = scmp.eq.s32.totalorder %s23, 0
    %p113 = por %p111, %p112
    %s115 = sadd.s32 %s114, 1
    %p118 = scmp.eq.s32.totalorder %s17, 1
    %p119 = scmp.ne.s32.totalorder %s114, %s116
    %p120 = scmp.eq.s32.totalorder %s17, 0
    %p121 = por %p119, %p120
    %p122 = scmp.ne.s32.totalorder %s114, %s116
    %p123 = scmp.eq.s32.totalorder %s22, 1
    %p124 = por %p122, %p123
    %p125 = scmp.ne.s32.totalorder %s116, %s117
    %p126 = scmp.eq.s32.totalorder %s22, 0
    %p127 = por %p125, %p126
    %p128 = scmp.ne.s32.totalorder %s116, %s117
    %p129 = scmp.eq.s32.totalorder %s23, 1
    %p130 = por %p128, %p129
    %p132 = scmp.ne.s32.totalorder %s117, %s131
    %p133 = scmp.eq.s32.totalorder %s23, 0
    %p134 = por %p132, %p133
    %s136 = sadd.s32 %s135, 1
    %p139 = scmp.eq.s32.totalorder %s17, 1
    %p140 = scmp.ne.s32.totalorder %s135, %s137
    %p141 = scmp.eq.s32.totalorder %s17, 0
    %p142 = por %p140, %p141
    %p143 = scmp.ne.s32.totalorder %s135, %s137
    %p144 = scmp.eq.s32.totalorder %s22, 1
    %p145 = por %p143, %p144
    %p146 = scmp.ne.s32.totalorder %s137, %s138
    %p147 = scmp.eq.s32.totalorder %s22, 0
    %p148 = por %p146, %p147
    %p149 = scmp.ne.s32.totalorder %s137, %s138
    %p150 = scmp.eq.s32.totalorder %s23, 1
    %p151 = por %p149, %p150
    %p153 = scmp.ne.s32.totalorder %s138, %s152
    %p154 = scmp.eq.s32.totalorder %s23, 0
    %p155 = por %p153, %p154
    %s157 = sadd.s32 %s156, 1
    %p160 = scmp.eq.s32.totalorder %s17, 1
    %p161 = scmp.ne.s32.totalorder %s156, %s158
    %p162 = scmp.eq.s32.totalorder %s17, 0
    %p163 = por %p161, %p162
    %p164 = scmp.ne.s32.totalorder %s156, %s158
    %p165 = scmp.eq.s32.totalorder %s22, 1
    %p166 = por %p164, %p165
    %p167 = scmp.ne.s32.totalorder %s158, %s159
    %p168 = scmp.eq.s32.totalorder %s22, 0
    %p169 = por %p167, %p168
    %p170 = scmp.ne.s32.totalorder %s158, %s159
    %p171 = scmp.eq.s32.totalorder %s23, 1
    %p172 = por %p170, %p171
    %p174 = scmp.ne.s32.totalorder %s159, %s173
    %p175 = scmp.eq.s32.totalorder %s23, 0
    %p176 = por %p174, %p175
    %s178 = sadd.s32 %s177, 1
    %p181 = scmp.eq.s32.totalorder %s17, 1
    %p182 = scmp.ne.s32.totalorder %s177, %s179
    %p183 = scmp.eq.s32.totalorder %s17, 0
    %p184 = por %p182, %p183
    %p185 = scmp.ne.s32.totalorder %s177, %s179
    %p186 = scmp.eq.s32.totalorder %s22, 1
    %p187 = por %p185, %p186
    %p188 = scmp.ne.s32.totalorder %s179, %s180
    %p189 = scmp.eq.s32.totalorder %s22, 0
    %p190 = por %p188, %p189
    %p191 = scmp.ne.s32.totalorder %s179, %s180
    %p192 = scmp.eq.s32.totalorder %s23, 1
    %p193 = por %p191, %p192
    %p195 = scmp.ne.s32.totalorder %s180, %s194
    %p196 = scmp.eq.s32.totalorder %s23, 0
    %p197 = por %p195, %p196
    %s199 = sadd.s32 %s198, 1
    %p202 = scmp.eq.s32.totalorder %s17, 1
    %p203 = scmp.ne.s32.totalorder %s198, %s200
    %p204 = scmp.eq.s32.totalorder %s17, 0
    %p205 = por %p203, %p204
    %p206 = scmp.ne.s32.totalorder %s198, %s200
    %p207 = scmp.eq.s32.totalorder %s22, 1
    %p208 = por %p206, %p207
    %p209 = scmp.ne.s32.totalorder %s200, %s201
    %p210 = scmp.eq.s32.totalorder %s22, 0
    %p211 = por %p209, %p210
    %p212 = scmp.ne.s32.totalorder %s200, %s201
    %p213 = scmp.eq.s32.totalorder %s23, 1
    %p214 = por %p212, %p213
    %p216 = scmp.ne.s32.totalorder %s201, %s215
    %p217 = scmp.eq.s32.totalorder %s23, 0
    %p218 = por %p216, %p217
    %s219 = ssub.s32 %s24, %s36
    %s220 = ssub.s32 %s25, %s32
    %s221 = sor.u32 %s219, %s220
    %p222 = scmp.eq.s32.totalorder %s221, 0
    %s224 = sadd.s32 %s223, 1
    %s225 = scalar_select %p222, %s223, %s224
    %p228 = pneg %p222
    %p229 = scmp.eq.s32.totalorder %s17, 1
    %p230 = por %p228, %p229
    %p231 = scmp.ne.s32.totalorder %s223, %s226
    %p232 = scmp.eq.s32.totalorder %s17, 0
    %p233 = por %p231, %p232
    %p234 = scmp.ne.s32.totalorder %s223, %s226
    %p235 = scmp.eq.s32.totalorder %s22, 1
    %p236 = por %p234, %p235
    %p237 = scmp.ne.s32.totalorder %s226, %s227
    %p238 = scmp.eq.s32.totalorder %s22, 0
    %p239 = por %p237, %p238
    %p240 = scmp.ne.s32.totalorder %s226, %s227
    %p241 = scmp.eq.s32.totalorder %s23, 1
    %p242 = por %p240, %p241
    %p244 = scmp.ne.s32.totalorder %s227, %s243
    %p245 = scmp.eq.s32.totalorder %s23, 0
    %p246 = por %p244, %p245
    %s247 = ssub.s32 %s24, %s36
    %s248 = ssub.s32 %s25, %s32
    %s249 = sor.u32 %s247, %s248
    %p250 = scmp.eq.s32.totalorder %s249, 0
    %s252 = sadd.s32 %s251, 1
    %s253 = scalar_select %p250, %s251, %s252
    %p256 = pneg %p250
    %p257 = scmp.eq.s32.totalorder %s17, 1
    %p258 = por %p256, %p257
    %p259 = scmp.ne.s32.totalorder %s251, %s254
    %p260 = scmp.eq.s32.totalorder %s17, 0
    %p261 = por %p259, %p260
    %p262 = scmp.ne.s32.totalorder %s251, %s254
    %p263 = scmp.eq.s32.totalorder %s22, 1
    %p264 = por %p262, %p263
    %p265 = scmp.ne.s32.totalorder %s254, %s255
    %p266 = scmp.eq.s32.totalorder %s22, 0
    %p267 = por %p265, %p266
    %p268 = scmp.ne.s32.totalorder %s254, %s255
    %p269 = scmp.eq.s32.totalorder %s23, 1
    %p270 = por %p268, %p269
    %p272 = scmp.ne.s32.totalorder %s255, %s271
    %p273 = scmp.eq.s32.totalorder %s23, 0
    %p274 = por %p272, %p273
    %s275 = ssub.s32 %s24, %s36
    %s276 = ssub.s32 %s25, %s32
    %s277 = sor.u32 %s275, %s276
    %p278 = scmp.eq.s32.totalorder %s277, 0
    %s280 = sadd.s32 %s279, 1
    %s281 = scalar_select %p278, %s279, %s280
    %p284 = pneg %p278
    %p285 = scmp.eq.s32.totalorder %s17, 1
    %p286 = por %p284, %p285
    %p287 = scmp.ne.s32.totalorder %s279, %s282
    %p288 = scmp.eq.s32.totalorder %s17, 0
    %p289 = por %p287, %p288
    %p290 = scmp.ne.s32.totalorder %s279, %s282
    %p291 = scmp.eq.s32.totalorder %s22, 1
    %p292 = por %p290, %p291
    %p293 = scmp.ne.s32.totalorder %s282, %s283
    %p294 = scmp.eq.s32.totalorder %s22, 0
    %p295 = por %p293, %p294
    %p296 = scmp.ne.s32.totalorder %s282, %s283
    %p297 = scmp.eq.s32.totalorder %s23, 1
    %p298 = por %p296, %p297
    %p300 = scmp.ne.s32.totalorder %s283, %s299
    %p301 = scmp.eq.s32.totalorder %s23, 0
    %p302 = por %p300, %p301
    %p303 = scmp.le.s32.totalorder 1, %s17
    %p304 = scmp.lt.s32.totalorder %s17, 3
    %p305 = pnand %p303, %p304
    %p306 = pneg %p305
    // Predicated region
    $region9: #{transformer_encoder_forward.4} parent=5 // pred_check
      _
    $region10: #{transformer_encoder_forward.4} parent=5 // pred_check_branch
      %308 = sbr.rel (%p305) target = $region12
    $region11: #{transformer_encoder_forward.4} parent=5 // pred_region
      %s309 = ssub.s32 %s17, 1
      // Predicated region
      $region13: #{transformer_encoder_forward.4} parent=11 // pred_check
        %p310 = pneg %p106
      $region14: #{transformer_encoder_forward.4} parent=11 // pred_check_branch
        %312 = sbr.rel (%p310) target = $region16
      $region15: #{transformer_encoder_forward.4} parent=11 // pred_region
        _
      $region16: #{transformer_encoder_forward.4} parent=11 // pred_fallthru
        _
      // Predicated region
      $region17: #{transformer_encoder_forward.4} parent=11 // pred_check
        %p313 = pneg %p127
      $region18: #{transformer_encoder_forward.4} parent=11 // pred_check_branch
        %315 = sbr.rel (%p313) target = $region20
      $region19: #{transformer_encoder_forward.4} parent=11 // pred_region
        _
      $region20: #{transformer_encoder_forward.4} parent=11 // pred_fallthru
        _
      // Predicated region
      $region21: #{transformer_encoder_forward.4} parent=11 // pred_check
        %p316 = pneg %p148
      $region22: #{transformer_encoder_forward.4} parent=11 // pred_check_branch
        %318 = sbr.rel (%p316) target = $region24
      $region23: #{transformer_encoder_forward.4} parent=11 // pred_region
        _
      $region24: #{transformer_encoder_forward.4} parent=11 // pred_fallthru
        _
      // Predicated region
      $region25: #{transformer_encoder_forward.4} parent=11 // pred_check
        %p319 = pneg %p169
      $region26: #{transformer_encoder_forward.4} parent=11 // pred_check_branch
        %321 = sbr.rel (%p319) target = $region28
      $region27: #{transformer_encoder_forward.4} parent=11 // pred_region
        _
      $region28: #{transformer_encoder_forward.4} parent=11 // pred_fallthru
        _
      // Predicated region
      $region29: #{transformer_encoder_forward.4} parent=11 // pred_check
        %p322 = pneg %p190
      $region30: #{transformer_encoder_forward.4} parent=11 // pred_check_branch
        %324 = sbr.rel (%p322) target = $region32
      $region31: #{transformer_encoder_forward.4} parent=11 // pred_region
        _
      $region32: #{transformer_encoder_forward.4} parent=11 // pred_fallthru
        _
      // Predicated region
      $region33: #{transformer_encoder_forward.4} parent=11 // pred_check
        %p325 = pneg %p211
      $region34: #{transformer_encoder_forward.4} parent=11 // pred_check_branch
        %327 = sbr.rel (%p325) target = $region36
      $region35: #{transformer_encoder_forward.4} parent=11 // pred_region
        _
      $region36: #{transformer_encoder_forward.4} parent=11 // pred_fallthru
        _
    $region12: #{transformer_encoder_forward.4} parent=5 // pred_fallthru
      _
    %p328 = scmp.lt.s32.totalorder %s17, 2
    // Predicated region
    $region37: #{transformer_encoder_forward.4} parent=5 // pred_check
      %p329 = pneg %p328
    $region38: #{transformer_encoder_forward.4} parent=5 // pred_check_branch
      %331 = sbr.rel (%p329) target = $region40
    $region39: #{transformer_encoder_forward.4} parent=5 // pred_region
      // Predicated region
      $region41: #{transformer_encoder_forward.4} parent=39 // pred_check
        %p332 = pneg %p51
      $region42: #{transformer_encoder_forward.4} parent=39 // pred_check_branch
        %334 = sbr.rel (%p332) target = $region44
      $region43: #{transformer_encoder_forward.4} parent=39 // pred_region
        %s335 = smul.u32 2, %s25
        %p336 = scmp.lt.s32.totalorder %s24, 1
        %s337 = scalar_select %p336, %s24, 1
        %p338 = scmp.lt.s32.totalorder %s335, 1
        %s339 = scalar_select %p338, %s335, 1
        %s340 = smul.addr %s337, 2
        %s341 = sadd.s32 %s339, %s340
        %s342 = smul.addr %s341, 8
        %s343 = scalar_lea.vmem %s0, %s342
        %s344 = smul.u32 2, %s25
      $region44: #{transformer_encoder_forward.4} parent=39 // pred_fallthru
        _
      // Predicated region
      $region45: #{transformer_encoder_forward.4} parent=39 // pred_check
        %p345 = pneg %p79
      $region46: #{transformer_encoder_forward.4} parent=39 // pred_check_branch
        %347 = sbr.rel (%p345) target = $region48
      $region47: #{transformer_encoder_forward.4} parent=39 // pred_region
        %s348 = smul.u32 2, %s25
        %p349 = scmp.lt.s32.totalorder %s24, 1
        %s350 = scalar_select %p349, %s24, 1
        %p351 = scmp.lt.s32.totalorder %s348, 1
        %s352 = scalar_select %p351, %s348, 1
        %s353 = smul.addr %s350, 2
        %s354 = sadd.s32 %s352, %s353
        %s355 = smul.addr %s354, 4
        %s356 = scalar_lea.vmem %s1, %s355
        %s357 = smul.u32 2, %s25
      $region48: #{transformer_encoder_forward.4} parent=39 // pred_fallthru
        _
    $region40: #{transformer_encoder_forward.4} parent=5 // pred_fallthru
      _
    %p358 = scmp.le.s32.totalorder 1, %s17
    %p359 = scmp.lt.s32.totalorder %s17, 3
    %p360 = pnand %p358, %p359
    %p361 = pneg %p360
    // Predicated region
    $region49: #{transformer_encoder_forward.4} parent=5 // pred_check
      _
    $region50: #{transformer_encoder_forward.4} parent=5 // pred_check_branch
      %363 = sbr.rel (%p360) target = $region52
    $region51: #{transformer_encoder_forward.4} parent=5 // pred_region
      %s364 = ssub.s32 %s17, 1
      %s365 = smul.u32 2, %s27
      %p366 = scmp.lt.s32.totalorder %s26, 1
      %s367 = scalar_select %p366, %s26, 1
      %p368 = scmp.lt.s32.totalorder %s365, 1
      %s369 = scalar_select %p368, %s365, 1
      %s370 = smul.addr %s367, 2
      %s371 = sadd.s32 %s369, %s370
      %s372 = smul.addr %s371, 8
      %s373 = scalar_lea.vmem %s0, %s372
      %p374 = pneg %p57
      %p375 = pneg %p54
      %s376 = smul.u32 2, %s27
      %p377 = scmp.lt.s32.totalorder %s26, 1
      %s378 = scalar_select %p377, %s26, 1
      %p379 = scmp.lt.s32.totalorder %s376, 1
      %s380 = scalar_select %p379, %s376, 1
      %s381 = smul.addr %s378, 2
      %s382 = sadd.s32 %s380, %s381
      %s383 = smul.addr %s382, 4
      %s384 = scalar_lea.vmem %s1, %s383
      %p385 = pneg %p85
      %p386 = pneg %p82
      %p387 = pneg %p106
      %p388 = pneg %p103
      %p389 = pneg %p127
      %p390 = pneg %p124
      %p391 = pneg %p148
      %p392 = pneg %p145
      %p393 = pneg %p169
      %p394 = pneg %p166
      %p395 = pneg %p190
      %p396 = pneg %p187
      %p397 = pneg %p211
      %p398 = pneg %p208
      %p399 = pneg %p239
      %p400 = pneg %p236
      %s401 = smul.u32 2, %s27
      %p402 = scmp.lt.s32.totalorder %s26, 1
      %s403 = scalar_select %p402, %s26, 1
      %p404 = scmp.lt.s32.totalorder %s401, 1
      %s405 = scalar_select %p404, %s401, 1
      %s406 = smul.addr %s403, 2
      %s407 = sadd.s32 %s405, %s406
      %s408 = smul.addr %s407, 4
      %s409 = scalar_lea.vmem %s8, %s408
      %p410 = pneg %p267
      %p411 = pneg %p264
      %s412 = smul.u32 2, %s27
      %p413 = scmp.lt.s32.totalorder %s26, 1
      %s414 = scalar_select %p413, %s26, 1
      %p415 = scmp.lt.s32.totalorder %s412, 1
      %s416 = scalar_select %p415, %s412, 1
      %s417 = smul.addr %s414, 2
      %s418 = sadd.s32 %s416, %s417
      %s419 = smul.addr %s418, 4
      %s420 = scalar_lea.vmem %s9, %s419
      %p421 = pneg %p295
      %p422 = pneg %p292
      %s423 = smul.u32 2, %s27
      %p424 = scmp.lt.s32.totalorder %s26, 1
      %s425 = scalar_select %p424, %s26, 1
      %p426 = scmp.lt.s32.totalorder %s423, 1
      %s427 = scalar_select %p426, %s423, 1
      %s428 = smul.addr %s425, 2
      %s429 = sadd.s32 %s427, %s428
      %s430 = smul.addr %s429, 4
      %s431 = scalar_lea.vmem %s10, %s430
      %s432 = smul.u32 2, %s27
      %p433 = scmp.lt.s32.totalorder %s26, 1
      %s434 = scalar_select %p433, %s26, 1
      %p435 = scmp.lt.s32.totalorder %s432, 1
      %s436 = scalar_select %p435, %s432, 1
      %s437 = smul.addr %s434, 2
      %s438 = sadd.s32 %s436, %s437
      %s439 = smul.addr %s438, 8
      %s440 = scalar_lea.vmem %s0, %s439
      %s441 = smul.u32 2, %s27
      %s442 = smul.u32 2, %s27
      %p443 = scmp.lt.s32.totalorder %s26, 1
      %s444 = scalar_select %p443, %s26, 1
      %p445 = scmp.lt.s32.totalorder %s442, 1
      %s446 = scalar_select %p445, %s442, 1
      %s447 = smul.addr %s444, 2
      %s448 = sadd.s32 %s446, %s447
      %s449 = smul.addr %s448, 4
      %s450 = scalar_lea.vmem %s1, %s449
      %s451 = smul.u32 2, %s27
      %s452 = smul.u32 2, %s27
      %p453 = scmp.lt.s32.totalorder %s26, 1
      %s454 = scalar_select %p453, %s26, 1
      %p455 = scmp.lt.s32.totalorder %s452, 1
      %s456 = scalar_select %p455, %s452, 1
      %s457 = smul.addr %s454, 2
      %s458 = sadd.s32 %s456, %s457
      %s459 = smul.addr %s458, 4
      %s460 = scalar_lea.vmem %s8, %s459
      %s461 = smul.u32 2, %s27
      %s462 = smul.u32 2, %s27
      %p463 = scmp.lt.s32.totalorder %s26, 1
      %s464 = scalar_select %p463, %s26, 1
      %p465 = scmp.lt.s32.totalorder %s462, 1
      %s466 = scalar_select %p465, %s462, 1
      %s467 = smul.addr %s464, 2
      %s468 = sadd.s32 %s466, %s467
      %s469 = smul.addr %s468, 4
      %s470 = scalar_lea.vmem %s9, %s469
      %s471 = smul.u32 2, %s27
      %s472 = smul.u32 2, %s27
      %p473 = scmp.lt.s32.totalorder %s26, 1
      %s474 = scalar_select %p473, %s26, 1
      %p475 = scmp.lt.s32.totalorder %s472, 1
      %s476 = scalar_select %p475, %s472, 1
      %s477 = smul.addr %s474, 2
      %s478 = sadd.s32 %s476, %s477
      %s479 = smul.addr %s478, 4
      %s480 = scalar_lea.vmem %s10, %s479
      %s481 = smul.u32 2, %s27
      %v483 = vld [vmem:[%s440] sm:$0xff]
      %v484 = vld [vmem:[%s440 + $0x8] sm:$0xff]
      %v485 = vld [vmem:[%s450] sm:$0xf]
      %v486 = vld [vmem:[%s450 + $0x4] sm:$0xf]
      %v487 = vunpack.c.l.bf16 %v485
      %v488 = vunpack.c.l.bf16 %v486
      %v489 = vld [vmem:[%s2] sm:$0x1]
      %v490 = vld [vmem:[%s3] sm:$0x1]
      %vm491 = vcmask 261120
      %v492 = vsel %vm491, %v483, 0.0
      %493 = vadd.xlane.f32.xlu0 %v492
      %v494 = vpop.xlane.xlu0 %493
      %v495 = vsel %vm491, %v484, 0.0
      %496 = vadd.xlane.f32.xlu0 %v495
      %v497 = vpop.xlane.xlu0 %496
      %v498 = vrcp.pop 32.0
      %v499 = vmul.f32 %v494, %v498
      %v500 = vmul.f32 %v497, %v498
      %v501 = vsub.f32 %v483, %v499
      %v502 = vsub.f32 %v484, %v500
      %v503 = vmul.f32 %v501, %v501
      %v504 = vmul.f32 %v502, %v502
      %v505 = vsel %vm491, %v503, 0.0
      %506 = vadd.xlane.f32.xlu0 %v505
      %v507 = vpop.xlane.xlu0 %506
      %v508 = vsel %vm491, %v504, 0.0
      %509 = vadd.xlane.f32.xlu0 %v508
      %v510 = vpop.xlane.xlu0 %509
      %v511 = vmul.f32 %v507, %v498
      %v512 = vmul.f32 %v510, %v498
      %v513 = vadd.f32 %v511, 1e-05
      %v514 = vadd.f32 %v512, 1e-05
      %v515 = vrsqrt.pop %v513
      %v516 = vrsqrt.pop %v514
      %v517 = vmul.f32 %v501, %v515
      %v518 = vmul.f32 %v502, %v516
      %v520 = vlaneseq
      %v521 = vshrl.u32 %v520, 7
      %v522 = vsub.s32 0, %v521
      %v523 = vrot.slane %v489, %v522
      %v525 = vmul.f32 %v517, %v523
      %v526 = vmul.f32 %v518, %v523
      %v528 = vlaneseq
      %v529 = vshrl.u32 %v528, 7
      %v530 = vsub.s32 0, %v529
      %v531 = vrot.slane %v490, %v530
      %v533 = vadd.f32 %v525, %v531
      %v534 = vadd.f32 %v526, %v531
      %v535 = vadd.f32 %v533, %v487
      %v536 = vadd.f32 %v534, %v488
      %v537 = vpack.c.bf16 %v536, %v535
      %v538 = vld [vmem:[%s4] sm:$0xf]
      %v539 = vld [vmem:[%s4 + $0x4] sm:$0xf]
      %v540 = vld [vmem:[%s4 + $0x8] sm:$0xf]
      %v541 = vld [vmem:[%s4 + $0xc] sm:$0xf]
      %v542 = vld [vmem:[%s5] sm:$0x1]
      %v544 = vlaneseq
      %v545 = vshrl.u32 %v544, 7
      %v546 = vsub.s32 0, %v545
      %v547 = vrot.slane %v542, %v546
      %v553 = vunpack.c.l.b16 %v538
      %v554 = vunpack.c.l.b16 %v539
      %v555 = vunpack.c.l.b16 %v540
      %v556 = vunpack.c.l.b16 %v541
      %v557 = vpack.c.b16 %v554, %v553
      %v558 = vpack.c.b16 %v556, %v555
      %v562 = vsel %vm491, %v537, 0
      %564 = vmatprep.subr.bf16.mxu0 0
      %565 = vmatpush1.bf16.msra.mxu0 0
      %566 = vmatprep.subr.bf16.mxu0 0
      %567 = vmatpush1.bf16.msra.mxu0 0
      %568 = vmatprep.subr.bf16.mxu0 0
      %569 = vmatpush1.bf16.msra.mxu0 0
      %570 = vmatprep.subr.bf16.mxu0 0
      %571 = vmatpush1.bf16.msra.mxu0 0
      %572 = vmatprep.subr.bf16.mxu0 0
      %573 = vmatpush1.bf16.msra.mxu0 0
      %574 = vmatprep.subr.bf16.mxu0 0
      %575 = vmatpush1.bf16.msra.mxu0 0
      %576 = vmatprep.subr.bf16.mxu0 0
      %577 = vmatpush1.bf16.msra.mxu0 %v558
      %578 = vmatprep.subr.bf16.mxu0 0
      %579 = vmatpush1.bf16.msra.mxu0 %v557
      %580 = vmatprep.subr.bf16.mxu0 0
      %581 = vmatpush2.bf16.msra.mxu0 0
      %582 = vmatprep.subr.bf16.mxu0 0
      %583 = vmatpush2.bf16.msra.mxu0 0
      %584 = vmatprep.subr.bf16.mxu0 0
      %585 = vmatpush2.bf16.msra.mxu0 0
      %586 = vmatprep.subr.bf16.mxu0 0
      %587 = vmatpush2.bf16.msra.mxu0 0
      %588 = vmatprep.subr.bf16.mxu0 0
      %589 = vmatpush2.bf16.msra.mxu0 0
      %590 = vmatprep.subr.bf16.mxu0 0
      %591 = vmatpush2.bf16.msra.mxu0 0
      %592 = vmatprep.subr.bf16.mxu0 0
      %593 = vmatpush2.bf16.msra.mxu0 0
      %594 = vmatprep.subr.bf16.mxu0 0
      %595 = vmatpush2.bf16.msra.mxu0 0
      %596 = vmatprep.mubr.bf16.mxu0 0
      %597 = vmatmul.mubr.bf16.gmra.mxu0 %v562
      %v598 = vpop.f32.mrf.mxu0
      %v599 = vadd.f32 %v547, %v598
      %v600 = vpop.f32.mrf.mxu0
      %v601 = vpop.f32.mrf.mxu0
      %v602 = vadd.f32 %v547, %v601
      %v603 = vpop.f32.mrf.mxu0
      %604 = vdwg.mxu0
      %v605 = vpack.c.bf16 %v534, %v533
      %v606 = vld [vmem:[%s6] sm:$0xf]
      %v607 = vld [vmem:[%s6 + $0x4] sm:$0xf]
      %v608 = vld [vmem:[%s6 + $0x8] sm:$0xf]
      %v609 = vld [vmem:[%s6 + $0xc] sm:$0xf]
      %v610 = vld [vmem:[%s7] sm:$0x1]
      %v612 = vlaneseq
      %v613 = vshrl.u32 %v612, 7
      %v614 = vsub.s32 0, %v613
      %v615 = vrot.slane %v610, %v614
      %v621 = vunpack.c.l.b16 %v606
      %v622 = vunpack.c.l.b16 %v607
      %v623 = vunpack.c.l.b16 %v608
      %v624 = vunpack.c.l.b16 %v609
      %v625 = vpack.c.b16 %v622, %v621
      %v626 = vpack.c.b16 %v624, %v623
      %v630 = vsel %vm491, %v605, 0
      %632 = vmatprep.subr.bf16.mxu0 0
      %633 = vmatpush1.bf16.msra.mxu0 0
      %634 = vmatprep.subr.bf16.mxu0 0
      %635 = vmatpush1.bf16.msra.mxu0 0
      %636 = vmatprep.subr.bf16.mxu0 0
      %637 = vmatpush1.bf16.msra.mxu0 0
      %638 = vmatprep.subr.bf16.mxu0 0
      %639 = vmatpush1.bf16.msra.mxu0 0
      %640 = vmatprep.subr.bf16.mxu0 0
      %641 = vmatpush1.bf16.msra.mxu0 0
      %642 = vmatprep.subr.bf16.mxu0 0
      %643 = vmatpush1.bf16.msra.mxu0 0
      %644 = vmatprep.subr.bf16.mxu0 0
      %645 = vmatpush1.bf16.msra.mxu0 %v626
      %646 = vmatprep.subr.bf16.mxu0 0
      %647 = vmatpush1.bf16.msra.mxu0 %v625
      %648 = vmatprep.subr.bf16.mxu0 0
      %649 = vmatpush2.bf16.msra.mxu0 0
      %650 = vmatprep.subr.bf16.mxu0 0
      %651 = vmatpush2.bf16.msra.mxu0 0
      %652 = vmatprep.subr.bf16.mxu0 0
      %653 = vmatpush2.bf16.msra.mxu0 0
      %654 = vmatprep.subr.bf16.mxu0 0
      %655 = vmatpush2.bf16.msra.mxu0 0
      %656 = vmatprep.subr.bf16.mxu0 0
      %657 = vmatpush2.bf16.msra.mxu0 0
      %658 = vmatprep.subr.bf16.mxu0 0
      %659 = vmatpush2.bf16.msra.mxu0 0
      %660 = vmatprep.subr.bf16.mxu0 0
      %661 = vmatpush2.bf16.msra.mxu0 0
      %662 = vmatprep.subr.bf16.mxu0 0
      %663 = vmatpush2.bf16.msra.mxu0 0
      %664 = vmatprep.mubr.bf16.mxu0 0
      %665 = vmatmul.mubr.bf16.gmra.mxu0 %v630
      %v666 = vpop.f32.mrf.mxu0
      %v667 = vadd.f32 %v615, %v666
      %v668 = vpop.f32.mrf.mxu0
      %v669 = vpop.f32.mrf.mxu0
      %v670 = vadd.f32 %v615, %v669
      %v671 = vpop.f32.mrf.mxu0
      %672 = vdwg.mxu0
      %v673 = vpack.c.bf16 %v602, %v599
      %v675 = vunpack.c.l.b16 %v673
      %v676 = vunpack.c.h.b16 %v673
      %v677 = vpack.c.b16 %v675, %v675
      %v678 = vpack.c.b16 %v676, %v676
      %vm681 = vcmask 257024
      %682 = vst.msk [vmem:[%s460] sm:$0xf] %vm681, %v677
      %683 = vst.msk [vmem:[%s460 + $0x4] sm:$0xf] %vm681, %v678
      %684 = vrot.lane.b32.xlu0 %v677, 96
      %v685 = vpop.permute.xlu0 %684
      %686 = vrot.lane.b32.xlu0 %v678, 96
      %v687 = vpop.permute.xlu0 %686
      %690 = vst.msk [vmem:[%s470] sm:$0xf] %vm681, %v685
      %691 = vst.msk [vmem:[%s470 + $0x4] sm:$0xf] %vm681, %v687
      %v692 = vpack.c.bf16 %v670, %v667
      %v694 = vunpack.c.l.b16 %v692
      %v695 = vunpack.c.h.b16 %v692
      %v696 = vpack.c.b16 %v694, %v694
      %v697 = vpack.c.b16 %v695, %v695
      %700 = vst.msk [vmem:[%s480] sm:$0xf] %vm681, %v696
      %701 = vst.msk [vmem:[%s480 + $0x4] sm:$0xf] %vm681, %v697
      %s702 = smul.u32 2, %s27
      %p703 = scmp.lt.s32.totalorder %s26, 1
      %s704 = scalar_select %p703, %s26, 1
      %p705 = scmp.lt.s32.totalorder %s702, 1
      %s706 = scalar_select %p705, %s702, 1
      %s707 = smul.addr %s704, 2
      %s708 = sadd.s32 %s706, %s707
      %s709 = smul.addr %s708, 4
      %s710 = scalar_lea.vmem %s8, %s709
      %s711 = smul.u32 2, %s27
      %p712 = scmp.lt.s32.totalorder %s26, 1
      %s713 = scalar_select %p712, %s26, 1
      %p714 = scmp.lt.s32.totalorder %s711, 1
      %s715 = scalar_select %p714, %s711, 1
      %s716 = smul.addr %s713, 2
      %s717 = sadd.s32 %s715, %s716
      %s718 = smul.addr %s717, 4
      %s719 = scalar_lea.vmem %s9, %s718
      %s720 = smul.u32 2, %s27
      %p721 = scmp.lt.s32.totalorder %s26, 1
      %s722 = scalar_select %p721, %s26, 1
      %p723 = scmp.lt.s32.totalorder %s720, 1
      %s724 = scalar_select %p723, %s720, 1
      %s725 = smul.addr %s722, 2
      %s726 = sadd.s32 %s724, %s725
      %s727 = smul.addr %s726, 4
      %s728 = scalar_lea.vmem %s10, %s727
      // Predicated region
      $region53: #{transformer_encoder_forward.4} parent=51 // pred_check
        %p729 = pneg %p236
      $region54: #{transformer_encoder_forward.4} parent=51 // pred_check_branch
        %731 = sbr.rel (%p729) target = $region56
      $region55: #{transformer_encoder_forward.4} parent=51 // pred_region
        %s732 = smul.u32 2, %s27
      $region56: #{transformer_encoder_forward.4} parent=51 // pred_fallthru
        _
      // Predicated region
      $region57: #{transformer_encoder_forward.4} parent=51 // pred_check
        %p733 = pneg %p264
      $region58: #{transformer_encoder_forward.4} parent=51 // pred_check_branch
        %735 = sbr.rel (%p733) target = $region60
      $region59: #{transformer_encoder_forward.4} parent=51 // pred_region
        %s736 = smul.u32 2, %s27
      $region60: #{transformer_encoder_forward.4} parent=51 // pred_fallthru
        _
      // Predicated region
      $region61: #{transformer_encoder_forward.4} parent=51 // pred_check
        %p737 = pneg %p292
      $region62: #{transformer_encoder_forward.4} parent=51 // pred_check_branch
        %739 = sbr.rel (%p737) target = $region64
      $region63: #{transformer_encoder_forward.4} parent=51 // pred_region
        %s740 = smul.u32 2, %s27
      $region64: #{transformer_encoder_forward.4} parent=51 // pred_fallthru
        _
    $region52: #{transformer_encoder_forward.4} parent=5 // pred_fallthru
      _
    %p741 = scmp.le.s32.totalorder 2, %s17
    // Predicated region
    $region65: #{transformer_encoder_forward.4} parent=5 // pred_check
      %p742 = pneg %p741
    $region66: #{transformer_encoder_forward.4} parent=5 // pred_check_branch
      %744 = sbr.rel (%p742) target = $region68
    $region67: #{transformer_encoder_forward.4} parent=5 // pred_region
      %s745 = ssub.s32 %s17, 2
      // Predicated region
      $region69: #{transformer_encoder_forward.4} parent=67 // pred_check
        %p746 = pneg %p242
      $region70: #{transformer_encoder_forward.4} parent=67 // pred_check_branch
        %748 = sbr.rel (%p746) target = $region72
      $region71: #{transformer_encoder_forward.4} parent=67 // pred_region
        %s749 = smul.u32 2, %s29
        %p750 = scmp.lt.s32.totalorder %s28, 1
        %s751 = scalar_select %p750, %s28, 1
        %p752 = scmp.lt.s32.totalorder %s749, 1
        %s753 = scalar_select %p752, %s749, 1
        %s754 = smul.addr %s751, 2
        %s755 = sadd.s32 %s753, %s754
        %s756 = smul.addr %s755, 4
        %s757 = scalar_lea.vmem %s8, %s756
      $region72: #{transformer_encoder_forward.4} parent=67 // pred_fallthru
        _
      // Predicated region
      $region73: #{transformer_encoder_forward.4} parent=67 // pred_check
        %p758 = pneg %p270
      $region74: #{transformer_encoder_forward.4} parent=67 // pred_check_branch
        %760 = sbr.rel (%p758) target = $region76
      $region75: #{transformer_encoder_forward.4} parent=67 // pred_region
        %s761 = smul.u32 2, %s29
        %p762 = scmp.lt.s32.totalorder %s28, 1
        %s763 = scalar_select %p762, %s28, 1
        %p764 = scmp.lt.s32.totalorder %s761, 1
        %s765 = scalar_select %p764, %s761, 1
        %s766 = smul.addr %s763, 2
        %s767 = sadd.s32 %s765, %s766
        %s768 = smul.addr %s767, 4
        %s769 = scalar_lea.vmem %s9, %s768
      $region76: #{transformer_encoder_forward.4} parent=67 // pred_fallthru
        _
      // Predicated region
      $region77: #{transformer_encoder_forward.4} parent=67 // pred_check
        %p770 = pneg %p298
      $region78: #{transformer_encoder_forward.4} parent=67 // pred_check_branch
        %772 = sbr.rel (%p770) target = $region80
      $region79: #{transformer_encoder_forward.4} parent=67 // pred_region
        %s773 = smul.u32 2, %s29
        %p774 = scmp.lt.s32.totalorder %s28, 1
        %s775 = scalar_select %p774, %s28, 1
        %p776 = scmp.lt.s32.totalorder %s773, 1
        %s777 = scalar_select %p776, %s773, 1
        %s778 = smul.addr %s775, 2
        %s779 = sadd.s32 %s777, %s778
        %s780 = smul.addr %s779, 4
        %s781 = scalar_lea.vmem %s10, %s780
      $region80: #{transformer_encoder_forward.4} parent=67 // pred_fallthru
        _
    $region68: #{transformer_encoder_forward.4} parent=5 // pred_fallthru
      _
  $region6: #{transformer_encoder_forward.4} parent=0 // loop_footer
    %s21 = sadd.s32 1, %s17
  $region7: #{transformer_encoder_forward.4} parent=0 // loop_footer_branch
    %16 = sbr.rel target = $region3
  $region8: #{transformer_encoder_forward.4} parent=0 // loop_exit
    _

// kernel: transformer_encoder_forward.5
$region0: #{transformer_encoder_forward.5}
  #allocation0 [shape = 'u32[]', space=smem, size = 0x4, offset = 0x4, fixed_abs, tag = 'smem constant byte address 0x4 - core index']
  #allocation1 [shape = 'u32[144,128]{1,0:T(1,128)}', space=vmem, size = 0x12000, scoped, tag = 'internal scratch']
  %s0 = inlined_call_operand.vmem [shape: f32[2,16,32], index: 0, kind: input, shape index: {}]
  %s1 = inlined_call_operand.vmem [shape: bf16[2,16,32], index: 1, kind: input, shape index: {}]
  %s2 = inlined_call_operand.vmem [shape: bf16[2,16,32], index: 2, kind: input, shape index: {}]
  %s3 = inlined_call_operand.vmem [shape: bf16[2,16,32], index: 3, kind: input, shape index: {}]
  %s4 = inlined_call_operand.vmem [shape: bf16[32,32], index: 4, kind: input, shape index: {}]
  %s5 = inlined_call_operand.vmem [shape: f32[1,32], index: 5, kind: input, shape index: {}]
  %s6 = inlined_call_operand.vmem [shape: f32[1,32], index: 6, kind: input, shape index: {}]
  %s7 = inlined_call_operand.vmem [shape: f32[1,32], index: 7, kind: input, shape index: {}]
  %s8 = inlined_call_operand.vmem [shape: bf16[32,64], index: 8, kind: input, shape index: {}]
  %s9 = inlined_call_operand.vmem [shape: f32[1,64], index: 9, kind: input, shape index: {}]
  %s10 = inlined_call_operand.vmem [shape: bf16[64,32], index: 10, kind: input, shape index: {}]
  %s11 = inlined_call_operand.vmem [shape: f32[1,32], index: 11, kind: input, shape index: {}]
  %s12 = inlined_call_operand.vmem [shape: f32[2,16,32], index: 12, kind: output, shape index: {}]
  %s13 = sld [smem:[#allocation0]]
  $region81: #{transformer_encoder_forward.5} parent=0
    _
  %s15 = ssub.s32 1, %s13
  %s16 = scalar_select 0, %s15, %s13
  loop: start=0, step=1, limit=4
  $region2: #{transformer_encoder_forward.5} parent=0 // loop_pre_header
    _
  $region3: #{transformer_encoder_forward.5} parent=0 // loop_header
    %s18 = sphi 0, %s22
    %p19 = scmp.ge.s32.totalorder %s18, 4
    %s25 = sphi 0, %s37
    %s26 = sphi 0, %s33
    %s27 = sphi 0, %s25
    %s28 = sphi 0, %s26
    %s29 = sphi 0, %s27
    %s30 = sphi 0, %s28
    %s42 = sphi 0, %s44
    %s45 = sphi 0, %s42
    %s46 = sphi 0, %s45
    %s62 = sphi 0, %s46
    %s70 = sphi 0, %s72
    %s73 = sphi 0, %s70
    %s74 = sphi 0, %s73
    %s90 = sphi 0, %s74
    %s96 = sphi 0, %s98
    %s99 = sphi 0, %s96
    %s100 = sphi 0, %s99
    %s116 = sphi 0, %s100
    %s122 = sphi 0, %s124
    %s125 = sphi 0, %s122
    %s126 = sphi 0, %s125
    %s142 = sphi 0, %s126
    %s146 = sphi 0, %s146
    %s148 = sphi 0, %s146
    %s149 = sphi 0, %s148
    %s163 = sphi 0, %s149
    %s167 = sphi 0, %s167
    %s169 = sphi 0, %s167
    %s170 = sphi 0, %s169
    %s184 = sphi 0, %s170
    %s188 = sphi 0, %s188
    %s190 = sphi 0, %s188
    %s191 = sphi 0, %s190
    %s205 = sphi 0, %s191
    %s209 = sphi 0, %s209
    %s211 = sphi 0, %s209
    %s212 = sphi 0, %s211
    %s226 = sphi 0, %s212
    %s230 = sphi 0, %s230
    %s232 = sphi 0, %s230
    %s233 = sphi 0, %s232
    %s247 = sphi 0, %s233
    %s251 = sphi 0, %s251
    %s253 = sphi 0, %s251
    %s254 = sphi 0, %s253
    %s268 = sphi 0, %s254
    %s272 = sphi 0, %s272
    %s274 = sphi 0, %s272
    %s275 = sphi 0, %s274
    %s289 = sphi 0, %s275
    %s293 = sphi 0, %s293
    %s295 = sphi 0, %s293
    %s296 = sphi 0, %s295
    %s310 = sphi 0, %s296
    %s318 = sphi 0, %s320
    %s321 = sphi 0, %s318
    %s322 = sphi 0, %s321
    %s338 = sphi 0, %s322
  $region4: #{transformer_encoder_forward.5} parent=0 // loop_header_branch
    %21 = sbr.rel (%p19) target = $region8
  $region5: #{transformer_encoder_forward.5} parent=0 // loop_body
    %s23 = ssub.s32 %s18, 1
    %s24 = ssub.s32 %s18, 2
    %s31 = sadd.s32 1, %s26
    %p32 = scmp.ge.s32.totalorder %s31, 1
    %s33 = scalar_select %p32, 0, %s31
    %s34 = sadd.s32 1, %s25
    %s35 = scalar_select %p32, %s34, %s25
    %p36 = scmp.ge.s32.totalorder %s35, 2
    %s37 = scalar_select %p36, 0, %s35
    %s38 = ssub.s32 %s25, %s37
    %s39 = ssub.s32 %s26, %s33
    %s40 = sor.u32 %s38, %s39
    %p41 = scmp.eq.s32.totalorder %s40, 0
    %s43 = sadd.s32 %s42, 1
    %s44 = scalar_select %p41, %s42, %s43
    %p47 = pneg %p41
    %p48 = scmp.eq.s32.totalorder %s18, 1
    %p49 = por %p47, %p48
    %p50 = scmp.ne.s32.totalorder %s42, %s45
    %p51 = scmp.eq.s32.totalorder %s18, 0
    %p52 = por %p50, %p51
    %p53 = scmp.ne.s32.totalorder %s42, %s45
    %p54 = scmp.eq.s32.totalorder %s23, 1
    %p55 = por %p53, %p54
    %p56 = scmp.ne.s32.totalorder %s45, %s46
    %p57 = scmp.eq.s32.totalorder %s23, 0
    %p58 = por %p56, %p57
    %p59 = scmp.ne.s32.totalorder %s45, %s46
    %p60 = scmp.eq.s32.totalorder %s24, 1
    %p61 = por %p59, %p60
    %p63 = scmp.ne.s32.totalorder %s46, %s62
    %p64 = scmp.eq.s32.totalorder %s24, 0
    %p65 = por %p63, %p64
    %s66 = ssub.s32 %s25, %s37
    %s67 = ssub.s32 %s26, %s33
    %s68 = sor.u32 %s66, %s67
    %p69 = scmp.eq.s32.totalorder %s68, 0
    %s71 = sadd.s32 %s70, 1
    %s72 = scalar_select %p69, %s70, %s71
    %p75 = pneg %p69
    %p76 = scmp.eq.s32.totalorder %s18, 1
    %p77 = por %p75, %p76
    %p78 = scmp.ne.s32.totalorder %s70, %s73
    %p79 = scmp.eq.s32.totalorder %s18, 0
    %p80 = por %p78, %p79
    %p81 = scmp.ne.s32.totalorder %s70, %s73
    %p82 = scmp.eq.s32.totalorder %s23, 1
    %p83 = por %p81, %p82
    %p84 = scmp.ne.s32.totalorder %s73, %s74
    %p85 = scmp.eq.s32.totalorder %s23, 0
    %p86 = por %p84, %p85
    %p87 = scmp.ne.s32.totalorder %s73, %s74
    %p88 = scmp.eq.s32.totalorder %s24, 1
    %p89 = por %p87, %p88
    %p91 = scmp.ne.s32.totalorder %s74, %s90
    %p92 = scmp.eq.s32.totalorder %s24, 0
    %p93 = por %p91, %p92
    %s94 = ssub.s32 %s25, %s37
    %p95 = scmp.eq.s32.totalorder %s94, 0
    %s97 = sadd.s32 %s96, 1
    %s98 = scalar_select %p95, %s96, %s97
    %p101 = pneg %p95
    %p102 = scmp.eq.s32.totalorder %s18, 1
    %p103 = por %p101, %p102
    %p104 = scmp.ne.s32.totalorder %s96, %s99
    %p105 = scmp.eq.s32.totalorder %s18, 0
    %p106 = por %p104, %p105
    %p107 = scmp.ne.s32.totalorder %s96, %s99
    %p108 = scmp.eq.s32.totalorder %s23, 1
    %p109 = por %p107, %p108
    %p110 = scmp.ne.s32.totalorder %s99, %s100
    %p111 = scmp.eq.s32.totalorder %s23, 0
    %p112 = por %p110, %p111
    %p113 = scmp.ne.s32.totalorder %s99, %s100
    %p114 = scmp.eq.s32.totalorder %s24, 1
    %p115 = por %p113, %p114
    %p117 = scmp.ne.s32.totalorder %s100, %s116
    %p118 = scmp.eq.s32.totalorder %s24, 0
    %p119 = por %p117, %p118
    %s120 = ssub.s32 %s25, %s37
    %p121 = scmp.eq.s32.totalorder %s120, 0
    %s123 = sadd.s32 %s122, 1
    %s124 = scalar_select %p121, %s122, %s123
    %p127 = pneg %p121
    %p128 = scmp.eq.s32.totalorder %s18, 1
    %p129 = por %p127, %p128
    %p130 = scmp.ne.s32.totalorder %s122, %s125
    %p131 = scmp.eq.s32.totalorder %s18, 0
    %p132 = por %p130, %p131
    %p133 = scmp.ne.s32.totalorder %s122, %s125
    %p134 = scmp.eq.s32.totalorder %s23, 1
    %p135 = por %p133, %p134
    %p136 = scmp.ne.s32.totalorder %s125, %s126
    %p137 = scmp.eq.s32.totalorder %s23, 0
    %p138 = por %p136, %p137
    %p139 = scmp.ne.s32.totalorder %s125, %s126
    %p140 = scmp.eq.s32.totalorder %s24, 1
    %p141 = por %p139, %p140
    %p143 = scmp.ne.s32.totalorder %s126, %s142
    %p144 = scmp.eq.s32.totalorder %s24, 0
    %p145 = por %p143, %p144
    %s147 = sadd.s32 %s146, 1
    %p150 = scmp.eq.s32.totalorder %s18, 1
    %p151 = scmp.ne.s32.totalorder %s146, %s148
    %p152 = scmp.eq.s32.totalorder %s18, 0
    %p153 = por %p151, %p152
    %p154 = scmp.ne.s32.totalorder %s146, %s148
    %p155 = scmp.eq.s32.totalorder %s23, 1
    %p156 = por %p154, %p155
    %p157 = scmp.ne.s32.totalorder %s148, %s149
    %p158 = scmp.eq.s32.totalorder %s23, 0
    %p159 = por %p157, %p158
    %p160 = scmp.ne.s32.totalorder %s148, %s149
    %p161 = scmp.eq.s32.totalorder %s24, 1
    %p162 = por %p160, %p161
    %p164 = scmp.ne.s32.totalorder %s149, %s163
    %p165 = scmp.eq.s32.totalorder %s24, 0
    %p166 = por %p164, %p165
    %s168 = sadd.s32 %s167, 1
    %p171 = scmp.eq.s32.totalorder %s18, 1
    %p172 = scmp.ne.s32.totalorder %s167, %s169
    %p173 = scmp.eq.s32.totalorder %s18, 0
    %p174 = por %p172, %p173
    %p175 = scmp.ne.s32.totalorder %s167, %s169
    %p176 = scmp.eq.s32.totalorder %s23, 1
    %p177 = por %p175, %p176
    %p178 = scmp.ne.s32.totalorder %s169, %s170
    %p179 = scmp.eq.s32.totalorder %s23, 0
    %p180 = por %p178, %p179
    %p181 = scmp.ne.s32.totalorder %s169, %s170
    %p182 = scmp.eq.s32.totalorder %s24, 1
    %p183 = por %p181, %p182
    %p185 = scmp.ne.s32.totalorder %s170, %s184
    %p186 = scmp.eq.s32.totalorder %s24, 0
    %p187 = por %p185, %p186
    %s189 = sadd.s32 %s188, 1
    %p192 = scmp.eq.s32.totalorder %s18, 1
    %p193 = scmp.ne.s32.totalorder %s188, %s190
    %p194 = scmp.eq.s32.totalorder %s18, 0
    %p195 = por %p193, %p194
    %p196 = scmp.ne.s32.totalorder %s188, %s190
    %p197 = scmp.eq.s32.totalorder %s23, 1
    %p198 = por %p196, %p197
    %p199 = scmp.ne.s32.totalorder %s190, %s191
    %p200 = scmp.eq.s32.totalorder %s23, 0
    %p201 = por %p199, %p200
    %p202 = scmp.ne.s32.totalorder %s190, %s191
    %p203 = scmp.eq.s32.totalorder %s24, 1
    %p204 = por %p202, %p203
    %p206 = scmp.ne.s32.totalorder %s191, %s205
    %p207 = scmp.eq.s32.totalorder %s24, 0
    %p208 = por %p206, %p207
    %s210 = sadd.s32 %s209, 1
    %p213 = scmp.eq.s32.totalorder %s18, 1
    %p214 = scmp.ne.s32.totalorder %s209, %s211
    %p215 = scmp.eq.s32.totalorder %s18, 0
    %p216 = por %p214, %p215
    %p217 = scmp.ne.s32.totalorder %s209, %s211
    %p218 = scmp.eq.s32.totalorder %s23, 1
    %p219 = por %p217, %p218
    %p220 = scmp.ne.s32.totalorder %s211, %s212
    %p221 = scmp.eq.s32.totalorder %s23, 0
    %p222 = por %p220, %p221
    %p223 = scmp.ne.s32.totalorder %s211, %s212
    %p224 = scmp.eq.s32.totalorder %s24, 1
    %p225 = por %p223, %p224
    %p227 = scmp.ne.s32.totalorder %s212, %s226
    %p228 = scmp.eq.s32.totalorder %s24, 0
    %p229 = por %p227, %p228
    %s231 = sadd.s32 %s230, 1
    %p234 = scmp.eq.s32.totalorder %s18, 1
    %p235 = scmp.ne.s32.totalorder %s230, %s232
    %p236 = scmp.eq.s32.totalorder %s18, 0
    %p237 = por %p235, %p236
    %p238 = scmp.ne.s32.totalorder %s230, %s232
    %p239 = scmp.eq.s32.totalorder %s23, 1
    %p240 = por %p238, %p239
    %p241 = scmp.ne.s32.totalorder %s232, %s233
    %p242 = scmp.eq.s32.totalorder %s23, 0
    %p243 = por %p241, %p242
    %p244 = scmp.ne.s32.totalorder %s232, %s233
    %p245 = scmp.eq.s32.totalorder %s24, 1
    %p246 = por %p244, %p245
    %p248 = scmp.ne.s32.totalorder %s233, %s247
    %p249 = scmp.eq.s32.totalorder %s24, 0
    %p250 = por %p248, %p249
    %s252 = sadd.s32 %s251, 1
    %p255 = scmp.eq.s32.totalorder %s18, 1
    %p256 = scmp.ne.s32.totalorder %s251, %s253
    %p257 = scmp.eq.s32.totalorder %s18, 0
    %p258 = por %p256, %p257
    %p259 = scmp.ne.s32.totalorder %s251, %s253
    %p260 = scmp.eq.s32.totalorder %s23, 1
    %p261 = por %p259, %p260
    %p262 = scmp.ne.s32.totalorder %s253, %s254
    %p263 = scmp.eq.s32.totalorder %s23, 0
    %p264 = por %p262, %p263
    %p265 = scmp.ne.s32.totalorder %s253, %s254
    %p266 = scmp.eq.s32.totalorder %s24, 1
    %p267 = por %p265, %p266
    %p269 = scmp.ne.s32.totalorder %s254, %s268
    %p270 = scmp.eq.s32.totalorder %s24, 0
    %p271 = por %p269, %p270
    %s273 = sadd.s32 %s272, 1
    %p276 = scmp.eq.s32.totalorder %s18, 1
    %p277 = scmp.ne.s32.totalorder %s272, %s274
    %p278 = scmp.eq.s32.totalorder %s18, 0
    %p279 = por %p277, %p278
    %p280 = scmp.ne.s32.totalorder %s272, %s274
    %p281 = scmp.eq.s32.totalorder %s23, 1
    %p282 = por %p280, %p281
    %p283 = scmp.ne.s32.totalorder %s274, %s275
    %p284 = scmp.eq.s32.totalorder %s23, 0
    %p285 = por %p283, %p284
    %p286 = scmp.ne.s32.totalorder %s274, %s275
    %p287 = scmp.eq.s32.totalorder %s24, 1
    %p288 = por %p286, %p287
    %p290 = scmp.ne.s32.totalorder %s275, %s289
    %p291 = scmp.eq.s32.totalorder %s24, 0
    %p292 = por %p290, %p291
    %s294 = sadd.s32 %s293, 1
    %p297 = scmp.eq.s32.totalorder %s18, 1
    %p298 = scmp.ne.s32.totalorder %s293, %s295
    %p299 = scmp.eq.s32.totalorder %s18, 0
    %p300 = por %p298, %p299
    %p301 = scmp.ne.s32.totalorder %s293, %s295
    %p302 = scmp.eq.s32.totalorder %s23, 1
    %p303 = por %p301, %p302
    %p304 = scmp.ne.s32.totalorder %s295, %s296
    %p305 = scmp.eq.s32.totalorder %s23, 0
    %p306 = por %p304, %p305
    %p307 = scmp.ne.s32.totalorder %s295, %s296
    %p308 = scmp.eq.s32.totalorder %s24, 1
    %p309 = por %p307, %p308
    %p311 = scmp.ne.s32.totalorder %s296, %s310
    %p312 = scmp.eq.s32.totalorder %s24, 0
    %p313 = por %p311, %p312
    %s314 = ssub.s32 %s25, %s37
    %s315 = ssub.s32 %s26, %s33
    %s316 = sor.u32 %s314, %s315
    %p317 = scmp.eq.s32.totalorder %s316, 0
    %s319 = sadd.s32 %s318, 1
    %s320 = scalar_select %p317, %s318, %s319
    %p323 = pneg %p317
    %p324 = scmp.eq.s32.totalorder %s18, 1
    %p325 = por %p323, %p324
    %p326 = scmp.ne.s32.totalorder %s318, %s321
    %p327 = scmp.eq.s32.totalorder %s18, 0
    %p328 = por %p326, %p327
    %p329 = scmp.ne.s32.totalorder %s318, %s321
    %p330 = scmp.eq.s32.totalorder %s23, 1
    %p331 = por %p329, %p330
    %p332 = scmp.ne.s32.totalorder %s321, %s322
    %p333 = scmp.eq.s32.totalorder %s23, 0
    %p334 = por %p332, %p333
    %p335 = scmp.ne.s32.totalorder %s321, %s322
    %p336 = scmp.eq.s32.totalorder %s24, 1
    %p337 = por %p335, %p336
    %p339 = scmp.ne.s32.totalorder %s322, %s338
    %p340 = scmp.eq.s32.totalorder %s24, 0
    %p341 = por %p339, %p340
    %p342 = scmp.le.s32.totalorder 1, %s18
    %p343 = scmp.lt.s32.totalorder %s18, 3
    %p344 = pnand %p342, %p343
    %p345 = pneg %p344
    // Predicated region
    $region9: #{transformer_encoder_forward.5} parent=5 // pred_check
      _
    $region10: #{transformer_encoder_forward.5} parent=5 // pred_check_branch
      %347 = sbr.rel (%p344) target = $region12
    $region11: #{transformer_encoder_forward.5} parent=5 // pred_region
      %s348 = ssub.s32 %s18, 1
      // Predicated region
      $region13: #{transformer_encoder_forward.5} parent=11 // pred_check
        %p349 = pneg %p112
      $region14: #{transformer_encoder_forward.5} parent=11 // pred_check_branch
        %351 = sbr.rel (%p349) target = $region16
      $region15: #{transformer_encoder_forward.5} parent=11 // pred_region
        %p352 = scmp.lt.s32.totalorder %s27, 1
        %s353 = scalar_select %p352, %s27, 1
        %s354 = smul.addr %s353, 2
        %s355 = smul.addr %s354, 4
        %s356 = scalar_lea.vmem %s2, %s355
      $region16: #{transformer_encoder_forward.5} parent=11 // pred_fallthru
        _
      // Predicated region
      $region17: #{transformer_encoder_forward.5} parent=11 // pred_check
        %p357 = pneg %p138
      $region18: #{transformer_encoder_forward.5} parent=11 // pred_check_branch
        %359 = sbr.rel (%p357) target = $region20
      $region19: #{transformer_encoder_forward.5} parent=11 // pred_region
        %p360 = scmp.lt.s32.totalorder %s27, 1
        %s361 = scalar_select %p360, %s27, 1
        %s362 = smul.addr %s361, 2
        %s363 = smul.addr %s362, 4
        %s364 = scalar_lea.vmem %s3, %s363
      $region20: #{transformer_encoder_forward.5} parent=11 // pred_fallthru
        _
      // Predicated region
      $region21: #{transformer_encoder_forward.5} parent=11 // pred_check
        %p365 = pneg %p159
      $region22: #{transformer_encoder_forward.5} parent=11 // pred_check_branch
        %367 = sbr.rel (%p365) target = $region24
      $region23: #{transformer_encoder_forward.5} parent=11 // pred_region
        _
      $region24: #{transformer_encoder_forward.5} parent=11 // pred_fallthru
        _
      // Predicated region
      $region25: #{transformer_encoder_forward.5} parent=11 // pred_check
        %p368 = pneg %p180
      $region26: #{transformer_encoder_forward.5} parent=11 // pred_check_branch
        %370 = sbr.rel (%p368) target = $region28
      $region27: #{transformer_encoder_forward.5} parent=11 // pred_region
        _
      $region28: #{transformer_encoder_forward.5} parent=11 // pred_fallthru
        _
      // Predicated region
      $region29: #{transformer_encoder_forward.5} parent=11 // pred_check
        %p371 = pneg %p201
      $region30: #{transformer_encoder_forward.5} parent=11 // pred_check_branch
        %373 = sbr.rel (%p371) target = $region32
      $region31: #{transformer_encoder_forward.5} parent=11 // pred_region
        _
      $region32: #{transformer_encoder_forward.5} parent=11 // pred_fallthru
        _
      // Predicated region
      $region33: #{transformer_encoder_forward.5} parent=11 // pred_check
        %p374 = pneg %p222
      $region34: #{transformer_encoder_forward.5} parent=11 // pred_check_branch
        %376 = sbr.rel (%p374) target = $region36
      $region35: #{transformer_encoder_forward.5} parent=11 // pred_region
        _
      $region36: #{transformer_encoder_forward.5} parent=11 // pred_fallthru
        _
      // Predicated region
      $region37: #{transformer_encoder_forward.5} parent=11 // pred_check
        %p377 = pneg %p243
      $region38: #{transformer_encoder_forward.5} parent=11 // pred_check_branch
        %379 = sbr.rel (%p377) target = $region40
      $region39: #{transformer_encoder_forward.5} parent=11 // pred_region
        _
      $region40: #{transformer_encoder_forward.5} parent=11 // pred_fallthru
        _
      // Predicated region
      $region41: #{transformer_encoder_forward.5} parent=11 // pred_check
        %p380 = pneg %p264
      $region42: #{transformer_encoder_forward.5} parent=11 // pred_check_branch
        %382 = sbr.rel (%p380) target = $region44
      $region43: #{transformer_encoder_forward.5} parent=11 // pred_region
        _
      $region44: #{transformer_encoder_forward.5} parent=11 // pred_fallthru
        _
      // Predicated region
      $region45: #{transformer_encoder_forward.5} parent=11 // pred_check
        %p383 = pneg %p285
      $region46: #{transformer_encoder_forward.5} parent=11 // pred_check_branch
        %385 = sbr.rel (%p383) target = $region48
      $region47: #{transformer_encoder_forward.5} parent=11 // pred_region
        _
      $region48: #{transformer_encoder_forward.5} parent=11 // pred_fallthru
        _
      // Predicated region
      $region49: #{transformer_encoder_forward.5} parent=11 // pred_check
        %p386 = pneg %p306
      $region50: #{transformer_encoder_forward.5} parent=11 // pred_check_branch
        %388 = sbr.rel (%p386) target = $region52
      $region51: #{transformer_encoder_forward.5} parent=11 // pred_region
        _
      $region52: #{transformer_encoder_forward.5} parent=11 // pred_fallthru
        _
    $region12: #{transformer_encoder_forward.5} parent=5 // pred_fallthru
      _
    %p389 = scmp.lt.s32.totalorder %s18, 2
    // Predicated region
    $region53: #{transformer_encoder_forward.5} parent=5 // pred_check
      %p390 = pneg %p389
    $region54: #{transformer_encoder_forward.5} parent=5 // pred_check_branch
      %392 = sbr.rel (%p390) target = $region56
    $region55: #{transformer_encoder_forward.5} parent=5 // pred_region
      // Predicated region
      $region57: #{transformer_encoder_forward.5} parent=55 // pred_check
        %p393 = pneg %p52
      $region58: #{transformer_encoder_forward.5} parent=55 // pred_check_branch
        %395 = sbr.rel (%p393) target = $region60
      $region59: #{transformer_encoder_forward.5} parent=55 // pred_region
        %s396 = smul.u32 2, %s26
        %p397 = scmp.lt.s32.totalorder %s25, 1
        %s398 = scalar_select %p397, %s25, 1
        %p399 = scmp.lt.s32.totalorder %s396, 1
        %s400 = scalar_select %p399, %s396, 1
        %s401 = smul.addr %s398, 2
        %s402 = sadd.s32 %s400, %s401
        %s403 = smul.addr %s402, 8
        %s404 = scalar_lea.vmem %s0, %s403
        %s405 = smul.u32 2, %s26
      $region60: #{transformer_encoder_forward.5} parent=55 // pred_fallthru
        _
      // Predicated region
      $region61: #{transformer_encoder_forward.5} parent=55 // pred_check
        %p406 = pneg %p80
      $region62: #{transformer_encoder_forward.5} parent=55 // pred_check_branch
        %408 = sbr.rel (%p406) target = $region64
      $region63: #{transformer_encoder_forward.5} parent=55 // pred_region
        %s409 = smul.u32 2, %s26
        %p410 = scmp.lt.s32.totalorder %s25, 1
        %s411 = scalar_select %p410, %s25, 1
        %p412 = scmp.lt.s32.totalorder %s409, 1
        %s413 = scalar_select %p412, %s409, 1
        %s414 = smul.addr %s411, 2
        %s415 = sadd.s32 %s413, %s414
        %s416 = smul.addr %s415, 4
        %s417 = scalar_lea.vmem %s1, %s416
        %s418 = smul.u32 2, %s26
      $region64: #{transformer_encoder_forward.5} parent=55 // pred_fallthru
        _
    $region56: #{transformer_encoder_forward.5} parent=5 // pred_fallthru
      _
    %p419 = scmp.le.s32.totalorder 1, %s18
    %p420 = scmp.lt.s32.totalorder %s18, 3
    %p421 = pnand %p419, %p420
    %p422 = pneg %p421
    // Predicated region
    $region65: #{transformer_encoder_forward.5} parent=5 // pred_check
      _
    $region66: #{transformer_encoder_forward.5} parent=5 // pred_check_branch
      %424 = sbr.rel (%p421) target = $region68
    $region67: #{transformer_encoder_forward.5} parent=5 // pred_region
      %s425 = ssub.s32 %s18, 1
      %s426 = smul.u32 2, %s28
      %p427 = scmp.lt.s32.totalorder %s27, 1
      %s428 = scalar_select %p427, %s27, 1
      %p429 = scmp.lt.s32.totalorder %s426, 1
      %s430 = scalar_select %p429, %s426, 1
      %s431 = smul.addr %s428, 2
      %s432 = sadd.s32 %s430, %s431
      %s433 = smul.addr %s432, 8
      %s434 = scalar_lea.vmem %s0, %s433
      %p435 = pneg %p58
      %p436 = pneg %p55
      %s437 = smul.u32 2, %s28
      %p438 = scmp.lt.s32.totalorder %s27, 1
      %s439 = scalar_select %p438, %s27, 1
      %p440 = scmp.lt.s32.totalorder %s437, 1
      %s441 = scalar_select %p440, %s437, 1
      %s442 = smul.addr %s439, 2
      %s443 = sadd.s32 %s441, %s442
      %s444 = smul.addr %s443, 4
      %s445 = scalar_lea.vmem %s1, %s444
      %p446 = pneg %p86
      %p447 = pneg %p83
      %p448 = scmp.lt.s32.totalorder %s27, 1
      %s449 = scalar_select %p448, %s27, 1
      %s450 = smul.addr %s449, 2
      %s451 = smul.addr %s450, 4
      %s452 = scalar_lea.vmem %s2, %s451
      %p453 = pneg %p112
      %p454 = pneg %p109
      %p455 = scmp.lt.s32.totalorder %s27, 1
      %s456 = scalar_select %p455, %s27, 1
      %s457 = smul.addr %s456, 2
      %s458 = smul.addr %s457, 4
      %s459 = scalar_lea.vmem %s3, %s458
      %p460 = pneg %p138
      %p461 = pneg %p135
      %p462 = pneg %p159
      %p463 = pneg %p156
      %p464 = pneg %p180
      %p465 = pneg %p177
      %p466 = pneg %p201
      %p467 = pneg %p198
      %p468 = pneg %p222
      %p469 = pneg %p219
      %p470 = pneg %p243
      %p471 = pneg %p240
      %p472 = pneg %p264
      %p473 = pneg %p261
      %p474 = pneg %p285
      %p475 = pneg %p282
      %p476 = pneg %p306
      %p477 = pneg %p303
      %p478 = pneg %p334
      %p479 = pneg %p331
      %s480 = smul.u32 2, %s28
      %p481 = scmp.lt.s32.totalorder %s27, 1
      %s482 = scalar_select %p481, %s27, 1
      %p483 = scmp.lt.s32.totalorder %s480, 1
      %s484 = scalar_select %p483, %s480, 1
      %s485 = smul.addr %s482, 2
      %s486 = sadd.s32 %s484, %s485
      %s487 = smul.addr %s486, 8
      %s488 = scalar_lea.vmem %s12, %s487
      %s489 = smul.u32 2, %s28
      %p490 = scmp.lt.s32.totalorder %s27, 1
      %s491 = scalar_select %p490, %s27, 1
      %p492 = scmp.lt.s32.totalorder %s489, 1
      %s493 = scalar_select %p492, %s489, 1
      %s494 = smul.addr %s491, 2
      %s495 = sadd.s32 %s493, %s494
      %s496 = smul.addr %s495, 8
      %s497 = scalar_lea.vmem %s0, %s496
      %s498 = smul.u32 2, %s28
      %s499 = smul.u32 2, %s28
      %p500 = scmp.lt.s32.totalorder %s27, 1
      %s501 = scalar_select %p500, %s27, 1
      %p502 = scmp.lt.s32.totalorder %s499, 1
      %s503 = scalar_select %p502, %s499, 1
      %s504 = smul.addr %s501, 2
      %s505 = sadd.s32 %s503, %s504
      %s506 = smul.addr %s505, 4
      %s507 = scalar_lea.vmem %s1, %s506
      %s508 = smul.u32 2, %s28
      %p509 = scmp.lt.s32.totalorder %s27, 1
      %s510 = scalar_select %p509, %s27, 1
      %s511 = smul.addr %s510, 2
      %s512 = smul.addr %s511, 4
      %s513 = scalar_lea.vmem %s2, %s512
      %p514 = scmp.lt.s32.totalorder %s27, 1
      %s515 = scalar_select %p514, %s27, 1
      %s516 = smul.addr %s515, 2
      %s517 = smul.addr %s516, 4
      %s518 = scalar_lea.vmem %s3, %s517
      %s519 = smul.u32 2, %s28
      %p520 = scmp.lt.s32.totalorder %s27, 1
      %s521 = scalar_select %p520, %s27, 1
      %p522 = scmp.lt.s32.totalorder %s519, 1
      %s523 = scalar_select %p522, %s519, 1
      %s524 = smul.addr %s521, 2
      %s525 = sadd.s32 %s523, %s524
      %s526 = smul.addr %s525, 8
      %s527 = scalar_lea.vmem %s12, %s526
      %s528 = smul.u32 2, %s28
      %v530 = vld [vmem:[%s497] sm:$0xff]
      %v531 = vld [vmem:[%s497 + $0x8] sm:$0xff]
      %v532 = vld [vmem:[%s507] sm:$0xf]
      %v533 = vld [vmem:[%s507 + $0x4] sm:$0xf]
      %v534 = vld [vmem:[%s513] sm:$0xf]
      %v535 = vld [vmem:[%s513 + $0x4] sm:$0xf]
      %v536 = vld [vmem:[%s518] sm:$0xf]
      %v537 = vld [vmem:[%s518 + $0x4] sm:$0xf]
      %v540 = vunpack.c.l.b16 %v532
      %v541 = vunpack.c.l.b16 %v533
      %v542 = vpack.c.b16 %v541, %v540
      %v545 = vunpack.c.l.b16 %v534
      %v546 = vunpack.c.l.b16 %v535
      %v547 = vpack.c.b16 %v546, %v545
      %vm548 = vcmask 64512
      %v550 = vsel %vm548, %v542, 0
      %v553 = vsel %vm548, %v547, 0
      %555 = vmatprep.subr.bf16.mxu0 0
      %556 = vmatpush1.bf16.xpose.msra.mxu0 0
      %557 = vmatprep.subr.bf16.mxu0 0
      %558 = vmatpush1.bf16.xpose.msra.mxu0 0
      %559 = vmatprep.subr.bf16.mxu0 0
      %560 = vmatpush1.bf16.xpose.msra.mxu0 0
      %561 = vmatprep.subr.bf16.mxu0 0
      %562 = vmatpush1.bf16.xpose.msra.mxu0 0
      %563 = vmatprep.subr.bf16.mxu0 0
      %564 = vmatpush1.bf16.xpose.msra.mxu0 0
      %565 = vmatprep.subr.bf16.mxu0 0
      %566 = vmatpush1.bf16.xpose.msra.mxu0 0
      %567 = vmatprep.subr.bf16.mxu0 0
      %568 = vmatpush1.bf16.xpose.msra.mxu0 0
      %569 = vmatprep.subr.bf16.mxu0 0
      %570 = vmatpush1.bf16.xpose.msra.mxu0 %v553
      %571 = vmatprep.subr.bf16.mxu0 0
      %572 = vmatpush2.bf16.xpose.msra.mxu0 0
      %573 = vmatprep.subr.bf16.mxu0 0
      %574 = vmatpush2.bf16.xpose.msra.mxu0 0
      %575 = vmatprep.subr.bf16.mxu0 0
      %576 = vmatpush2.bf16.xpose.msra.mxu0 0
      %577 = vmatprep.subr.bf16.mxu0 0
      %578 = vmatpush2.bf16.xpose.msra.mxu0 0
      %579 = vmatprep.subr.bf16.mxu0 0
      %580 = vmatpush2.bf16.xpose.msra.mxu0 0
      %581 = vmatprep.subr.bf16.mxu0 0
      %582 = vmatpush2.bf16.xpose.msra.mxu0 0
      %583 = vmatprep.subr.bf16.mxu0 0
      %584 = vmatpush2.bf16.xpose.msra.mxu0 0
      %585 = vmatprep.subr.bf16.mxu0 0
      %586 = vmatpush2.bf16.xpose.msra.mxu0 0
      %587 = vmatprep.mubr.bf16.mxu0 0
      %588 = vmatmul.mubr.bf16.gmra.mxu0 %v550
      %v589 = vpop.f32.mrf.mxu0
      %v590 = vadd.f32 0.0, %v589
      %v591 = vpop.f32.mrf.mxu0
      %v592 = vpop.f32.mrf.mxu0
      %v593 = vadd.f32 0.0, %v592
      %v594 = vpop.f32.mrf.mxu0
      %595 = vdwg.mxu0
      %vm596 = vcmask 130048
      %v597 = vsel %vm596, %v590, -inf
      %598 = vmax.xlane.f32.xlu0 %v597
      %v599 = vpop.xlane.xlu0 %598
      %v600 = vsel %vm596, %v593, -inf
      %601 = vmax.xlane.f32.xlu0 %v600
      %v602 = vpop.xlane.xlu0 %601
      %v603 = vsub.f32 %v590, %v599
      %v604 = vsub.f32 %v593, %v602
      %v605 = vpack.c.bf16 %v604, %v603
      %v607 = vmul.bf16 %v605, 1069105081
      %v608 = vpow.bf16.pop %v607
      %v609 = vunpack.c.l.bf16 %v608
      %v610 = vunpack.c.h.bf16 %v608
      %v611 = vsel %vm596, %v609, 0.0
      %612 = vadd.xlane.f32.xlu0 %v611
      %v613 = vpop.xlane.xlu0 %612
      %v614 = vsel %vm596, %v610, 0.0
      %615 = vadd.xlane.f32.xlu0 %v614
      %v616 = vpop.xlane.xlu0 %615
      %v619 = vunpack.c.l.b16 %v536
      %v620 = vunpack.c.l.b16 %v537
      %v621 = vpack.c.b16 %v620, %v619
      %v624 = vsel %vm596, %v608, 0
      %626 = vmatprep.subr.bf16.mxu0 0
      %627 = vmatpush1.bf16.msra.mxu0 0
      %628 = vmatprep.subr.bf16.mxu0 0
      %629 = vmatpush1.bf16.msra.mxu0 0
      %630 = vmatprep.subr.bf16.mxu0 0
      %631 = vmatpush1.bf16.msra.mxu0 0
      %632 = vmatprep.subr.bf16.mxu0 0
      %633 = vmatpush1.bf16.msra.mxu0 0
      %634 = vmatprep.subr.bf16.mxu0 0
      %635 = vmatpush1.bf16.msra.mxu0 0
      %636 = vmatprep.subr.bf16.mxu0 0
      %637 = vmatpush1.bf16.msra.mxu0 0
      %638 = vmatprep.subr.bf16.mxu0 0
      %639 = vmatpush1.bf16.msra.mxu0 0
      %640 = vmatprep.subr.bf16.mxu0 0
      %641 = vmatpush1.bf16.msra.mxu0 %v621
      %642 = vmatprep.subr.bf16.mxu0 0
      %643 = vmatpush2.bf16.msra.mxu0 0
      %644 = vmatprep.subr.bf16.mxu0 0
      %645 = vmatpush2.bf16.msra.mxu0 0
      %646 = vmatprep.subr.bf16.mxu0 0
      %647 = vmatpush2.bf16.msra.mxu0 0
      %648 = vmatprep.subr.bf16.mxu0 0
      %649 = vmatpush2.bf16.msra.mxu0 0
      %650 = vmatprep.subr.bf16.mxu0 0
      %651 = vmatpush2.bf16.msra.mxu0 0
      %652 = vmatprep.subr.bf16.mxu0 0
      %653 = vmatpush2.bf16.msra.mxu0 0
      %654 = vmatprep.subr.bf16.mxu0 0
      %655 = vmatpush2.bf16.msra.mxu0 0
      %656 = vmatprep.subr.bf16.mxu0 0
      %657 = vmatpush2.bf16.msra.mxu0 0
      %658 = vmatprep.mubr.bf16.mxu0 0
      %659 = vmatmul.mubr.bf16.gmra.mxu0 %v624
      %v660 = vpop.f32.mrf.mxu0
      %v661 = vadd.f32 0.0, %v660
      %v662 = vpop.f32.mrf.mxu0
      %v663 = vpop.f32.mrf.mxu0
      %v664 = vadd.f32 0.0, %v663
      %v665 = vpop.f32.mrf.mxu0
      %666 = vdwg.mxu0
      %v667 = vrcp.pop %v613
      %v668 = vrcp.pop %v616
      %v669 = vmul.f32 %v661, %v667
      %v670 = vmul.f32 %v664, %v668
      %v671 = vpack.c.bf16 %v670, %v669
      %672 = vrot.lane.b32.xlu0 %v542, 120
      %v673 = vpop.permute.xlu0 %672
      %674 = vrot.lane.b32.xlu0 %v547, 120
      %v675 = vpop.permute.xlu0 %674
      %v677 = vsel %vm548, %v673, 0
      %v680 = vsel %vm548, %v675, 0
      %682 = vmatprep.subr.bf16.mxu0 0
      %683 = vmatpush1.bf16.xpose.msra.mxu0 0
      %684 = vmatprep.subr.bf16.mxu0 0
      %685 = vmatpush1.bf16.xpose.msra.mxu0 0
      %686 = vmatprep.subr.bf16.mxu0 0
      %687 = vmatpush1.bf16.xpose.msra.mxu0 0
      %688 = vmatprep.subr.bf16.mxu0 0
      %689 = vmatpush1.bf16.xpose.msra.mxu0 0
      %690 = vmatprep.subr.bf16.mxu0 0
      %691 = vmatpush1.bf16.xpose.msra.mxu0 0
      %692 = vmatprep.subr.bf16.mxu0 0
      %693 = vmatpush1.bf16.xpose.msra.mxu0 0
      %694 = vmatprep.subr.bf16.mxu0 0
      %695 = vmatpush1.bf16.xpose.msra.mxu0 0
      %696 = vmatprep.subr.bf16.mxu0 0
      %697 = vmatpush1.bf16.xpose.msra.mxu0 %v680
      %698 = vmatprep.subr.bf16.mxu0 0
      %699 = vmatpush2.bf16.xpose.msra.mxu0 0
      %700 = vmatprep.subr.bf16.mxu0 0
      %701 = vmatpush2.bf16.xpose.msra.mxu0 0
      %702 = vmatprep.subr.bf16.mxu0 0
      %703 = vmatpush2.bf16.xpose.msra.mxu0 0
      %704 = vmatprep.subr.bf16.mxu0 0
      %705 = vmatpush2.bf16.xpose.msra.mxu0 0
      %706 = vmatprep.subr.bf16.mxu0 0
      %707 = vmatpush2.bf16.xpose.msra.mxu0 0
      %708 = vmatprep.subr.bf16.mxu0 0
      %709 = vmatpush2.bf16.xpose.msra.mxu0 0
      %710 = vmatprep.subr.bf16.mxu0 0
      %711 = vmatpush2.bf16.xpose.msra.mxu0 0
      %712 = vmatprep.subr.bf16.mxu0 0
      %713 = vmatpush2.bf16.xpose.msra.mxu0 0
      %714 = vmatprep.mubr.bf16.mxu0 0
      %715 = vmatmul.mubr.bf16.gmra.mxu0 %v677
      %v716 = vpop.f32.mrf.mxu0
      %v717 = vadd.f32 0.0, %v716
      %v718 = vpop.f32.mrf.mxu0
      %v719 = vpop.f32.mrf.mxu0
      %v720 = vadd.f32 0.0, %v719
      %v721 = vpop.f32.mrf.mxu0
      %722 = vdwg.mxu0
      %v723 = vsel %vm596, %v717, -inf
      %724 = vmax.xlane.f32.xlu0 %v723
      %v725 = vpop.xlane.xlu0 %724
      %v726 = vsel %vm596, %v720, -inf
      %727 = vmax.xlane.f32.xlu0 %v726
      %v728 = vpop.xlane.xlu0 %727
      %v729 = vsub.f32 %v717, %v725
      %v730 = vsub.f32 %v720, %v728
      %v731 = vpack.c.bf16 %v730, %v729
      %v733 = vmul.bf16 %v731, 1069105081
      %v734 = vpow.bf16.pop %v733
      %v735 = vunpack.c.l.bf16 %v734
      %v736 = vunpack.c.h.bf16 %v734
      %v737 = vsel %vm596, %v735, 0.0
      %738 = vadd.xlane.f32.xlu0 %v737
      %v739 = vpop.xlane.xlu0 %738
      %v740 = vsel %vm596, %v736, 0.0
      %741 = vadd.xlane.f32.xlu0 %v740
      %v742 = vpop.xlane.xlu0 %741
      %743 = vrot.lane.b32.xlu0 %v621, 120
      %v744 = vpop.permute.xlu0 %743
      %v747 = vsel %vm596, %v734, 0
      %749 = vmatprep.subr.bf16.mxu0 0
      %750 = vmatpush1.bf16.msra.mxu0 0
      %751 = vmatprep.subr.bf16.mxu0 0
      %752 = vmatpush1.bf16.msra.mxu0 0
      %753 = vmatprep.subr.bf16.mxu0 0
      %754 = vmatpush1.bf16.msra.mxu0 0
      %755 = vmatprep.subr.bf16.mxu0 0
      %756 = vmatpush1.bf16.msra.mxu0 0
      %757 = vmatprep.subr.bf16.mxu0 0
      %758 = vmatpush1.bf16.msra.mxu0 0
      %759 = vmatprep.subr.bf16.mxu0 0
      %760 = vmatpush1.bf16.msra.mxu0 0
      %761 = vmatprep.subr.bf16.mxu0 0
      %762 = vmatpush1.bf16.msra.mxu0 0
      %763 = vmatprep.subr.bf16.mxu0 0
      %764 = vmatpush1.bf16.msra.mxu0 %v744
      %765 = vmatprep.subr.bf16.mxu0 0
      %766 = vmatpush2.bf16.msra.mxu0 0
      %767 = vmatprep.subr.bf16.mxu0 0
      %768 = vmatpush2.bf16.msra.mxu0 0
      %769 = vmatprep.subr.bf16.mxu0 0
      %770 = vmatpush2.bf16.msra.mxu0 0
      %771 = vmatprep.subr.bf16.mxu0 0
      %772 = vmatpush2.bf16.msra.mxu0 0
      %773 = vmatprep.subr.bf16.mxu0 0
      %774 = vmatpush2.bf16.msra.mxu0 0
      %775 = vmatprep.subr.bf16.mxu0 0
      %776 = vmatpush2.bf16.msra.mxu0 0
      %777 = vmatprep.subr.bf16.mxu0 0
      %778 = vmatpush2.bf16.msra.mxu0 0
      %779 = vmatprep.subr.bf16.mxu0 0
      %780 = vmatpush2.bf16.msra.mxu0 0
      %781 = vmatprep.mubr.bf16.mxu0 0
      %782 = vmatmul.mubr.bf16.gmra.mxu0 %v747
      %v783 = vpop.f32.mrf.mxu0
      %v784 = vadd.f32 0.0, %v783
      %v785 = vpop.f32.mrf.mxu0
      %v786 = vpop.f32.mrf.mxu0
      %v787 = vadd.f32 0.0, %v786
      %v788 = vpop.f32.mrf.mxu0
      %789 = vdwg.mxu0
      %v790 = vrcp.pop %v739
      %v791 = vrcp.pop %v742
      %v792 = vmul.f32 %v784, %v790
      %v793 = vmul.f32 %v787, %v791
      %v794 = vpack.c.bf16 %v793, %v792
      %795 = vrot.lane.b32.xlu0 %v542, 112
      %v796 = vpop.permute.xlu0 %795
      %797 = vrot.lane.b32.xlu0 %v547, 112
      %v798 = vpop.permute.xlu0 %797
      %v800 = vsel %vm548, %v796, 0
      %v803 = vsel %vm548, %v798, 0
      %805 = vmatprep.subr.bf16.mxu0 0
      %806 = vmatpush1.bf16.xpose.msra.mxu0 0
      %807 = vmatprep.subr.bf16.mxu0 0
      %808 = vmatpush1.bf16.xpose.msra.mxu0 0
      %809 = vmatprep.subr.bf16.mxu0 0
      %810 = vmatpush1.bf16.xpose.msra.mxu0 0
      %811 = vmatprep.subr.bf16.mxu0 0
      %812 = vmatpush1.bf16.xpose.msra.mxu0 0
      %813 = vmatprep.subr.bf16.mxu0 0
      %814 = vmatpush1.bf16.xpose.msra.mxu0 0
      %815 = vmatprep.subr.bf16.mxu0 0
      %816 = vmatpush1.bf16.xpose.msra.mxu0 0
      %817 = vmatprep.subr.bf16.mxu0 0
      %818 = vmatpush1.bf16.xpose.msra.mxu0 0
      %819 = vmatprep.subr.bf16.mxu0 0
      %820 = vmatpush1.bf16.xpose.msra.mxu0 %v803
      %821 = vmatprep.subr.bf16.mxu0 0
      %822 = vmatpush2.bf16.xpose.msra.mxu0 0
      %823 = vmatprep.subr.bf16.mxu0 0
      %824 = vmatpush2.bf16.xpose.msra.mxu0 0
      %825 = vmatprep.subr.bf16.mxu0 0
      %826 = vmatpush2.bf16.xpose.msra.mxu0 0
      %827 = vmatprep.subr.bf16.mxu0 0
      %828 = vmatpush2.bf16.xpose.msra.mxu0 0
      %829 = vmatprep.subr.bf16.mxu0 0
      %830 = vmatpush2.bf16.xpose.msra.mxu0 0
      %831 = vmatprep.subr.bf16.mxu0 0
      %832 = vmatpush2.bf16.xpose.msra.mxu0 0
      %833 = vmatprep.subr.bf16.mxu0 0
      %834 = vmatpush2.bf16.xpose.msra.mxu0 0
      %835 = vmatprep.subr.bf16.mxu0 0
      %836 = vmatpush2.bf16.xpose.msra.mxu0 0
      %837 = vmatprep.mubr.bf16.mxu0 0
      %838 = vmatmul.mubr.bf16.gmra.mxu0 %v800
      %v839 = vpop.f32.mrf.mxu0
      %v840 = vadd.f32 0.0, %v839
      %v841 = vpop.f32.mrf.mxu0
      %v842 = vpop.f32.mrf.mxu0
      %v843 = vadd.f32 0.0, %v842
      %v844 = vpop.f32.mrf.mxu0
      %845 = vdwg.mxu0
      %v846 = vsel %vm596, %v840, -inf
      %847 = vmax.xlane.f32.xlu0 %v846
      %v848 = vpop.xlane.xlu0 %847
      %v849 = vsel %vm596, %v843, -inf
      %850 = vmax.xlane.f32.xlu0 %v849
      %v851 = vpop.xlane.xlu0 %850
      %v852 = vsub.f32 %v840, %v848
      %v853 = vsub.f32 %v843, %v851
      %v854 = vpack.c.bf16 %v853, %v852
      %v856 = vmul.bf16 %v854, 1069105081
      %v857 = vpow.bf16.pop %v856
      %v858 = vunpack.c.l.bf16 %v857
      %v859 = vunpack.c.h.bf16 %v857
      %v860 = vsel %vm596, %v858, 0.0
      %861 = vadd.xlane.f32.xlu0 %v860
      %v862 = vpop.xlane.xlu0 %861
      %v863 = vsel %vm596, %v859, 0.0
      %864 = vadd.xlane.f32.xlu0 %v863
      %v865 = vpop.xlane.xlu0 %864
      %866 = vrot.lane.b32.xlu0 %v621, 112
      %v867 = vpop.permute.xlu0 %866
      %v870 = vsel %vm596, %v857, 0
      %872 = vmatprep.subr.bf16.mxu0 0
      %873 = vmatpush1.bf16.msra.mxu0 0
      %874 = vmatprep.subr.bf16.mxu0 0
      %875 = vmatpush1.bf16.msra.mxu0 0
      %876 = vmatprep.subr.bf16.mxu0 0
      %877 = vmatpush1.bf16.msra.mxu0 0
      %878 = vmatprep.subr.bf16.mxu0 0
      %879 = vmatpush1.bf16.msra.mxu0 0
      %880 = vmatprep.subr.bf16.mxu0 0
      %881 = vmatpush1.bf16.msra.mxu0 0
      %882 = vmatprep.subr.bf16.mxu0 0
      %883 = vmatpush1.bf16.msra.mxu0 0
      %884 = vmatprep.subr.bf16.mxu0 0
      %885 = vmatpush1.bf16.msra.mxu0 0
      %886 = vmatprep.subr.bf16.mxu0 0
      %887 = vmatpush1.bf16.msra.mxu0 %v867
      %888 = vmatprep.subr.bf16.mxu0 0
      %889 = vmatpush2.bf16.msra.mxu0 0
      %890 = vmatprep.subr.bf16.mxu0 0
      %891 = vmatpush2.bf16.msra.mxu0 0
      %892 = vmatprep.subr.bf16.mxu0 0
      %893 = vmatpush2.bf16.msra.mxu0 0
      %894 = vmatprep.subr.bf16.mxu0 0
      %895 = vmatpush2.bf16.msra.mxu0 0
      %896 = vmatprep.subr.bf16.mxu0 0
      %897 = vmatpush2.bf16.msra.mxu0 0
      %898 = vmatprep.subr.bf16.mxu0 0
      %899 = vmatpush2.bf16.msra.mxu0 0
      %900 = vmatprep.subr.bf16.mxu0 0
      %901 = vmatpush2.bf16.msra.mxu0 0
      %902 = vmatprep.subr.bf16.mxu0 0
      %903 = vmatpush2.bf16.msra.mxu0 0
      %904 = vmatprep.mubr.bf16.mxu0 0
      %905 = vmatmul.mubr.bf16.gmra.mxu0 %v870
      %v906 = vpop.f32.mrf.mxu0
      %v907 = vadd.f32 0.0, %v906
      %v908 = vpop.f32.mrf.mxu0
      %v909 = vpop.f32.mrf.mxu0
      %v910 = vadd.f32 0.0, %v909
      %v911 = vpop.f32.mrf.mxu0
      %912 = vdwg.mxu0
      %v913 = vrcp.pop %v862
      %v914 = vrcp.pop %v865
      %v915 = vmul.f32 %v907, %v913
      %v916 = vmul.f32 %v910, %v914
      %v917 = vpack.c.bf16 %v916, %v915
      %918 = vrot.lane.b32.xlu0 %v542, 104
      %v919 = vpop.permute.xlu0 %918
      %920 = vrot.lane.b32.xlu0 %v547, 104
      %v921 = vpop.permute.xlu0 %920
      %v923 = vsel %vm548, %v919, 0
      %v926 = vsel %vm548, %v921, 0
      %928 = vmatprep.subr.bf16.mxu0 0
      %929 = vmatpush1.bf16.xpose.msra.mxu0 0
      %930 = vmatprep.subr.bf16.mxu0 0
      %931 = vmatpush1.bf16.xpose.msra.mxu0 0
      %932 = vmatprep.subr.bf16.mxu0 0
      %933 = vmatpush1.bf16.xpose.msra.mxu0 0
      %934 = vmatprep.subr.bf16.mxu0 0
      %935 = vmatpush1.bf16.xpose.msra.mxu0 0
      %936 = vmatprep.subr.bf16.mxu0 0
      %937 = vmatpush1.bf16.xpose.msra.mxu0 0
      %938 = vmatprep.subr.bf16.mxu0 0
      %939 = vmatpush1.bf16.xpose.msra.mxu0 0
      %940 = vmatprep.subr.bf16.mxu0 0
      %941 = vmatpush1.bf16.xpose.msra.mxu0 0
      %942 = vmatprep.subr.bf16.mxu0 0
      %943 = vmatpush1.bf16.xpose.msra.mxu0 %v926
      %944 = vmatprep.subr.bf16.mxu0 0
      %945 = vmatpush2.bf16.xpose.msra.mxu0 0
      %946 = vmatprep.subr.bf16.mxu0 0
      %947 = vmatpush2.bf16.xpose.msra.mxu0 0
      %948 = vmatprep.subr.bf16.mxu0 0
      %949 = vmatpush2.bf16.xpose.msra.mxu0 0
      %950 = vmatprep.subr.bf16.mxu0 0
      %951 = vmatpush2.bf16.xpose.msra.mxu0 0
      %952 = vmatprep.subr.bf16.mxu0 0
      %953 = vmatpush2.bf16.xpose.msra.mxu0 0
      %954 = vmatprep.subr.bf16.mxu0 0
      %955 = vmatpush2.bf16.xpose.msra.mxu0 0
      %956 = vmatprep.subr.bf16.mxu0 0
      %957 = vmatpush2.bf16.xpose.msra.mxu0 0
      %958 = vmatprep.subr.bf16.mxu0 0
      %959 = vmatpush2.bf16.xpose.msra.mxu0 0
      %960 = vmatprep.mubr.bf16.mxu0 0
      %961 = vmatmul.mubr.bf16.gmra.mxu0 %v923
      %v962 = vpop.f32.mrf.mxu0
      %v963 = vadd.f32 0.0, %v962
      %v964 = vpop.f32.mrf.mxu0
      %v965 = vpop.f32.mrf.mxu0
      %v966 = vadd.f32 0.0, %v965
      %v967 = vpop.f32.mrf.mxu0
      %968 = vdwg.mxu0
      %v969 = vsel %vm596, %v963, -inf
      %970 = vmax.xlane.f32.xlu0 %v969
      %v971 = vpop.xlane.xlu0 %970
      %v972 = vsel %vm596, %v966, -inf
      %973 = vmax.xlane.f32.xlu0 %v972
      %v974 = vpop.xlane.xlu0 %973
      %v975 = vsub.f32 %v963, %v971
      %v976 = vsub.f32 %v966, %v974
      %v977 = vpack.c.bf16 %v976, %v975
      %v979 = vmul.bf16 %v977, 1069105081
      %v980 = vpow.bf16.pop %v979
      %v981 = vunpack.c.l.bf16 %v980
      %v982 = vunpack.c.h.bf16 %v980
      %v983 = vsel %vm596, %v981, 0.0
      %984 = vadd.xlane.f32.xlu0 %v983
      %v985 = vpop.xlane.xlu0 %984
      %v986 = vsel %vm596, %v982, 0.0
      %987 = vadd.xlane.f32.xlu0 %v986
      %v988 = vpop.xlane.xlu0 %987
      %989 = vrot.lane.b32.xlu0 %v621, 104
      %v990 = vpop.permute.xlu0 %989
      %v993 = vsel %vm596, %v980, 0
      %995 = vmatprep.subr.bf16.mxu0 0
      %996 = vmatpush1.bf16.msra.mxu0 0
      %997 = vmatprep.subr.bf16.mxu0 0
      %998 = vmatpush1.bf16.msra.mxu0 0
      %999 = vmatprep.subr.bf16.mxu0 0
      %1000 = vmatpush1.bf16.msra.mxu0 0
      %1001 = vmatprep.subr.bf16.mxu0 0
      %1002 = vmatpush1.bf16.msra.mxu0 0
      %1003 = vmatprep.subr.bf16.mxu0 0
      %1004 = vmatpush1.bf16.msra.mxu0 0
      %1005 = vmatprep.subr.bf16.mxu0 0
      %1006 = vmatpush1.bf16.msra.mxu0 0
      %1007 = vmatprep.subr.bf16.mxu0 0
      %1008 = vmatpush1.bf16.msra.mxu0 0
      %1009 = vmatprep.subr.bf16.mxu0 0
      %1010 = vmatpush1.bf16.msra.mxu0 %v990
      %1011 = vmatprep.subr.bf16.mxu0 0
      %1012 = vmatpush2.bf16.msra.mxu0 0
      %1013 = vmatprep.subr.bf16.mxu0 0
      %1014 = vmatpush2.bf16.msra.mxu0 0
      %1015 = vmatprep.subr.bf16.mxu0 0
      %1016 = vmatpush2.bf16.msra.mxu0 0
      %1017 = vmatprep.subr.bf16.mxu0 0
      %1018 = vmatpush2.bf16.msra.mxu0 0
      %1019 = vmatprep.subr.bf16.mxu0 0
      %1020 = vmatpush2.bf16.msra.mxu0 0
      %1021 = vmatprep.subr.bf16.mxu0 0
      %1022 = vmatpush2.bf16.msra.mxu0 0
      %1023 = vmatprep.subr.bf16.mxu0 0
      %1024 = vmatpush2.bf16.msra.mxu0 0
      %1025 = vmatprep.subr.bf16.mxu0 0
      %1026 = vmatpush2.bf16.msra.mxu0 0
      %1027 = vmatprep.mubr.bf16.mxu0 0
      %1028 = vmatmul.mubr.bf16.gmra.mxu0 %v993
      %v1029 = vpop.f32.mrf.mxu0
      %v1030 = vadd.f32 0.0, %v1029
      %v1031 = vpop.f32.mrf.mxu0
      %v1032 = vpop.f32.mrf.mxu0
      %v1033 = vadd.f32 0.0, %v1032
      %v1034 = vpop.f32.mrf.mxu0
      %1035 = vdwg.mxu0
      %v1036 = vrcp.pop %v985
      %v1037 = vrcp.pop %v988
      %v1038 = vmul.f32 %v1030, %v1036
      %v1039 = vmul.f32 %v1033, %v1037
      %v1040 = vpack.c.bf16 %v1039, %v1038
      %1042 = vrot.lane.b32.xlu0 %v794, 8
      %v1043 = vpop.permute.xlu0 %1042
      %1045 = vrot.lane.b32.xlu0 %v917, 16
      %v1046 = vpop.permute.xlu0 %1045
      %1048 = vrot.lane.b32.xlu0 %v1040, 24
      %v1049 = vpop.permute.xlu0 %1048
      %v1052 = vsel %vm548, %v671, %v1043
      %v1054 = vsel %vm596, %v1052, %v1046
      %vm1055 = vcmask 195584
      %v1057 = vsel %vm1055, %v1054, %v1049
      %v1058 = vld [vmem:[%s4] sm:$0xf]
      %v1059 = vld [vmem:[%s4 + $0x4] sm:$0xf]
      %v1060 = vld [vmem:[%s4 + $0x8] sm:$0xf]
      %v1061 = vld [vmem:[%s4 + $0xc] sm:$0xf]
      %v1062 = vld [vmem:[%s5] sm:$0x1]
      %v1064 = vlaneseq
      %v1065 = vshrl.u32 %v1064, 7
      %v1066 = vsub.s32 0, %v1065
      %v1067 = vrot.slane %v1062, %v1066
      %v1073 = vunpack.c.l.b16 %v1058
      %v1074 = vunpack.c.l.b16 %v1059
      %v1075 = vunpack.c.l.b16 %v1060
      %v1076 = vunpack.c.l.b16 %v1061
      %v1077 = vpack.c.b16 %v1074, %v1073
      %v1078 = vpack.c.b16 %v1076, %v1075
      %vm1081 = vcmask 261120
      %v1082 = vsel %vm1081, %v1057, 0
      %1084 = vmatprep.subr.bf16.mxu0 0
      %1085 = vmatpush1.bf16.msra.mxu0 0
      %1086 = vmatprep.subr.bf16.mxu0 0
      %1087 = vmatpush1.bf16.msra.mxu0 0
      %1088 = vmatprep.subr.bf16.mxu0 0
      %1089 = vmatpush1.bf16.msra.mxu0 0
      %1090 = vmatprep.subr.bf16.mxu0 0
      %1091 = vmatpush1.bf16.msra.mxu0 0
      %1092 = vmatprep.subr.bf16.mxu0 0
      %1093 = vmatpush1.bf16.msra.mxu0 0
      %1094 = vmatprep.subr.bf16.mxu0 0
      %1095 = vmatpush1.bf16.msra.mxu0 0
      %1096 = vmatprep.subr.bf16.mxu0 0
      %1097 = vmatpush1.bf16.msra.mxu0 %v1078
      %1098 = vmatprep.subr.bf16.mxu0 0
      %1099 = vmatpush1.bf16.msra.mxu0 %v1077
      %1100 = vmatprep.subr.bf16.mxu0 0
      %1101 = vmatpush2.bf16.msra.mxu0 0
      %1102 = vmatprep.subr.bf16.mxu0 0
      %1103 = vmatpush2.bf16.msra.mxu0 0
      %1104 = vmatprep.subr.bf16.mxu0 0
      %1105 = vmatpush2.bf16.msra.mxu0 0
      %1106 = vmatprep.subr.bf16.mxu0 0
      %1107 = vmatpush2.bf16.msra.mxu0 0
      %1108 = vmatprep.subr.bf16.mxu0 0
      %1109 = vmatpush2.bf16.msra.mxu0 0
      %1110 = vmatprep.subr.bf16.mxu0 0
      %1111 = vmatpush2.bf16.msra.mxu0 0
      %1112 = vmatprep.subr.bf16.mxu0 0
      %1113 = vmatpush2.bf16.msra.mxu0 0
      %1114 = vmatprep.subr.bf16.mxu0 0
      %1115 = vmatpush2.bf16.msra.mxu0 0
      %1116 = vmatprep.mubr.bf16.mxu0 0
      %1117 = vmatmul.mubr.bf16.gmra.mxu0 %v1082
      %v1118 = vpop.f32.mrf.mxu0
      %v1119 = vadd.f32 %v1067, %v1118
      %v1120 = vpop.f32.mrf.mxu0
      %v1121 = vpop.f32.mrf.mxu0
      %v1122 = vadd.f32 %v1067, %v1121
      %v1123 = vpop.f32.mrf.mxu0
      %1124 = vdwg.mxu0
      %v1125 = vadd.f32 %v530, %v1119
      %v1126 = vadd.f32 %v531, %v1122
      %v1127 = vld [vmem:[%s6] sm:$0x1]
      %v1128 = vld [vmem:[%s7] sm:$0x1]
      %v1129 = vsel %vm1081, %v1125, 0.0
      %1130 = vadd.xlane.f32.xlu0 %v1129
      %v1131 = vpop.xlane.xlu0 %1130
      %v1132 = vsel %vm1081, %v1126, 0.0
      %1133 = vadd.xlane.f32.xlu0 %v1132
      %v1134 = vpop.xlane.xlu0 %1133
      %v1135 = vrcp.pop 32.0
      %v1136 = vmul.f32 %v1131, %v1135
      %v1137 = vmul.f32 %v1134, %v1135
      %v1138 = vsub.f32 %v1125, %v1136
      %v1139 = vsub.f32 %v1126, %v1137
      %v1140 = vmul.f32 %v1138, %v1138
      %v1141 = vmul.f32 %v1139, %v1139
      %v1142 = vsel %vm1081, %v1140, 0.0
      %1143 = vadd.xlane.f32.xlu0 %v1142
      %v1144 = vpop.xlane.xlu0 %1143
      %v1145 = vsel %vm1081, %v1141, 0.0
      %1146 = vadd.xlane.f32.xlu0 %v1145
      %v1147 = vpop.xlane.xlu0 %1146
      %v1148 = vmul.f32 %v1144, %v1135
      %v1149 = vmul.f32 %v1147, %v1135
      %v1150 = vadd.f32 %v1148, 1e-05
      %v1151 = vadd.f32 %v1149, 1e-05
      %v1152 = vrsqrt.pop %v1150
      %v1153 = vrsqrt.pop %v1151
      %v1154 = vmul.f32 %v1138, %v1152
      %v1155 = vmul.f32 %v1139, %v1153
      %v1157 = vlaneseq
      %v1158 = vshrl.u32 %v1157, 7
      %v1159 = vsub.s32 0, %v1158
      %v1160 = vrot.slane %v1127, %v1159
      %v1162 = vmul.f32 %v1154, %v1160
      %v1163 = vmul.f32 %v1155, %v1160
      %v1165 = vlaneseq
      %v1166 = vshrl.u32 %v1165, 7
      %v1167 = vsub.s32 0, %v1166
      %v1168 = vrot.slane %v1128, %v1167
      %v1170 = vadd.f32 %v1162, %v1168
      %v1171 = vadd.f32 %v1163, %v1168
      %v1172 = vpack.c.bf16 %v1171, %v1170
      %v1173 = vld [vmem:[%s8] sm:$0xf]
      %v1174 = vld [vmem:[%s8 + $0x4] sm:$0xf]
      %v1175 = vld [vmem:[%s8 + $0x8] sm:$0xf]
      %v1176 = vld [vmem:[%s8 + $0xc] sm:$0xf]
      %v1177 = vld [vmem:[%s9] sm:$0x1]
      %v1179 = vlaneseq
      %v1180 = vshrl.u32 %v1179, 7
      %v1181 = vsub.s32 0, %v1180
      %v1182 = vrot.slane %v1177, %v1181
      %v1188 = vunpack.c.l.b16 %v1173
      %v1189 = vunpack.c.l.b16 %v1174
      %v1190 = vunpack.c.l.b16 %v1175
      %v1191 = vunpack.c.l.b16 %v1176
      %v1192 = vpack.c.b16 %v1189, %v1188
      %v1193 = vpack.c.b16 %v1191, %v1190
      %v1197 = vsel %vm1081, %v1172, 0
      %1199 = vmatprep.subr.bf16.mxu0 0
      %1200 = vmatpush1.bf16.msra.mxu0 0
      %1201 = vmatprep.subr.bf16.mxu0 0
      %1202 = vmatpush1.bf16.msra.mxu0 0
      %1203 = vmatprep.subr.bf16.mxu0 0
      %1204 = vmatpush1.bf16.msra.mxu0 0
      %1205 = vmatprep.subr.bf16.mxu0 0
      %1206 = vmatpush1.bf16.msra.mxu0 0
      %1207 = vmatprep.subr.bf16.mxu0 0
      %1208 = vmatpush1.bf16.msra.mxu0 0
      %1209 = vmatprep.subr.bf16.mxu0 0
      %1210 = vmatpush1.bf16.msra.mxu0 0
      %1211 = vmatprep.subr.bf16.mxu0 0
      %1212 = vmatpush1.bf16.msra.mxu0 %v1193
      %1213 = vmatprep.subr.bf16.mxu0 0
      %1214 = vmatpush1.bf16.msra.mxu0 %v1192
      %1215 = vmatprep.subr.bf16.mxu0 0
      %1216 = vmatpush2.bf16.msra.mxu0 0
      %1217 = vmatprep.subr.bf16.mxu0 0
      %1218 = vmatpush2.bf16.msra.mxu0 0
      %1219 = vmatprep.subr.bf16.mxu0 0
      %1220 = vmatpush2.bf16.msra.mxu0 0
      %1221 = vmatprep.subr.bf16.mxu0 0
      %1222 = vmatpush2.bf16.msra.mxu0 0
      %1223 = vmatprep.subr.bf16.mxu0 0
      %1224 = vmatpush2.bf16.msra.mxu0 0
      %1225 = vmatprep.subr.bf16.mxu0 0
      %1226 = vmatpush2.bf16.msra.mxu0 0
      %1227 = vmatprep.subr.bf16.mxu0 0
      %1228 = vmatpush2.bf16.msra.mxu0 0
      %1229 = vmatprep.subr.bf16.mxu0 0
      %1230 = vmatpush2.bf16.msra.mxu0 0
      %1231 = vmatprep.mubr.bf16.mxu0 0
      %1232 = vmatmul.mubr.bf16.gmra.mxu0 %v1197
      %v1233 = vpop.f32.mrf.mxu0
      %v1234 = vadd.f32 %v1182, %v1233
      %v1235 = vpop.f32.mrf.mxu0
      %v1236 = vpop.f32.mrf.mxu0
      %v1237 = vadd.f32 %v1182, %v1236
      %v1238 = vpop.f32.mrf.mxu0
      %1239 = vdwg.mxu0
      %v1240 = vmax.f32 %v1234, 0.0
      %v1241 = vmax.f32 %v1237, 0.0
      %v1242 = vpack.c.bf16 %v1241, %v1240
      %v1243 = vld [vmem:[%s10] sm:$0xf]
      %v1244 = vld [vmem:[%s10 + $0x4] sm:$0xf]
      %v1245 = vld [vmem:[%s10 + $0x8] sm:$0xf]
      %v1246 = vld [vmem:[%s10 + $0xc] sm:$0xf]
      %v1247 = vld [vmem:[%s10 + $0x10] sm:$0xf]
      %v1248 = vld [vmem:[%s10 + $0x14] sm:$0xf]
      %v1249 = vld [vmem:[%s10 + $0x18] sm:$0xf]
      %v1250 = vld [vmem:[%s10 + $0x1c] sm:$0xf]
      %v1251 = vld [vmem:[%s11] sm:$0x1]
      %v1253 = vlaneseq
      %v1254 = vshrl.u32 %v1253, 7
      %v1255 = vsub.s32 0, %v1254
      %v1256 = vrot.slane %v1251, %v1255
      %v1266 = vunpack.c.l.b16 %v1243
      %v1267 = vunpack.c.l.b16 %v1244
      %v1268 = vunpack.c.l.b16 %v1245
      %v1269 = vunpack.c.l.b16 %v1246
      %v1270 = vunpack.c.l.b16 %v1247
      %v1271 = vunpack.c.l.b16 %v1248
      %v1272 = vunpack.c.l.b16 %v1249
      %v1273 = vunpack.c.l.b16 %v1250
      %v1274 = vpack.c.b16 %v1267, %v1266
      %v1275 = vpack.c.b16 %v1269, %v1268
      %v1276 = vpack.c.b16 %v1271, %v1270
      %v1277 = vpack.c.b16 %v1273, %v1272
      %vm1282 = vcmask 523264
      %v1284 = vsel %vm1282, %v1242, 0
      %1286 = vmatprep.subr.bf16.mxu0 0
      %1287 = vmatpush1.bf16.msra.mxu0 0
      %1288 = vmatprep.subr.bf16.mxu0 0
      %1289 = vmatpush1.bf16.msra.mxu0 0
      %1290 = vmatprep.subr.bf16.mxu0 0
      %1291 = vmatpush1.bf16.msra.mxu0 0
      %1292 = vmatprep.subr.bf16.mxu0 0
      %1293 = vmatpush1.bf16.msra.mxu0 0
      %1294 = vmatprep.subr.bf16.mxu0 0
      %1295 = vmatpush1.bf16.msra.mxu0 %v1277
      %1296 = vmatprep.subr.bf16.mxu0 0
      %1297 = vmatpush1.bf16.msra.mxu0 %v1276
      %1298 = vmatprep.subr.bf16.mxu0 0
      %1299 = vmatpush1.bf16.msra.mxu0 %v1275
      %1300 = vmatprep.subr.bf16.mxu0 0
      %1301 = vmatpush1.bf16.msra.mxu0 %v1274
      %1302 = vmatprep.subr.bf16.mxu0 0
      %1303 = vmatpush2.bf16.msra.mxu0 0
      %1304 = vmatprep.subr.bf16.mxu0 0
      %1305 = vmatpush2.bf16.msra.mxu0 0
      %1306 = vmatprep.subr.bf16.mxu0 0
      %1307 = vmatpush2.bf16.msra.mxu0 0
      %1308 = vmatprep.subr.bf16.mxu0 0
      %1309 = vmatpush2.bf16.msra.mxu0 0
      %1310 = vmatprep.subr.bf16.mxu0 0
      %1311 = vmatpush2.bf16.msra.mxu0 0
      %1312 = vmatprep.subr.bf16.mxu0 0
      %1313 = vmatpush2.bf16.msra.mxu0 0
      %1314 = vmatprep.subr.bf16.mxu0 0
      %1315 = vmatpush2.bf16.msra.mxu0 0
      %1316 = vmatprep.subr.bf16.mxu0 0
      %1317 = vmatpush2.bf16.msra.mxu0 0
      %1318 = vmatprep.mubr.bf16.mxu0 0
      %1319 = vmatmul.mubr.bf16.gmra.mxu0 %v1284
      %v1320 = vpop.f32.mrf.mxu0
      %v1321 = vadd.f32 %v1256, %v1320
      %v1322 = vpop.f32.mrf.mxu0
      %v1323 = vpop.f32.mrf.mxu0
      %v1324 = vadd.f32 %v1256, %v1323
      %v1325 = vpop.f32.mrf.mxu0
      %1326 = vdwg.mxu0
      %v1327 = vadd.f32 %v1125, %v1321
      %v1328 = vadd.f32 %v1126, %v1324
      %1329 = vst.msk [vmem:[%s527] sm:$0xff] %vm1081, %v1327
      %1330 = vst.msk [vmem:[%s527 + $0x8] sm:$0xff] %vm1081, %v1328
      %s1331 = smul.u32 2, %s28
      %p1332 = scmp.lt.s32.totalorder %s27, 1
      %s1333 = scalar_select %p1332, %s27, 1
      %p1334 = scmp.lt.s32.totalorder %s1331, 1
      %s1335 = scalar_select %p1334, %s1331, 1
      %s1336 = smul.addr %s1333, 2
      %s1337 = sadd.s32 %s1335, %s1336
      %s1338 = smul.addr %s1337, 8
      %s1339 = scalar_lea.vmem %s12, %s1338
      // Predicated region
      $region69: #{transformer_encoder_forward.5} parent=67 // pred_check
        %p1340 = pneg %p331
      $region70: #{transformer_encoder_forward.5} parent=67 // pred_check_branch
        %1342 = sbr.rel (%p1340) target = $region72
      $region71: #{transformer_encoder_forward.5} parent=67 // pred_region
        %s1343 = smul.u32 2, %s28
      $region72: #{transformer_encoder_forward.5} parent=67 // pred_fallthru
        _
    $region68: #{transformer_encoder_forward.5} parent=5 // pred_fallthru
      _
    %p1344 = scmp.le.s32.totalorder 2, %s18
    // Predicated region
    $region73: #{transformer_encoder_forward.5} parent=5 // pred_check
      %p1345 = pneg %p1344
    $region74: #{transformer_encoder_forward.5} parent=5 // pred_check_branch
      %1347 = sbr.rel (%p1345) target = $region76
    $region75: #{transformer_encoder_forward.5} parent=5 // pred_region
      %s1348 = ssub.s32 %s18, 2
      // Predicated region
      $region77: #{transformer_encoder_forward.5} parent=75 // pred_check
        %p1349 = pneg %p337
      $region78: #{transformer_encoder_forward.5} parent=75 // pred_check_branch
        %1351 = sbr.rel (%p1349) target = $region80
      $region79: #{transformer_encoder_forward.5} parent=75 // pred_region
        %s1352 = smul.u32 2, %s30
        %p1353 = scmp.lt.s32.totalorder %s29, 1
        %s1354 = scalar_select %p1353, %s29, 1
        %p1355 = scmp.lt.s32.totalorder %s1352, 1
        %s1356 = scalar_select %p1355, %s1352, 1
        %s1357 = smul.addr %s1354, 2
        %s1358 = sadd.s32 %s1356, %s1357
        %s1359 = smul.addr %s1358, 8
        %s1360 = scalar_lea.vmem %s12, %s1359
      $region80: #{transformer_encoder_forward.5} parent=75 // pred_fallthru
        _
    $region76: #{transformer_encoder_forward.5} parent=5 // pred_fallthru
      _
  $region6: #{transformer_encoder_forward.5} parent=0 // loop_footer
    %s22 = sadd.s32 1, %s18
  $region7: #{transformer_encoder_forward.5} parent=0 // loop_footer_branch
    %17 = sbr.rel target = $region3
  $region8: #{transformer_encoder_forward.5} parent=0 // loop_exit
    _

// kernel: transformer_encoder_forward.7
$region0: #{transformer_encoder_forward.7}
  #allocation0 [shape = 'u32[]', space=smem, size = 0x4, offset = 0x4, fixed_abs, tag = 'smem constant byte address 0x4 - core index']
  #allocation1 [shape = 'u32[144,128]{1,0:T(1,128)}', space=vmem, size = 0x12000, scoped, tag = 'internal scratch']
  %s0 = inlined_call_operand.vmem [shape: f32[2,16,32], index: 0, kind: input, shape index: {}]
  %s1 = inlined_call_operand.vmem [shape: bf16[2,16,32], index: 1, kind: input, shape index: {}]
  %s2 = inlined_call_operand.vmem [shape: bf16[2,16,32], index: 2, kind: input, shape index: {}]
  %s3 = inlined_call_operand.vmem [shape: bf16[2,16,32], index: 3, kind: input, shape index: {}]
  %s4 = inlined_call_operand.vmem [shape: bf16[32,32], index: 4, kind: input, shape index: {}]
  %s5 = inlined_call_operand.vmem [shape: f32[1,32], index: 5, kind: input, shape index: {}]
  %s6 = inlined_call_operand.vmem [shape: f32[1,32], index: 6, kind: input, shape index: {}]
  %s7 = inlined_call_operand.vmem [shape: f32[1,32], index: 7, kind: input, shape index: {}]
  %s8 = inlined_call_operand.vmem [shape: bf16[32,64], index: 8, kind: input, shape index: {}]
  %s9 = inlined_call_operand.vmem [shape: f32[1,64], index: 9, kind: input, shape index: {}]
  %s10 = inlined_call_operand.vmem [shape: bf16[64,32], index: 10, kind: input, shape index: {}]
  %s11 = inlined_call_operand.vmem [shape: f32[1,32], index: 11, kind: input, shape index: {}]
  %s12 = inlined_call_operand.hbm [shape: f32[2,16,32], index: 12, kind: output, shape index: {}]
  %s13 = sld [smem:[#allocation0]]
  $region81: #{transformer_encoder_forward.7} parent=0
    _
  %s15 = ssub.s32 1, %s13
  %s16 = scalar_select 0, %s15, %s13
  $region1: #{transformer_encoder_forward.7} parent=0
    #allocation2 [shape = 'u8[16384]{0}', space=vmem, size = 0x4000, scoped, tag = 'output window, operand 0']
    #allocation3 [shape = 's32[2]{0}', space=sflag, size = 0x8, scoped, tag = 'scoped memory for transformer_encoder_forward.7']
    %17 = vsyncpa [#allocation3], 0
    %s18 = scalar_lea.sflag [#allocation3], 1
    %19 = vsyncpa %s18, 0
    loop: start=0, step=1, limit=4
    $region2: #{transformer_encoder_forward.7} parent=1 // loop_pre_header
      _
    $region3: #{transformer_encoder_forward.7} parent=1 // loop_header
      %s21 = sphi 0, %s25
      %p22 = scmp.ge.s32.totalorder %s21, 4
      %s28 = sphi 0, %s40
      %s29 = sphi 0, %s36
      %s30 = sphi 0, %s28
      %s31 = sphi 0, %s29
      %s32 = sphi 0, %s30
      %s33 = sphi 0, %s31
      %s45 = sphi 0, %s47
      %s48 = sphi 0, %s45
      %s49 = sphi 0, %s48
      %s65 = sphi 0, %s49
      %s73 = sphi 0, %s75
      %s76 = sphi 0, %s73
      %s77 = sphi 0, %s76
      %s93 = sphi 0, %s77
      %s99 = sphi 0, %s101
      %s102 = sphi 0, %s99
      %s103 = sphi 0, %s102
      %s119 = sphi 0, %s103
      %s125 = sphi 0, %s127
      %s128 = sphi 0, %s125
      %s129 = sphi 0, %s128
      %s145 = sphi 0, %s129
      %s149 = sphi 0, %s149
      %s151 = sphi 0, %s149
      %s152 = sphi 0, %s151
      %s166 = sphi 0, %s152
      %s170 = sphi 0, %s170
      %s172 = sphi 0, %s170
      %s173 = sphi 0, %s172
      %s187 = sphi 0, %s173
      %s191 = sphi 0, %s191
      %s193 = sphi 0, %s191
      %s194 = sphi 0, %s193
      %s208 = sphi 0, %s194
      %s212 = sphi 0, %s212
      %s214 = sphi 0, %s212
      %s215 = sphi 0, %s214
      %s229 = sphi 0, %s215
      %s233 = sphi 0, %s233
      %s235 = sphi 0, %s233
      %s236 = sphi 0, %s235
      %s250 = sphi 0, %s236
      %s254 = sphi 0, %s254
      %s256 = sphi 0, %s254
      %s257 = sphi 0, %s256
      %s271 = sphi 0, %s257
      %s275 = sphi 0, %s275
      %s277 = sphi 0, %s275
      %s278 = sphi 0, %s277
      %s292 = sphi 0, %s278
      %s296 = sphi 0, %s296
      %s298 = sphi 0, %s296
      %s299 = sphi 0, %s298
      %s313 = sphi 0, %s299
      %s321 = sphi 0, %s323
      %s324 = sphi 0, %s321
      %s325 = sphi 0, %s324
      %s341 = sphi 0, %s325
    $region4: #{transformer_encoder_forward.7} parent=1 // loop_header_branch
      %24 = sbr.rel (%p22) target = $region8
    $region5: #{transformer_encoder_forward.7} parent=1 // loop_body
      %s26 = ssub.s32 %s21, 1
      %s27 = ssub.s32 %s21, 2
      %s34 = sadd.s32 1, %s29
      %p35 = scmp.ge.s32.totalorder %s34, 1
      %s36 = scalar_select %p35, 0, %s34
      %s37 = sadd.s32 1, %s28
      %s38 = scalar_select %p35, %s37, %s28
      %p39 = scmp.ge.s32.totalorder %s38, 2
      %s40 = scalar_select %p39, 0, %s38
      %s41 = ssub.s32 %s28, %s40
      %s42 = ssub.s32 %s29, %s36
      %s43 = sor.u32 %s41, %s42
      %p44 = scmp.eq.s32.totalorder %s43, 0
      %s46 = sadd.s32 %s45, 1
      %s47 = scalar_select %p44, %s45, %s46
      %p50 = pneg %p44
      %p51 = scmp.eq.s32.totalorder %s21, 1
      %p52 = por %p50, %p51
      %p53 = scmp.ne.s32.totalorder %s45, %s48
      %p54 = scmp.eq.s32.totalorder %s21, 0
      %p55 = por %p53, %p54
      %p56 = scmp.ne.s32.totalorder %s45, %s48
      %p57 = scmp.eq.s32.totalorder %s26, 1
      %p58 = por %p56, %p57
      %p59 = scmp.ne.s32.totalorder %s48, %s49
      %p60 = scmp.eq.s32.totalorder %s26, 0
      %p61 = por %p59, %p60
      %p62 = scmp.ne.s32.totalorder %s48, %s49
      %p63 = scmp.eq.s32.totalorder %s27, 1
      %p64 = por %p62, %p63
      %p66 = scmp.ne.s32.totalorder %s49, %s65
      %p67 = scmp.eq.s32.totalorder %s27, 0
      %p68 = por %p66, %p67
      %s69 = ssub.s32 %s28, %s40
      %s70 = ssub.s32 %s29, %s36
      %s71 = sor.u32 %s69, %s70
      %p72 = scmp.eq.s32.totalorder %s71, 0
      %s74 = sadd.s32 %s73, 1
      %s75 = scalar_select %p72, %s73, %s74
      %p78 = pneg %p72
      %p79 = scmp.eq.s32.totalorder %s21, 1
      %p80 = por %p78, %p79
      %p81 = scmp.ne.s32.totalorder %s73, %s76
      %p82 = scmp.eq.s32.totalorder %s21, 0
      %p83 = por %p81, %p82
      %p84 = scmp.ne.s32.totalorder %s73, %s76
      %p85 = scmp.eq.s32.totalorder %s26, 1
      %p86 = por %p84, %p85
      %p87 = scmp.ne.s32.totalorder %s76, %s77
      %p88 = scmp.eq.s32.totalorder %s26, 0
      %p89 = por %p87, %p88
      %p90 = scmp.ne.s32.totalorder %s76, %s77
      %p91 = scmp.eq.s32.totalorder %s27, 1
      %p92 = por %p90, %p91
      %p94 = scmp.ne.s32.totalorder %s77, %s93
      %p95 = scmp.eq.s32.totalorder %s27, 0
      %p96 = por %p94, %p95
      %s97 = ssub.s32 %s28, %s40
      %p98 = scmp.eq.s32.totalorder %s97, 0
      %s100 = sadd.s32 %s99, 1
      %s101 = scalar_select %p98, %s99, %s100
      %p104 = pneg %p98
      %p105 = scmp.eq.s32.totalorder %s21, 1
      %p106 = por %p104, %p105
      %p107 = scmp.ne.s32.totalorder %s99, %s102
      %p108 = scmp.eq.s32.totalorder %s21, 0
      %p109 = por %p107, %p108
      %p110 = scmp.ne.s32.totalorder %s99, %s102
      %p111 = scmp.eq.s32.totalorder %s26, 1
      %p112 = por %p110, %p111
      %p113 = scmp.ne.s32.totalorder %s102, %s103
      %p114 = scmp.eq.s32.totalorder %s26, 0
      %p115 = por %p113, %p114
      %p116 = scmp.ne.s32.totalorder %s102, %s103
      %p117 = scmp.eq.s32.totalorder %s27, 1
      %p118 = por %p116, %p117
      %p120 = scmp.ne.s32.totalorder %s103, %s119
      %p121 = scmp.eq.s32.totalorder %s27, 0
      %p122 = por %p120, %p121
      %s123 = ssub.s32 %s28, %s40
      %p124 = scmp.eq.s32.totalorder %s123, 0
      %s126 = sadd.s32 %s125, 1
      %s127 = scalar_select %p124, %s125, %s126
      %p130 = pneg %p124
      %p131 = scmp.eq.s32.totalorder %s21, 1
      %p132 = por %p130, %p131
      %p133 = scmp.ne.s32.totalorder %s125, %s128
      %p134 = scmp.eq.s32.totalorder %s21, 0
      %p135 = por %p133, %p134
      %p136 = scmp.ne.s32.totalorder %s125, %s128
      %p137 = scmp.eq.s32.totalorder %s26, 1
      %p138 = por %p136, %p137
      %p139 = scmp.ne.s32.totalorder %s128, %s129
      %p140 = scmp.eq.s32.totalorder %s26, 0
      %p141 = por %p139, %p140
      %p142 = scmp.ne.s32.totalorder %s128, %s129
      %p143 = scmp.eq.s32.totalorder %s27, 1
      %p144 = por %p142, %p143
      %p146 = scmp.ne.s32.totalorder %s129, %s145
      %p147 = scmp.eq.s32.totalorder %s27, 0
      %p148 = por %p146, %p147
      %s150 = sadd.s32 %s149, 1
      %p153 = scmp.eq.s32.totalorder %s21, 1
      %p154 = scmp.ne.s32.totalorder %s149, %s151
      %p155 = scmp.eq.s32.totalorder %s21, 0
      %p156 = por %p154, %p155
      %p157 = scmp.ne.s32.totalorder %s149, %s151
      %p158 = scmp.eq.s32.totalorder %s26, 1
      %p159 = por %p157, %p158
      %p160 = scmp.ne.s32.totalorder %s151, %s152
      %p161 = scmp.eq.s32.totalorder %s26, 0
      %p162 = por %p160, %p161
      %p163 = scmp.ne.s32.totalorder %s151, %s152
      %p164 = scmp.eq.s32.totalorder %s27, 1
      %p165 = por %p163, %p164
      %p167 = scmp.ne.s32.totalorder %s152, %s166
      %p168 = scmp.eq.s32.totalorder %s27, 0
      %p169 = por %p167, %p168
      %s171 = sadd.s32 %s170, 1
      %p174 = scmp.eq.s32.totalorder %s21, 1
      %p175 = scmp.ne.s32.totalorder %s170, %s172
      %p176 = scmp.eq.s32.totalorder %s21, 0
      %p177 = por %p175, %p176
      %p178 = scmp.ne.s32.totalorder %s170, %s172
      %p179 = scmp.eq.s32.totalorder %s26, 1
      %p180 = por %p178, %p179
      %p181 = scmp.ne.s32.totalorder %s172, %s173
      %p182 = scmp.eq.s32.totalorder %s26, 0
      %p183 = por %p181, %p182
      %p184 = scmp.ne.s32.totalorder %s172, %s173
      %p185 = scmp.eq.s32.totalorder %s27, 1
      %p186 = por %p184, %p185
      %p188 = scmp.ne.s32.totalorder %s173, %s187
      %p189 = scmp.eq.s32.totalorder %s27, 0
      %p190 = por %p188, %p189
      %s192 = sadd.s32 %s191, 1
      %p195 = scmp.eq.s32.totalorder %s21, 1
      %p196 = scmp.ne.s32.totalorder %s191, %s193
      %p197 = scmp.eq.s32.totalorder %s21, 0
      %p198 = por %p196, %p197
      %p199 = scmp.ne.s32.totalorder %s191, %s193
      %p200 = scmp.eq.s32.totalorder %s26, 1
      %p201 = por %p199, %p200
      %p202 = scmp.ne.s32.totalorder %s193, %s194
      %p203 = scmp.eq.s32.totalorder %s26, 0
      %p204 = por %p202, %p203
      %p205 = scmp.ne.s32.totalorder %s193, %s194
      %p206 = scmp.eq.s32.totalorder %s27, 1
      %p207 = por %p205, %p206
      %p209 = scmp.ne.s32.totalorder %s194, %s208
      %p210 = scmp.eq.s32.totalorder %s27, 0
      %p211 = por %p209, %p210
      %s213 = sadd.s32 %s212, 1
      %p216 = scmp.eq.s32.totalorder %s21, 1
      %p217 = scmp.ne.s32.totalorder %s212, %s214
      %p218 = scmp.eq.s32.totalorder %s21, 0
      %p219 = por %p217, %p218
      %p220 = scmp.ne.s32.totalorder %s212, %s214
      %p221 = scmp.eq.s32.totalorder %s26, 1
      %p222 = por %p220, %p221
      %p223 = scmp.ne.s32.totalorder %s214, %s215
      %p224 = scmp.eq.s32.totalorder %s26, 0
      %p225 = por %p223, %p224
      %p226 = scmp.ne.s32.totalorder %s214, %s215
      %p227 = scmp.eq.s32.totalorder %s27, 1
      %p228 = por %p226, %p227
      %p230 = scmp.ne.s32.totalorder %s215, %s229
      %p231 = scmp.eq.s32.totalorder %s27, 0
      %p232 = por %p230, %p231
      %s234 = sadd.s32 %s233, 1
      %p237 = scmp.eq.s32.totalorder %s21, 1
      %p238 = scmp.ne.s32.totalorder %s233, %s235
      %p239 = scmp.eq.s32.totalorder %s21, 0
      %p240 = por %p238, %p239
      %p241 = scmp.ne.s32.totalorder %s233, %s235
      %p242 = scmp.eq.s32.totalorder %s26, 1
      %p243 = por %p241, %p242
      %p244 = scmp.ne.s32.totalorder %s235, %s236
      %p245 = scmp.eq.s32.totalorder %s26, 0
      %p246 = por %p244, %p245
      %p247 = scmp.ne.s32.totalorder %s235, %s236
      %p248 = scmp.eq.s32.totalorder %s27, 1
      %p249 = por %p247, %p248
      %p251 = scmp.ne.s32.totalorder %s236, %s250
      %p252 = scmp.eq.s32.totalorder %s27, 0
      %p253 = por %p251, %p252
      %s255 = sadd.s32 %s254, 1
      %p258 = scmp.eq.s32.totalorder %s21, 1
      %p259 = scmp.ne.s32.totalorder %s254, %s256
      %p260 = scmp.eq.s32.totalorder %s21, 0
      %p261 = por %p259, %p260
      %p262 = scmp.ne.s32.totalorder %s254, %s256
      %p263 = scmp.eq.s32.totalorder %s26, 1
      %p264 = por %p262, %p263
      %p265 = scmp.ne.s32.totalorder %s256, %s257
      %p266 = scmp.eq.s32.totalorder %s26, 0
      %p267 = por %p265, %p266
      %p268 = scmp.ne.s32.totalorder %s256, %s257
      %p269 = scmp.eq.s32.totalorder %s27, 1
      %p270 = por %p268, %p269
      %p272 = scmp.ne.s32.totalorder %s257, %s271
      %p273 = scmp.eq.s32.totalorder %s27, 0
      %p274 = por %p272, %p273
      %s276 = sadd.s32 %s275, 1
      %p279 = scmp.eq.s32.totalorder %s21, 1
      %p280 = scmp.ne.s32.totalorder %s275, %s277
      %p281 = scmp.eq.s32.totalorder %s21, 0
      %p282 = por %p280, %p281
      %p283 = scmp.ne.s32.totalorder %s275, %s277
      %p284 = scmp.eq.s32.totalorder %s26, 1
      %p285 = por %p283, %p284
      %p286 = scmp.ne.s32.totalorder %s277, %s278
      %p287 = scmp.eq.s32.totalorder %s26, 0
      %p288 = por %p286, %p287
      %p289 = scmp.ne.s32.totalorder %s277, %s278
      %p290 = scmp.eq.s32.totalorder %s27, 1
      %p291 = por %p289, %p290
      %p293 = scmp.ne.s32.totalorder %s278, %s292
      %p294 = scmp.eq.s32.totalorder %s27, 0
      %p295 = por %p293, %p294
      %s297 = sadd.s32 %s296, 1
      %p300 = scmp.eq.s32.totalorder %s21, 1
      %p301 = scmp.ne.s32.totalorder %s296, %s298
      %p302 = scmp.eq.s32.totalorder %s21, 0
      %p303 = por %p301, %p302
      %p304 = scmp.ne.s32.totalorder %s296, %s298
      %p305 = scmp.eq.s32.totalorder %s26, 1
      %p306 = por %p304, %p305
      %p307 = scmp.ne.s32.totalorder %s298, %s299
      %p308 = scmp.eq.s32.totalorder %s26, 0
      %p309 = por %p307, %p308
      %p310 = scmp.ne.s32.totalorder %s298, %s299
      %p311 = scmp.eq.s32.totalorder %s27, 1
      %p312 = por %p310, %p311
      %p314 = scmp.ne.s32.totalorder %s299, %s313
      %p315 = scmp.eq.s32.totalorder %s27, 0
      %p316 = por %p314, %p315
      %s317 = ssub.s32 %s28, %s40
      %s318 = ssub.s32 %s29, %s36
      %s319 = sor.u32 %s317, %s318
      %p320 = scmp.eq.s32.totalorder %s319, 0
      %s322 = sadd.s32 %s321, 1
      %s323 = scalar_select %p320, %s321, %s322
      %p326 = pneg %p320
      %p327 = scmp.eq.s32.totalorder %s21, 1
      %p328 = por %p326, %p327
      %p329 = scmp.ne.s32.totalorder %s321, %s324
      %p330 = scmp.eq.s32.totalorder %s21, 0
      %p331 = por %p329, %p330
      %p332 = scmp.ne.s32.totalorder %s321, %s324
      %p333 = scmp.eq.s32.totalorder %s26, 1
      %p334 = por %p332, %p333
      %p335 = scmp.ne.s32.totalorder %s324, %s325
      %p336 = scmp.eq.s32.totalorder %s26, 0
      %p337 = por %p335, %p336
      %p338 = scmp.ne.s32.totalorder %s324, %s325
      %p339 = scmp.eq.s32.totalorder %s27, 1
      %p340 = por %p338, %p339
      %p342 = scmp.ne.s32.totalorder %s325, %s341
      %p343 = scmp.eq.s32.totalorder %s27, 0
      %p344 = por %p342, %p343
      %p345 = scmp.le.s32.totalorder 1, %s21
      %p346 = scmp.lt.s32.totalorder %s21, 3
      %p347 = pnand %p345, %p346
      %p348 = pneg %p347
      // Predicated region
      $region9: #{transformer_encoder_forward.7} parent=5 // pred_check
        _
      $region10: #{transformer_encoder_forward.7} parent=5 // pred_check_branch
        %350 = sbr.rel (%p347) target = $region12
      $region11: #{transformer_encoder_forward.7} parent=5 // pred_region
        %s351 = ssub.s32 %s21, 1
        // Predicated region
        $region13: #{transformer_encoder_forward.7} parent=11 // pred_check
          %p352 = pneg %p115
        $region14: #{transformer_encoder_forward.7} parent=11 // pred_check_branch
          %354 = sbr.rel (%p352) target = $region16
        $region15: #{transformer_encoder_forward.7} parent=11 // pred_region
          %p355 = scmp.lt.s32.totalorder %s30, 1
          %s356 = scalar_select %p355, %s30, 1
          %s357 = smul.addr %s356, 2
          %s358 = smul.addr %s357, 4
          %s359 = scalar_lea.vmem %s2, %s358
        $region16: #{transformer_encoder_forward.7} parent=11 // pred_fallthru
          _
        // Predicated region
        $region17: #{transformer_encoder_forward.7} parent=11 // pred_check
          %p360 = pneg %p141
        $region18: #{transformer_encoder_forward.7} parent=11 // pred_check_branch
          %362 = sbr.rel (%p360) target = $region20
        $region19: #{transformer_encoder_forward.7} parent=11 // pred_region
          %p363 = scmp.lt.s32.totalorder %s30, 1
          %s364 = scalar_select %p363, %s30, 1
          %s365 = smul.addr %s364, 2
          %s366 = smul.addr %s365, 4
          %s367 = scalar_lea.vmem %s3, %s366
        $region20: #{transformer_encoder_forward.7} parent=11 // pred_fallthru
          _
        // Predicated region
        $region21: #{transformer_encoder_forward.7} parent=11 // pred_check
          %p368 = pneg %p162
        $region22: #{transformer_encoder_forward.7} parent=11 // pred_check_branch
          %370 = sbr.rel (%p368) target = $region24
        $region23: #{transformer_encoder_forward.7} parent=11 // pred_region
          _
        $region24: #{transformer_encoder_forward.7} parent=11 // pred_fallthru
          _
        // Predicated region
        $region25: #{transformer_encoder_forward.7} parent=11 // pred_check
          %p371 = pneg %p183
        $region26: #{transformer_encoder_forward.7} parent=11 // pred_check_branch
          %373 = sbr.rel (%p371) target = $region28
        $region27: #{transformer_encoder_forward.7} parent=11 // pred_region
          _
        $region28: #{transformer_encoder_forward.7} parent=11 // pred_fallthru
          _
        // Predicated region
        $region29: #{transformer_encoder_forward.7} parent=11 // pred_check
          %p374 = pneg %p204
        $region30: #{transformer_encoder_forward.7} parent=11 // pred_check_branch
          %376 = sbr.rel (%p374) target = $region32
        $region31: #{transformer_encoder_forward.7} parent=11 // pred_region
          _
        $region32: #{transformer_encoder_forward.7} parent=11 // pred_fallthru
          _
        // Predicated region
        $region33: #{transformer_encoder_forward.7} parent=11 // pred_check
          %p377 = pneg %p225
        $region34: #{transformer_encoder_forward.7} parent=11 // pred_check_branch
          %379 = sbr.rel (%p377) target = $region36
        $region35: #{transformer_encoder_forward.7} parent=11 // pred_region
          _
        $region36: #{transformer_encoder_forward.7} parent=11 // pred_fallthru
          _
        // Predicated region
        $region37: #{transformer_encoder_forward.7} parent=11 // pred_check
          %p380 = pneg %p246
        $region38: #{transformer_encoder_forward.7} parent=11 // pred_check_branch
          %382 = sbr.rel (%p380) target = $region40
        $region39: #{transformer_encoder_forward.7} parent=11 // pred_region
          _
        $region40: #{transformer_encoder_forward.7} parent=11 // pred_fallthru
          _
        // Predicated region
        $region41: #{transformer_encoder_forward.7} parent=11 // pred_check
          %p383 = pneg %p267
        $region42: #{transformer_encoder_forward.7} parent=11 // pred_check_branch
          %385 = sbr.rel (%p383) target = $region44
        $region43: #{transformer_encoder_forward.7} parent=11 // pred_region
          _
        $region44: #{transformer_encoder_forward.7} parent=11 // pred_fallthru
          _
        // Predicated region
        $region45: #{transformer_encoder_forward.7} parent=11 // pred_check
          %p386 = pneg %p288
        $region46: #{transformer_encoder_forward.7} parent=11 // pred_check_branch
          %388 = sbr.rel (%p386) target = $region48
        $region47: #{transformer_encoder_forward.7} parent=11 // pred_region
          _
        $region48: #{transformer_encoder_forward.7} parent=11 // pred_fallthru
          _
        // Predicated region
        $region49: #{transformer_encoder_forward.7} parent=11 // pred_check
          %p389 = pneg %p309
        $region50: #{transformer_encoder_forward.7} parent=11 // pred_check_branch
          %391 = sbr.rel (%p389) target = $region52
        $region51: #{transformer_encoder_forward.7} parent=11 // pred_region
          _
        $region52: #{transformer_encoder_forward.7} parent=11 // pred_fallthru
          _
      $region12: #{transformer_encoder_forward.7} parent=5 // pred_fallthru
        _
      %p392 = scmp.lt.s32.totalorder %s21, 2
      // Predicated region
      $region53: #{transformer_encoder_forward.7} parent=5 // pred_check
        %p393 = pneg %p392
      $region54: #{transformer_encoder_forward.7} parent=5 // pred_check_branch
        %395 = sbr.rel (%p393) target = $region56
      $region55: #{transformer_encoder_forward.7} parent=5 // pred_region
        // Predicated region
        $region57: #{transformer_encoder_forward.7} parent=55 // pred_check
          %p396 = pneg %p55
        $region58: #{transformer_encoder_forward.7} parent=55 // pred_check_branch
          %398 = sbr.rel (%p396) target = $region60
        $region59: #{transformer_encoder_forward.7} parent=55 // pred_region
          %s399 = smul.u32 2, %s29
          %p400 = scmp.lt.s32.totalorder %s28, 1
          %s401 = scalar_select %p400, %s28, 1
          %p402 = scmp.lt.s32.totalorder %s399, 1
          %s403 = scalar_select %p402, %s399, 1
          %s404 = smul.addr %s401, 2
          %s405 = sadd.s32 %s403, %s404
          %s406 = smul.addr %s405, 8
          %s407 = scalar_lea.vmem %s0, %s406
          %s408 = smul.u32 2, %s29
        $region60: #{transformer_encoder_forward.7} parent=55 // pred_fallthru
          _
        // Predicated region
        $region61: #{transformer_encoder_forward.7} parent=55 // pred_check
          %p409 = pneg %p83
        $region62: #{transformer_encoder_forward.7} parent=55 // pred_check_branch
          %411 = sbr.rel (%p409) target = $region64
        $region63: #{transformer_encoder_forward.7} parent=55 // pred_region
          %s412 = smul.u32 2, %s29
          %p413 = scmp.lt.s32.totalorder %s28, 1
          %s414 = scalar_select %p413, %s28, 1
          %p415 = scmp.lt.s32.totalorder %s412, 1
          %s416 = scalar_select %p415, %s412, 1
          %s417 = smul.addr %s414, 2
          %s418 = sadd.s32 %s416, %s417
          %s419 = smul.addr %s418, 4
          %s420 = scalar_lea.vmem %s1, %s419
          %s421 = smul.u32 2, %s29
        $region64: #{transformer_encoder_forward.7} parent=55 // pred_fallthru
          _
      $region56: #{transformer_encoder_forward.7} parent=5 // pred_fallthru
        _
      %p422 = scmp.le.s32.totalorder 1, %s21
      %p423 = scmp.lt.s32.totalorder %s21, 3
      %p424 = pnand %p422, %p423
      %p425 = pneg %p424
      // Predicated region
      $region65: #{transformer_encoder_forward.7} parent=5 // pred_check
        _
      $region66: #{transformer_encoder_forward.7} parent=5 // pred_check_branch
        %427 = sbr.rel (%p424) target = $region68
      $region67: #{transformer_encoder_forward.7} parent=5 // pred_region
        %s428 = ssub.s32 %s21, 1
        %s429 = smul.u32 2, %s31
        %p430 = scmp.lt.s32.totalorder %s30, 1
        %s431 = scalar_select %p430, %s30, 1
        %p432 = scmp.lt.s32.totalorder %s429, 1
        %s433 = scalar_select %p432, %s429, 1
        %s434 = smul.addr %s431, 2
        %s435 = sadd.s32 %s433, %s434
        %s436 = smul.addr %s435, 8
        %s437 = scalar_lea.vmem %s0, %s436
        %p438 = pneg %p61
        %p439 = pneg %p58
        %s440 = smul.u32 2, %s31
        %p441 = scmp.lt.s32.totalorder %s30, 1
        %s442 = scalar_select %p441, %s30, 1
        %p443 = scmp.lt.s32.totalorder %s440, 1
        %s444 = scalar_select %p443, %s440, 1
        %s445 = smul.addr %s442, 2
        %s446 = sadd.s32 %s444, %s445
        %s447 = smul.addr %s446, 4
        %s448 = scalar_lea.vmem %s1, %s447
        %p449 = pneg %p89
        %p450 = pneg %p86
        %p451 = scmp.lt.s32.totalorder %s30, 1
        %s452 = scalar_select %p451, %s30, 1
        %s453 = smul.addr %s452, 2
        %s454 = smul.addr %s453, 4
        %s455 = scalar_lea.vmem %s2, %s454
        %p456 = pneg %p115
        %p457 = pneg %p112
        %p458 = scmp.lt.s32.totalorder %s30, 1
        %s459 = scalar_select %p458, %s30, 1
        %s460 = smul.addr %s459, 2
        %s461 = smul.addr %s460, 4
        %s462 = scalar_lea.vmem %s3, %s461
        %p463 = pneg %p141
        %p464 = pneg %p138
        %p465 = pneg %p162
        %p466 = pneg %p159
        %p467 = pneg %p183
        %p468 = pneg %p180
        %p469 = pneg %p204
        %p470 = pneg %p201
        %p471 = pneg %p225
        %p472 = pneg %p222
        %p473 = pneg %p246
        %p474 = pneg %p243
        %p475 = pneg %p267
        %p476 = pneg %p264
        %p477 = pneg %p288
        %p478 = pneg %p285
        %p479 = pneg %p309
        %p480 = pneg %p306
        %p481 = pneg %p337
        %p482 = pneg %p334
        %s483 = sand.u32 %s324, 1
        %s484 = scalar_lea.sflag [#allocation3], %s483
        %s485 = sand.u32 %s324, 1
        %s486 = smul.addr %s485, 16
        %s487 = scalar_lea.vmem [#allocation2], %s486
        %s488 = smul.u32 2, %s31
        %p489 = scmp.lt.s32.totalorder %s30, 1
        %s490 = scalar_select %p489, %s30, 1
        %p491 = scmp.lt.s32.totalorder %s488, 1
        %s492 = scalar_select %p491, %s488, 1
        %s493 = smul.addr %s490, 2
        %s494 = sadd.s32 %s492, %s493
        %s495 = smul.addr %s494, 8
        %s496 = scalar_lea.vmem %s0, %s495
        %s497 = smul.u32 2, %s31
        %s498 = smul.u32 2, %s31
        %p499 = scmp.lt.s32.totalorder %s30, 1
        %s500 = scalar_select %p499, %s30, 1
        %p501 = scmp.lt.s32.totalorder %s498, 1
        %s502 = scalar_select %p501, %s498, 1
        %s503 = smul.addr %s500, 2
        %s504 = sadd.s32 %s502, %s503
        %s505 = smul.addr %s504, 4
        %s506 = scalar_lea.vmem %s1, %s505
        %s507 = smul.u32 2, %s31
        %p508 = scmp.lt.s32.totalorder %s30, 1
        %s509 = scalar_select %p508, %s30, 1
        %s510 = smul.addr %s509, 2
        %s511 = smul.addr %s510, 4
        %s512 = scalar_lea.vmem %s2, %s511
        %p513 = scmp.lt.s32.totalorder %s30, 1
        %s514 = scalar_select %p513, %s30, 1
        %s515 = smul.addr %s514, 2
        %s516 = smul.addr %s515, 4
        %s517 = scalar_lea.vmem %s3, %s516
        %s518 = smul.u32 2, %s31
        %v520 = vld [vmem:[%s496] sm:$0xff]
        %v521 = vld [vmem:[%s496 + $0x8] sm:$0xff]
        %v522 = vld [vmem:[%s506] sm:$0xf]
        %v523 = vld [vmem:[%s506 + $0x4] sm:$0xf]
        %v524 = vld [vmem:[%s512] sm:$0xf]
        %v525 = vld [vmem:[%s512 + $0x4] sm:$0xf]
        %v526 = vld [vmem:[%s517] sm:$0xf]
        %v527 = vld [vmem:[%s517 + $0x4] sm:$0xf]
        %v530 = vunpack.c.l.b16 %v522
        %v531 = vunpack.c.l.b16 %v523
        %v532 = vpack.c.b16 %v531, %v530
        %v535 = vunpack.c.l.b16 %v524
        %v536 = vunpack.c.l.b16 %v525
        %v537 = vpack.c.b16 %v536, %v535
        %vm538 = vcmask 64512
        %v540 = vsel %vm538, %v532, 0
        %v543 = vsel %vm538, %v537, 0
        %545 = vmatprep.subr.bf16.mxu0 0
        %546 = vmatpush1.bf16.xpose.msra.mxu0 0
        %547 = vmatprep.subr.bf16.mxu0 0
        %548 = vmatpush1.bf16.xpose.msra.mxu0 0
        %549 = vmatprep.subr.bf16.mxu0 0
        %550 = vmatpush1.bf16.xpose.msra.mxu0 0
        %551 = vmatprep.subr.bf16.mxu0 0
        %552 = vmatpush1.bf16.xpose.msra.mxu0 0
        %553 = vmatprep.subr.bf16.mxu0 0
        %554 = vmatpush1.bf16.xpose.msra.mxu0 0
        %555 = vmatprep.subr.bf16.mxu0 0
        %556 = vmatpush1.bf16.xpose.msra.mxu0 0
        %557 = vmatprep.subr.bf16.mxu0 0
        %558 = vmatpush1.bf16.xpose.msra.mxu0 0
        %559 = vmatprep.subr.bf16.mxu0 0
        %560 = vmatpush1.bf16.xpose.msra.mxu0 %v543
        %561 = vmatprep.subr.bf16.mxu0 0
        %562 = vmatpush2.bf16.xpose.msra.mxu0 0
        %563 = vmatprep.subr.bf16.mxu0 0
        %564 = vmatpush2.bf16.xpose.msra.mxu0 0
        %565 = vmatprep.subr.bf16.mxu0 0
        %566 = vmatpush2.bf16.xpose.msra.mxu0 0
        %567 = vmatprep.subr.bf16.mxu0 0
        %568 = vmatpush2.bf16.xpose.msra.mxu0 0
        %569 = vmatprep.subr.bf16.mxu0 0
        %570 = vmatpush2.bf16.xpose.msra.mxu0 0
        %571 = vmatprep.subr.bf16.mxu0 0
        %572 = vmatpush2.bf16.xpose.msra.mxu0 0
        %573 = vmatprep.subr.bf16.mxu0 0
        %574 = vmatpush2.bf16.xpose.msra.mxu0 0
        %575 = vmatprep.subr.bf16.mxu0 0
        %576 = vmatpush2.bf16.xpose.msra.mxu0 0
        %577 = vmatprep.mubr.bf16.mxu0 0
        %578 = vmatmul.mubr.bf16.gmra.mxu0 %v540
        %v579 = vpop.f32.mrf.mxu0
        %v580 = vadd.f32 0.0, %v579
        %v581 = vpop.f32.mrf.mxu0
        %v582 = vpop.f32.mrf.mxu0
        %v583 = vadd.f32 0.0, %v582
        %v584 = vpop.f32.mrf.mxu0
        %585 = vdwg.mxu0
        %vm586 = vcmask 130048
        %v587 = vsel %vm586, %v580, -inf
        %588 = vmax.xlane.f32.xlu0 %v587
        %v589 = vpop.xlane.xlu0 %588
        %v590 = vsel %vm586, %v583, -inf
        %591 = vmax.xlane.f32.xlu0 %v590
        %v592 = vpop.xlane.xlu0 %591
        %v593 = vsub.f32 %v580, %v589
        %v594 = vsub.f32 %v583, %v592
        %v595 = vpack.c.bf16 %v594, %v593
        %v597 = vmul.bf16 %v595, 1069105081
        %v598 = vpow.bf16.pop %v597
        %v599 = vunpack.c.l.bf16 %v598
        %v600 = vunpack.c.h.bf16 %v598
        %v601 = vsel %vm586, %v599, 0.0
        %602 = vadd.xlane.f32.xlu0 %v601
        %v603 = vpop.xlane.xlu0 %602
        %v604 = vsel %vm586, %v600, 0.0
        %605 = vadd.xlane.f32.xlu0 %v604
        %v606 = vpop.xlane.xlu0 %605
        %v609 = vunpack.c.l.b16 %v526
        %v610 = vunpack.c.l.b16 %v527
        %v611 = vpack.c.b16 %v610, %v609
        %v614 = vsel %vm586, %v598, 0
        %616 = vmatprep.subr.bf16.mxu0 0
        %617 = vmatpush1.bf16.msra.mxu0 0
        %618 = vmatprep.subr.bf16.mxu0 0
        %619 = vmatpush1.bf16.msra.mxu0 0
        %620 = vmatprep.subr.bf16.mxu0 0
        %621 = vmatpush1.bf16.msra.mxu0 0
        %622 = vmatprep.subr.bf16.mxu0 0
        %623 = vmatpush1.bf16.msra.mxu0 0
        %624 = vmatprep.subr.bf16.mxu0 0
        %625 = vmatpush1.bf16.msra.mxu0 0
        %626 = vmatprep.subr.bf16.mxu0 0
        %627 = vmatpush1.bf16.msra.mxu0 0
        %628 = vmatprep.subr.bf16.mxu0 0
        %629 = vmatpush1.bf16.msra.mxu0 0
        %630 = vmatprep.subr.bf16.mxu0 0
        %631 = vmatpush1.bf16.msra.mxu0 %v611
        %632 = vmatprep.subr.bf16.mxu0 0
        %633 = vmatpush2.bf16.msra.mxu0 0
        %634 = vmatprep.subr.bf16.mxu0 0
        %635 = vmatpush2.bf16.msra.mxu0 0
        %636 = vmatprep.subr.bf16.mxu0 0
        %637 = vmatpush2.bf16.msra.mxu0 0
        %638 = vmatprep.subr.bf16.mxu0 0
        %639 = vmatpush2.bf16.msra.mxu0 0
        %640 = vmatprep.subr.bf16.mxu0 0
        %641 = vmatpush2.bf16.msra.mxu0 0
        %642 = vmatprep.subr.bf16.mxu0 0
        %643 = vmatpush2.bf16.msra.mxu0 0
        %644 = vmatprep.subr.bf16.mxu0 0
        %645 = vmatpush2.bf16.msra.mxu0 0
        %646 = vmatprep.subr.bf16.mxu0 0
        %647 = vmatpush2.bf16.msra.mxu0 0
        %648 = vmatprep.mubr.bf16.mxu0 0
        %649 = vmatmul.mubr.bf16.gmra.mxu0 %v614
        %v650 = vpop.f32.mrf.mxu0
        %v651 = vadd.f32 0.0, %v650
        %v652 = vpop.f32.mrf.mxu0
        %v653 = vpop.f32.mrf.mxu0
        %v654 = vadd.f32 0.0, %v653
        %v655 = vpop.f32.mrf.mxu0
        %656 = vdwg.mxu0
        %v657 = vrcp.pop %v603
        %v658 = vrcp.pop %v606
        %v659 = vmul.f32 %v651, %v657
        %v660 = vmul.f32 %v654, %v658
        %v661 = vpack.c.bf16 %v660, %v659
        %662 = vrot.lane.b32.xlu0 %v532, 120
        %v663 = vpop.permute.xlu0 %662
        %664 = vrot.lane.b32.xlu0 %v537, 120
        %v665 = vpop.permute.xlu0 %664
        %v667 = vsel %vm538, %v663, 0
        %v670 = vsel %vm538, %v665, 0
        %672 = vmatprep.subr.bf16.mxu0 0
        %673 = vmatpush1.bf16.xpose.msra.mxu0 0
        %674 = vmatprep.subr.bf16.mxu0 0
        %675 = vmatpush1.bf16.xpose.msra.mxu0 0
        %676 = vmatprep.subr.bf16.mxu0 0
        %677 = vmatpush1.bf16.xpose.msra.mxu0 0
        %678 = vmatprep.subr.bf16.mxu0 0
        %679 = vmatpush1.bf16.xpose.msra.mxu0 0
        %680 = vmatprep.subr.bf16.mxu0 0
        %681 = vmatpush1.bf16.xpose.msra.mxu0 0
        %682 = vmatprep.subr.bf16.mxu0 0
        %683 = vmatpush1.bf16.xpose.msra.mxu0 0
        %684 = vmatprep.subr.bf16.mxu0 0
        %685 = vmatpush1.bf16.xpose.msra.mxu0 0
        %686 = vmatprep.subr.bf16.mxu0 0
        %687 = vmatpush1.bf16.xpose.msra.mxu0 %v670
        %688 = vmatprep.subr.bf16.mxu0 0
        %689 = vmatpush2.bf16.xpose.msra.mxu0 0
        %690 = vmatprep.subr.bf16.mxu0 0
        %691 = vmatpush2.bf16.xpose.msra.mxu0 0
        %692 = vmatprep.subr.bf16.mxu0 0
        %693 = vmatpush2.bf16.xpose.msra.mxu0 0
        %694 = vmatprep.subr.bf16.mxu0 0
        %695 = vmatpush2.bf16.xpose.msra.mxu0 0
        %696 = vmatprep.subr.bf16.mxu0 0
        %697 = vmatpush2.bf16.xpose.msra.mxu0 0
        %698 = vmatprep.subr.bf16.mxu0 0
        %699 = vmatpush2.bf16.xpose.msra.mxu0 0
        %700 = vmatprep.subr.bf16.mxu0 0
        %701 = vmatpush2.bf16.xpose.msra.mxu0 0
        %702 = vmatprep.subr.bf16.mxu0 0
        %703 = vmatpush2.bf16.xpose.msra.mxu0 0
        %704 = vmatprep.mubr.bf16.mxu0 0
        %705 = vmatmul.mubr.bf16.gmra.mxu0 %v667
        %v706 = vpop.f32.mrf.mxu0
        %v707 = vadd.f32 0.0, %v706
        %v708 = vpop.f32.mrf.mxu0
        %v709 = vpop.f32.mrf.mxu0
        %v710 = vadd.f32 0.0, %v709
        %v711 = vpop.f32.mrf.mxu0
        %712 = vdwg.mxu0
        %v713 = vsel %vm586, %v707, -inf
        %714 = vmax.xlane.f32.xlu0 %v713
        %v715 = vpop.xlane.xlu0 %714
        %v716 = vsel %vm586, %v710, -inf
        %717 = vmax.xlane.f32.xlu0 %v716
        %v718 = vpop.xlane.xlu0 %717
        %v719 = vsub.f32 %v707, %v715
        %v720 = vsub.f32 %v710, %v718
        %v721 = vpack.c.bf16 %v720, %v719
        %v723 = vmul.bf16 %v721, 1069105081
        %v724 = vpow.bf16.pop %v723
        %v725 = vunpack.c.l.bf16 %v724
        %v726 = vunpack.c.h.bf16 %v724
        %v727 = vsel %vm586, %v725, 0.0
        %728 = vadd.xlane.f32.xlu0 %v727
        %v729 = vpop.xlane.xlu0 %728
        %v730 = vsel %vm586, %v726, 0.0
        %731 = vadd.xlane.f32.xlu0 %v730
        %v732 = vpop.xlane.xlu0 %731
        %733 = vrot.lane.b32.xlu0 %v611, 120
        %v734 = vpop.permute.xlu0 %733
        %v737 = vsel %vm586, %v724, 0
        %739 = vmatprep.subr.bf16.mxu0 0
        %740 = vmatpush1.bf16.msra.mxu0 0
        %741 = vmatprep.subr.bf16.mxu0 0
        %742 = vmatpush1.bf16.msra.mxu0 0
        %743 = vmatprep.subr.bf16.mxu0 0
        %744 = vmatpush1.bf16.msra.mxu0 0
        %745 = vmatprep.subr.bf16.mxu0 0
        %746 = vmatpush1.bf16.msra.mxu0 0
        %747 = vmatprep.subr.bf16.mxu0 0
        %748 = vmatpush1.bf16.msra.mxu0 0
        %749 = vmatprep.subr.bf16.mxu0 0
        %750 = vmatpush1.bf16.msra.mxu0 0
        %751 = vmatprep.subr.bf16.mxu0 0
        %752 = vmatpush1.bf16.msra.mxu0 0
        %753 = vmatprep.subr.bf16.mxu0 0
        %754 = vmatpush1.bf16.msra.mxu0 %v734
        %755 = vmatprep.subr.bf16.mxu0 0
        %756 = vmatpush2.bf16.msra.mxu0 0
        %757 = vmatprep.subr.bf16.mxu0 0
        %758 = vmatpush2.bf16.msra.mxu0 0
        %759 = vmatprep.subr.bf16.mxu0 0
        %760 = vmatpush2.bf16.msra.mxu0 0
        %761 = vmatprep.subr.bf16.mxu0 0
        %762 = vmatpush2.bf16.msra.mxu0 0
        %763 = vmatprep.subr.bf16.mxu0 0
        %764 = vmatpush2.bf16.msra.mxu0 0
        %765 = vmatprep.subr.bf16.mxu0 0
        %766 = vmatpush2.bf16.msra.mxu0 0
        %767 = vmatprep.subr.bf16.mxu0 0
        %768 = vmatpush2.bf16.msra.mxu0 0
        %769 = vmatprep.subr.bf16.mxu0 0
        %770 = vmatpush2.bf16.msra.mxu0 0
        %771 = vmatprep.mubr.bf16.mxu0 0
        %772 = vmatmul.mubr.bf16.gmra.mxu0 %v737
        %v773 = vpop.f32.mrf.mxu0
        %v774 = vadd.f32 0.0, %v773
        %v775 = vpop.f32.mrf.mxu0
        %v776 = vpop.f32.mrf.mxu0
        %v777 = vadd.f32 0.0, %v776
        %v778 = vpop.f32.mrf.mxu0
        %779 = vdwg.mxu0
        %v780 = vrcp.pop %v729
        %v781 = vrcp.pop %v732
        %v782 = vmul.f32 %v774, %v780
        %v783 = vmul.f32 %v777, %v781
        %v784 = vpack.c.bf16 %v783, %v782
        %785 = vrot.lane.b32.xlu0 %v532, 112
        %v786 = vpop.permute.xlu0 %785
        %787 = vrot.lane.b32.xlu0 %v537, 112
        %v788 = vpop.permute.xlu0 %787
        %v790 = vsel %vm538, %v786, 0
        %v793 = vsel %vm538, %v788, 0
        %795 = vmatprep.subr.bf16.mxu0 0
        %796 = vmatpush1.bf16.xpose.msra.mxu0 0
        %797 = vmatprep.subr.bf16.mxu0 0
        %798 = vmatpush1.bf16.xpose.msra.mxu0 0
        %799 = vmatprep.subr.bf16.mxu0 0
        %800 = vmatpush1.bf16.xpose.msra.mxu0 0
        %801 = vmatprep.subr.bf16.mxu0 0
        %802 = vmatpush1.bf16.xpose.msra.mxu0 0
        %803 = vmatprep.subr.bf16.mxu0 0
        %804 = vmatpush1.bf16.xpose.msra.mxu0 0
        %805 = vmatprep.subr.bf16.mxu0 0
        %806 = vmatpush1.bf16.xpose.msra.mxu0 0
        %807 = vmatprep.subr.bf16.mxu0 0
        %808 = vmatpush1.bf16.xpose.msra.mxu0 0
        %809 = vmatprep.subr.bf16.mxu0 0
        %810 = vmatpush1.bf16.xpose.msra.mxu0 %v793
        %811 = vmatprep.subr.bf16.mxu0 0
        %812 = vmatpush2.bf16.xpose.msra.mxu0 0
        %813 = vmatprep.subr.bf16.mxu0 0
        %814 = vmatpush2.bf16.xpose.msra.mxu0 0
        %815 = vmatprep.subr.bf16.mxu0 0
        %816 = vmatpush2.bf16.xpose.msra.mxu0 0
        %817 = vmatprep.subr.bf16.mxu0 0
        %818 = vmatpush2.bf16.xpose.msra.mxu0 0
        %819 = vmatprep.subr.bf16.mxu0 0
        %820 = vmatpush2.bf16.xpose.msra.mxu0 0
        %821 = vmatprep.subr.bf16.mxu0 0
        %822 = vmatpush2.bf16.xpose.msra.mxu0 0
        %823 = vmatprep.subr.bf16.mxu0 0
        %824 = vmatpush2.bf16.xpose.msra.mxu0 0
        %825 = vmatprep.subr.bf16.mxu0 0
        %826 = vmatpush2.bf16.xpose.msra.mxu0 0
        %827 = vmatprep.mubr.bf16.mxu0 0
        %828 = vmatmul.mubr.bf16.gmra.mxu0 %v790
        %v829 = vpop.f32.mrf.mxu0
        %v830 = vadd.f32 0.0, %v829
        %v831 = vpop.f32.mrf.mxu0
        %v832 = vpop.f32.mrf.mxu0
        %v833 = vadd.f32 0.0, %v832
        %v834 = vpop.f32.mrf.mxu0
        %835 = vdwg.mxu0
        %v836 = vsel %vm586, %v830, -inf
        %837 = vmax.xlane.f32.xlu0 %v836
        %v838 = vpop.xlane.xlu0 %837
        %v839 = vsel %vm586, %v833, -inf
        %840 = vmax.xlane.f32.xlu0 %v839
        %v841 = vpop.xlane.xlu0 %840
        %v842 = vsub.f32 %v830, %v838
        %v843 = vsub.f32 %v833, %v841
        %v844 = vpack.c.bf16 %v843, %v842
        %v846 = vmul.bf16 %v844, 1069105081
        %v847 = vpow.bf16.pop %v846
        %v848 = vunpack.c.l.bf16 %v847
        %v849 = vunpack.c.h.bf16 %v847
        %v850 = vsel %vm586, %v848, 0.0
        %851 = vadd.xlane.f32.xlu0 %v850
        %v852 = vpop.xlane.xlu0 %851
        %v853 = vsel %vm586, %v849, 0.0
        %854 = vadd.xlane.f32.xlu0 %v853
        %v855 = vpop.xlane.xlu0 %854
        %856 = vrot.lane.b32.xlu0 %v611, 112
        %v857 = vpop.permute.xlu0 %856
        %v860 = vsel %vm586, %v847, 0
        %862 = vmatprep.subr.bf16.mxu0 0
        %863 = vmatpush1.bf16.msra.mxu0 0
        %864 = vmatprep.subr.bf16.mxu0 0
        %865 = vmatpush1.bf16.msra.mxu0 0
        %866 = vmatprep.subr.bf16.mxu0 0
        %867 = vmatpush1.bf16.msra.mxu0 0
        %868 = vmatprep.subr.bf16.mxu0 0
        %869 = vmatpush1.bf16.msra.mxu0 0
        %870 = vmatprep.subr.bf16.mxu0 0
        %871 = vmatpush1.bf16.msra.mxu0 0
        %872 = vmatprep.subr.bf16.mxu0 0
        %873 = vmatpush1.bf16.msra.mxu0 0
        %874 = vmatprep.subr.bf16.mxu0 0
        %875 = vmatpush1.bf16.msra.mxu0 0
        %876 = vmatprep.subr.bf16.mxu0 0
        %877 = vmatpush1.bf16.msra.mxu0 %v857
        %878 = vmatprep.subr.bf16.mxu0 0
        %879 = vmatpush2.bf16.msra.mxu0 0
        %880 = vmatprep.subr.bf16.mxu0 0
        %881 = vmatpush2.bf16.msra.mxu0 0
        %882 = vmatprep.subr.bf16.mxu0 0
        %883 = vmatpush2.bf16.msra.mxu0 0
        %884 = vmatprep.subr.bf16.mxu0 0
        %885 = vmatpush2.bf16.msra.mxu0 0
        %886 = vmatprep.subr.bf16.mxu0 0
        %887 = vmatpush2.bf16.msra.mxu0 0
        %888 = vmatprep.subr.bf16.mxu0 0
        %889 = vmatpush2.bf16.msra.mxu0 0
        %890 = vmatprep.subr.bf16.mxu0 0
        %891 = vmatpush2.bf16.msra.mxu0 0
        %892 = vmatprep.subr.bf16.mxu0 0
        %893 = vmatpush2.bf16.msra.mxu0 0
        %894 = vmatprep.mubr.bf16.mxu0 0
        %895 = vmatmul.mubr.bf16.gmra.mxu0 %v860
        %v896 = vpop.f32.mrf.mxu0
        %v897 = vadd.f32 0.0, %v896
        %v898 = vpop.f32.mrf.mxu0
        %v899 = vpop.f32.mrf.mxu0
        %v900 = vadd.f32 0.0, %v899
        %v901 = vpop.f32.mrf.mxu0
        %902 = vdwg.mxu0
        %v903 = vrcp.pop %v852
        %v904 = vrcp.pop %v855
        %v905 = vmul.f32 %v897, %v903
        %v906 = vmul.f32 %v900, %v904
        %v907 = vpack.c.bf16 %v906, %v905
        %908 = vrot.lane.b32.xlu0 %v532, 104
        %v909 = vpop.permute.xlu0 %908
        %910 = vrot.lane.b32.xlu0 %v537, 104
        %v911 = vpop.permute.xlu0 %910
        %v913 = vsel %vm538, %v909, 0
        %v916 = vsel %vm538, %v911, 0
        %918 = vmatprep.subr.bf16.mxu0 0
        %919 = vmatpush1.bf16.xpose.msra.mxu0 0
        %920 = vmatprep.subr.bf16.mxu0 0
        %921 = vmatpush1.bf16.xpose.msra.mxu0 0
        %922 = vmatprep.subr.bf16.mxu0 0
        %923 = vmatpush1.bf16.xpose.msra.mxu0 0
        %924 = vmatprep.subr.bf16.mxu0 0
        %925 = vmatpush1.bf16.xpose.msra.mxu0 0
        %926 = vmatprep.subr.bf16.mxu0 0
        %927 = vmatpush1.bf16.xpose.msra.mxu0 0
        %928 = vmatprep.subr.bf16.mxu0 0
        %929 = vmatpush1.bf16.xpose.msra.mxu0 0
        %930 = vmatprep.subr.bf16.mxu0 0
        %931 = vmatpush1.bf16.xpose.msra.mxu0 0
        %932 = vmatprep.subr.bf16.mxu0 0
        %933 = vmatpush1.bf16.xpose.msra.mxu0 %v916
        %934 = vmatprep.subr.bf16.mxu0 0
        %935 = vmatpush2.bf16.xpose.msra.mxu0 0
        %936 = vmatprep.subr.bf16.mxu0 0
        %937 = vmatpush2.bf16.xpose.msra.mxu0 0
        %938 = vmatprep.subr.bf16.mxu0 0
        %939 = vmatpush2.bf16.xpose.msra.mxu0 0
        %940 = vmatprep.subr.bf16.mxu0 0
        %941 = vmatpush2.bf16.xpose.msra.mxu0 0
        %942 = vmatprep.subr.bf16.mxu0 0
        %943 = vmatpush2.bf16.xpose.msra.mxu0 0
        %944 = vmatprep.subr.bf16.mxu0 0
        %945 = vmatpush2.bf16.xpose.msra.mxu0 0
        %946 = vmatprep.subr.bf16.mxu0 0
        %947 = vmatpush2.bf16.xpose.msra.mxu0 0
        %948 = vmatprep.subr.bf16.mxu0 0
        %949 = vmatpush2.bf16.xpose.msra.mxu0 0
        %950 = vmatprep.mubr.bf16.mxu0 0
        %951 = vmatmul.mubr.bf16.gmra.mxu0 %v913
        %v952 = vpop.f32.mrf.mxu0
        %v953 = vadd.f32 0.0, %v952
        %v954 = vpop.f32.mrf.mxu0
        %v955 = vpop.f32.mrf.mxu0
        %v956 = vadd.f32 0.0, %v955
        %v957 = vpop.f32.mrf.mxu0
        %958 = vdwg.mxu0
        %v959 = vsel %vm586, %v953, -inf
        %960 = vmax.xlane.f32.xlu0 %v959
        %v961 = vpop.xlane.xlu0 %960
        %v962 = vsel %vm586, %v956, -inf
        %963 = vmax.xlane.f32.xlu0 %v962
        %v964 = vpop.xlane.xlu0 %963
        %v965 = vsub.f32 %v953, %v961
        %v966 = vsub.f32 %v956, %v964
        %v967 = vpack.c.bf16 %v966, %v965
        %v969 = vmul.bf16 %v967, 1069105081
        %v970 = vpow.bf16.pop %v969
        %v971 = vunpack.c.l.bf16 %v970
        %v972 = vunpack.c.h.bf16 %v970
        %v973 = vsel %vm586, %v971, 0.0
        %974 = vadd.xlane.f32.xlu0 %v973
        %v975 = vpop.xlane.xlu0 %974
        %v976 = vsel %vm586, %v972, 0.0
        %977 = vadd.xlane.f32.xlu0 %v976
        %v978 = vpop.xlane.xlu0 %977
        %979 = vrot.lane.b32.xlu0 %v611, 104
        %v980 = vpop.permute.xlu0 %979
        %v983 = vsel %vm586, %v970, 0
        %985 = vmatprep.subr.bf16.mxu0 0
        %986 = vmatpush1.bf16.msra.mxu0 0
        %987 = vmatprep.subr.bf16.mxu0 0
        %988 = vmatpush1.bf16.msra.mxu0 0
        %989 = vmatprep.subr.bf16.mxu0 0
        %990 = vmatpush1.bf16.msra.mxu0 0
        %991 = vmatprep.subr.bf16.mxu0 0
        %992 = vmatpush1.bf16.msra.mxu0 0
        %993 = vmatprep.subr.bf16.mxu0 0
        %994 = vmatpush1.bf16.msra.mxu0 0
        %995 = vmatprep.subr.bf16.mxu0 0
        %996 = vmatpush1.bf16.msra.mxu0 0
        %997 = vmatprep.subr.bf16.mxu0 0
        %998 = vmatpush1.bf16.msra.mxu0 0
        %999 = vmatprep.subr.bf16.mxu0 0
        %1000 = vmatpush1.bf16.msra.mxu0 %v980
        %1001 = vmatprep.subr.bf16.mxu0 0
        %1002 = vmatpush2.bf16.msra.mxu0 0
        %1003 = vmatprep.subr.bf16.mxu0 0
        %1004 = vmatpush2.bf16.msra.mxu0 0
        %1005 = vmatprep.subr.bf16.mxu0 0
        %1006 = vmatpush2.bf16.msra.mxu0 0
        %1007 = vmatprep.subr.bf16.mxu0 0
        %1008 = vmatpush2.bf16.msra.mxu0 0
        %1009 = vmatprep.subr.bf16.mxu0 0
        %1010 = vmatpush2.bf16.msra.mxu0 0
        %1011 = vmatprep.subr.bf16.mxu0 0
        %1012 = vmatpush2.bf16.msra.mxu0 0
        %1013 = vmatprep.subr.bf16.mxu0 0
        %1014 = vmatpush2.bf16.msra.mxu0 0
        %1015 = vmatprep.subr.bf16.mxu0 0
        %1016 = vmatpush2.bf16.msra.mxu0 0
        %1017 = vmatprep.mubr.bf16.mxu0 0
        %1018 = vmatmul.mubr.bf16.gmra.mxu0 %v983
        %v1019 = vpop.f32.mrf.mxu0
        %v1020 = vadd.f32 0.0, %v1019
        %v1021 = vpop.f32.mrf.mxu0
        %v1022 = vpop.f32.mrf.mxu0
        %v1023 = vadd.f32 0.0, %v1022
        %v1024 = vpop.f32.mrf.mxu0
        %1025 = vdwg.mxu0
        %v1026 = vrcp.pop %v975
        %v1027 = vrcp.pop %v978
        %v1028 = vmul.f32 %v1020, %v1026
        %v1029 = vmul.f32 %v1023, %v1027
        %v1030 = vpack.c.bf16 %v1029, %v1028
        %1032 = vrot.lane.b32.xlu0 %v784, 8
        %v1033 = vpop.permute.xlu0 %1032
        %1035 = vrot.lane.b32.xlu0 %v907, 16
        %v1036 = vpop.permute.xlu0 %1035
        %1038 = vrot.lane.b32.xlu0 %v1030, 24
        %v1039 = vpop.permute.xlu0 %1038
        %v1042 = vsel %vm538, %v661, %v1033
        %v1044 = vsel %vm586, %v1042, %v1036
        %vm1045 = vcmask 195584
        %v1047 = vsel %vm1045, %v1044, %v1039
        %v1048 = vld [vmem:[%s4] sm:$0xf]
        %v1049 = vld [vmem:[%s4 + $0x4] sm:$0xf]
        %v1050 = vld [vmem:[%s4 + $0x8] sm:$0xf]
        %v1051 = vld [vmem:[%s4 + $0xc] sm:$0xf]
        %v1052 = vld [vmem:[%s5] sm:$0x1]
        %v1054 = vlaneseq
        %v1055 = vshrl.u32 %v1054, 7
        %v1056 = vsub.s32 0, %v1055
        %v1057 = vrot.slane %v1052, %v1056
        %v1063 = vunpack.c.l.b16 %v1048
        %v1064 = vunpack.c.l.b16 %v1049
        %v1065 = vunpack.c.l.b16 %v1050
        %v1066 = vunpack.c.l.b16 %v1051
        %v1067 = vpack.c.b16 %v1064, %v1063
        %v1068 = vpack.c.b16 %v1066, %v1065
        %vm1071 = vcmask 261120
        %v1072 = vsel %vm1071, %v1047, 0
        %1074 = vmatprep.subr.bf16.mxu0 0
        %1075 = vmatpush1.bf16.msra.mxu0 0
        %1076 = vmatprep.subr.bf16.mxu0 0
        %1077 = vmatpush1.bf16.msra.mxu0 0
        %1078 = vmatprep.subr.bf16.mxu0 0
        %1079 = vmatpush1.bf16.msra.mxu0 0
        %1080 = vmatprep.subr.bf16.mxu0 0
        %1081 = vmatpush1.bf16.msra.mxu0 0
        %1082 = vmatprep.subr.bf16.mxu0 0
        %1083 = vmatpush1.bf16.msra.mxu0 0
        %1084 = vmatprep.subr.bf16.mxu0 0
        %1085 = vmatpush1.bf16.msra.mxu0 0
        %1086 = vmatprep.subr.bf16.mxu0 0
        %1087 = vmatpush1.bf16.msra.mxu0 %v1068
        %1088 = vmatprep.subr.bf16.mxu0 0
        %1089 = vmatpush1.bf16.msra.mxu0 %v1067
        %1090 = vmatprep.subr.bf16.mxu0 0
        %1091 = vmatpush2.bf16.msra.mxu0 0
        %1092 = vmatprep.subr.bf16.mxu0 0
        %1093 = vmatpush2.bf16.msra.mxu0 0
        %1094 = vmatprep.subr.bf16.mxu0 0
        %1095 = vmatpush2.bf16.msra.mxu0 0
        %1096 = vmatprep.subr.bf16.mxu0 0
        %1097 = vmatpush2.bf16.msra.mxu0 0
        %1098 = vmatprep.subr.bf16.mxu0 0
        %1099 = vmatpush2.bf16.msra.mxu0 0
        %1100 = vmatprep.subr.bf16.mxu0 0
        %1101 = vmatpush2.bf16.msra.mxu0 0
        %1102 = vmatprep.subr.bf16.mxu0 0
        %1103 = vmatpush2.bf16.msra.mxu0 0
        %1104 = vmatprep.subr.bf16.mxu0 0
        %1105 = vmatpush2.bf16.msra.mxu0 0
        %1106 = vmatprep.mubr.bf16.mxu0 0
        %1107 = vmatmul.mubr.bf16.gmra.mxu0 %v1072
        %v1108 = vpop.f32.mrf.mxu0
        %v1109 = vadd.f32 %v1057, %v1108
        %v1110 = vpop.f32.mrf.mxu0
        %v1111 = vpop.f32.mrf.mxu0
        %v1112 = vadd.f32 %v1057, %v1111
        %v1113 = vpop.f32.mrf.mxu0
        %1114 = vdwg.mxu0
        %v1115 = vadd.f32 %v520, %v1109
        %v1116 = vadd.f32 %v521, %v1112
        %v1117 = vld [vmem:[%s6] sm:$0x1]
        %v1118 = vld [vmem:[%s7] sm:$0x1]
        %v1119 = vsel %vm1071, %v1115, 0.0
        %1120 = vadd.xlane.f32.xlu0 %v1119
        %v1121 = vpop.xlane.xlu0 %1120
        %v1122 = vsel %vm1071, %v1116, 0.0
        %1123 = vadd.xlane.f32.xlu0 %v1122
        %v1124 = vpop.xlane.xlu0 %1123
        %v1125 = vrcp.pop 32.0
        %v1126 = vmul.f32 %v1121, %v1125
        %v1127 = vmul.f32 %v1124, %v1125
        %v1128 = vsub.f32 %v1115, %v1126
        %v1129 = vsub.f32 %v1116, %v1127
        %v1130 = vmul.f32 %v1128, %v1128
        %v1131 = vmul.f32 %v1129, %v1129
        %v1132 = vsel %vm1071, %v1130, 0.0
        %1133 = vadd.xlane.f32.xlu0 %v1132
        %v1134 = vpop.xlane.xlu0 %1133
        %v1135 = vsel %vm1071, %v1131, 0.0
        %1136 = vadd.xlane.f32.xlu0 %v1135
        %v1137 = vpop.xlane.xlu0 %1136
        %v1138 = vmul.f32 %v1134, %v1125
        %v1139 = vmul.f32 %v1137, %v1125
        %v1140 = vadd.f32 %v1138, 1e-05
        %v1141 = vadd.f32 %v1139, 1e-05
        %v1142 = vrsqrt.pop %v1140
        %v1143 = vrsqrt.pop %v1141
        %v1144 = vmul.f32 %v1128, %v1142
        %v1145 = vmul.f32 %v1129, %v1143
        %v1147 = vlaneseq
        %v1148 = vshrl.u32 %v1147, 7
        %v1149 = vsub.s32 0, %v1148
        %v1150 = vrot.slane %v1117, %v1149
        %v1152 = vmul.f32 %v1144, %v1150
        %v1153 = vmul.f32 %v1145, %v1150
        %v1155 = vlaneseq
        %v1156 = vshrl.u32 %v1155, 7
        %v1157 = vsub.s32 0, %v1156
        %v1158 = vrot.slane %v1118, %v1157
        %v1160 = vadd.f32 %v1152, %v1158
        %v1161 = vadd.f32 %v1153, %v1158
        %v1162 = vpack.c.bf16 %v1161, %v1160
        %v1163 = vld [vmem:[%s8] sm:$0xf]
        %v1164 = vld [vmem:[%s8 + $0x4] sm:$0xf]
        %v1165 = vld [vmem:[%s8 + $0x8] sm:$0xf]
        %v1166 = vld [vmem:[%s8 + $0xc] sm:$0xf]
        %v1167 = vld [vmem:[%s9] sm:$0x1]
        %v1169 = vlaneseq
        %v1170 = vshrl.u32 %v1169, 7
        %v1171 = vsub.s32 0, %v1170
        %v1172 = vrot.slane %v1167, %v1171
        %v1178 = vunpack.c.l.b16 %v1163
        %v1179 = vunpack.c.l.b16 %v1164
        %v1180 = vunpack.c.l.b16 %v1165
        %v1181 = vunpack.c.l.b16 %v1166
        %v1182 = vpack.c.b16 %v1179, %v1178
        %v1183 = vpack.c.b16 %v1181, %v1180
        %v1187 = vsel %vm1071, %v1162, 0
        %1189 = vmatprep.subr.bf16.mxu0 0
        %1190 = vmatpush1.bf16.msra.mxu0 0
        %1191 = vmatprep.subr.bf16.mxu0 0
        %1192 = vmatpush1.bf16.msra.mxu0 0
        %1193 = vmatprep.subr.bf16.mxu0 0
        %1194 = vmatpush1.bf16.msra.mxu0 0
        %1195 = vmatprep.subr.bf16.mxu0 0
        %1196 = vmatpush1.bf16.msra.mxu0 0
        %1197 = vmatprep.subr.bf16.mxu0 0
        %1198 = vmatpush1.bf16.msra.mxu0 0
        %1199 = vmatprep.subr.bf16.mxu0 0
        %1200 = vmatpush1.bf16.msra.mxu0 0
        %1201 = vmatprep.subr.bf16.mxu0 0
        %1202 = vmatpush1.bf16.msra.mxu0 %v1183
        %1203 = vmatprep.subr.bf16.mxu0 0
        %1204 = vmatpush1.bf16.msra.mxu0 %v1182
        %1205 = vmatprep.subr.bf16.mxu0 0
        %1206 = vmatpush2.bf16.msra.mxu0 0
        %1207 = vmatprep.subr.bf16.mxu0 0
        %1208 = vmatpush2.bf16.msra.mxu0 0
        %1209 = vmatprep.subr.bf16.mxu0 0
        %1210 = vmatpush2.bf16.msra.mxu0 0
        %1211 = vmatprep.subr.bf16.mxu0 0
        %1212 = vmatpush2.bf16.msra.mxu0 0
        %1213 = vmatprep.subr.bf16.mxu0 0
        %1214 = vmatpush2.bf16.msra.mxu0 0
        %1215 = vmatprep.subr.bf16.mxu0 0
        %1216 = vmatpush2.bf16.msra.mxu0 0
        %1217 = vmatprep.subr.bf16.mxu0 0
        %1218 = vmatpush2.bf16.msra.mxu0 0
        %1219 = vmatprep.subr.bf16.mxu0 0
        %1220 = vmatpush2.bf16.msra.mxu0 0
        %1221 = vmatprep.mubr.bf16.mxu0 0
        %1222 = vmatmul.mubr.bf16.gmra.mxu0 %v1187
        %v1223 = vpop.f32.mrf.mxu0
        %v1224 = vadd.f32 %v1172, %v1223
        %v1225 = vpop.f32.mrf.mxu0
        %v1226 = vpop.f32.mrf.mxu0
        %v1227 = vadd.f32 %v1172, %v1226
        %v1228 = vpop.f32.mrf.mxu0
        %1229 = vdwg.mxu0
        %v1230 = vmax.f32 %v1224, 0.0
        %v1231 = vmax.f32 %v1227, 0.0
        %v1232 = vpack.c.bf16 %v1231, %v1230
        %v1233 = vld [vmem:[%s10] sm:$0xf]
        %v1234 = vld [vmem:[%s10 + $0x4] sm:$0xf]
        %v1235 = vld [vmem:[%s10 + $0x8] sm:$0xf]
        %v1236 = vld [vmem:[%s10 + $0xc] sm:$0xf]
        %v1237 = vld [vmem:[%s10 + $0x10] sm:$0xf]
        %v1238 = vld [vmem:[%s10 + $0x14] sm:$0xf]
        %v1239 = vld [vmem:[%s10 + $0x18] sm:$0xf]
        %v1240 = vld [vmem:[%s10 + $0x1c] sm:$0xf]
        %v1241 = vld [vmem:[%s11] sm:$0x1]
        %v1243 = vlaneseq
        %v1244 = vshrl.u32 %v1243, 7
        %v1245 = vsub.s32 0, %v1244
        %v1246 = vrot.slane %v1241, %v1245
        %v1256 = vunpack.c.l.b16 %v1233
        %v1257 = vunpack.c.l.b16 %v1234
        %v1258 = vunpack.c.l.b16 %v1235
        %v1259 = vunpack.c.l.b16 %v1236
        %v1260 = vunpack.c.l.b16 %v1237
        %v1261 = vunpack.c.l.b16 %v1238
        %v1262 = vunpack.c.l.b16 %v1239
        %v1263 = vunpack.c.l.b16 %v1240
        %v1264 = vpack.c.b16 %v1257, %v1256
        %v1265 = vpack.c.b16 %v1259, %v1258
        %v1266 = vpack.c.b16 %v1261, %v1260
        %v1267 = vpack.c.b16 %v1263, %v1262
        %vm1272 = vcmask 523264
        %v1274 = vsel %vm1272, %v1232, 0
        %1276 = vmatprep.subr.bf16.mxu0 0
        %1277 = vmatpush1.bf16.msra.mxu0 0
        %1278 = vmatprep.subr.bf16.mxu0 0
        %1279 = vmatpush1.bf16.msra.mxu0 0
        %1280 = vmatprep.subr.bf16.mxu0 0
        %1281 = vmatpush1.bf16.msra.mxu0 0
        %1282 = vmatprep.subr.bf16.mxu0 0
        %1283 = vmatpush1.bf16.msra.mxu0 0
        %1284 = vmatprep.subr.bf16.mxu0 0
        %1285 = vmatpush1.bf16.msra.mxu0 %v1267
        %1286 = vmatprep.subr.bf16.mxu0 0
        %1287 = vmatpush1.bf16.msra.mxu0 %v1266
        %1288 = vmatprep.subr.bf16.mxu0 0
        %1289 = vmatpush1.bf16.msra.mxu0 %v1265
        %1290 = vmatprep.subr.bf16.mxu0 0
        %1291 = vmatpush1.bf16.msra.mxu0 %v1264
        %1292 = vmatprep.subr.bf16.mxu0 0
        %1293 = vmatpush2.bf16.msra.mxu0 0
        %1294 = vmatprep.subr.bf16.mxu0 0
        %1295 = vmatpush2.bf16.msra.mxu0 0
        %1296 = vmatprep.subr.bf16.mxu0 0
        %1297 = vmatpush2.bf16.msra.mxu0 0
        %1298 = vmatprep.subr.bf16.mxu0 0
        %1299 = vmatpush2.bf16.msra.mxu0 0
        %1300 = vmatprep.subr.bf16.mxu0 0
        %1301 = vmatpush2.bf16.msra.mxu0 0
        %1302 = vmatprep.subr.bf16.mxu0 0
        %1303 = vmatpush2.bf16.msra.mxu0 0
        %1304 = vmatprep.subr.bf16.mxu0 0
        %1305 = vmatpush2.bf16.msra.mxu0 0
        %1306 = vmatprep.subr.bf16.mxu0 0
        %1307 = vmatpush2.bf16.msra.mxu0 0
        %1308 = vmatprep.mubr.bf16.mxu0 0
        %1309 = vmatmul.mubr.bf16.gmra.mxu0 %v1274
        %v1310 = vpop.f32.mrf.mxu0
        %v1311 = vadd.f32 %v1246, %v1310
        %v1312 = vpop.f32.mrf.mxu0
        %v1313 = vpop.f32.mrf.mxu0
        %v1314 = vadd.f32 %v1246, %v1313
        %v1315 = vpop.f32.mrf.mxu0
        %1316 = vdwg.mxu0
        %v1317 = vadd.f32 %v1115, %v1311
        %v1318 = vadd.f32 %v1116, %v1314
        %1319 = vst.msk [vmem:[%s487] sm:$0xff] %vm1071, %v1317
        %1320 = vst.msk [vmem:[%s487 + $0x8] sm:$0xff] %vm1071, %v1318
        %s1321 = sand.u32 %s324, 1
        %s1322 = scalar_lea.sflag [#allocation3], %s1321
        %s1323 = sand.u32 %s324, 1
        %s1324 = smul.addr %s1323, 16
        %s1325 = scalar_lea.vmem [#allocation2], %s1324
        // Predicated region
        $region69: #{transformer_encoder_forward.7} parent=67 // pred_check
          %p1326 = pneg %p334
        $region70: #{transformer_encoder_forward.7} parent=67 // pred_check_branch
          %1328 = sbr.rel (%p1326) target = $region72
        $region71: #{transformer_encoder_forward.7} parent=67 // pred_region
          %s1329 = smul.u32 2, %s31
          %s1331 = ssub.s32 256, 256
          %1332 = vsyncadd %s1322, %s1331
          %s1333 = smul.addr %s30, 2
          %s1334 = sadd.s32 %s1329, %s1333
          %s1335 = smul.addr %s1334, 128
          %s1336 = scalar_lea.hbm %s12, %s1335
          %s1337 = sshll.u32 %s1325, 4
          %s1338 = int_to_ptr.vmem [resolvable:$true] %s1337
          %1343 = dma.vmem_to_hbm [thread:$0]  %s1338, 256, %s1336, %s1322, 128, 128, 8
        $region72: #{transformer_encoder_forward.7} parent=67 // pred_fallthru
          _
      $region68: #{transformer_encoder_forward.7} parent=5 // pred_fallthru
        _
      %p1344 = scmp.le.s32.totalorder 2, %s21
      // Predicated region
      $region73: #{transformer_encoder_forward.7} parent=5 // pred_check
        %p1345 = pneg %p1344
      $region74: #{transformer_encoder_forward.7} parent=5 // pred_check_branch
        %1347 = sbr.rel (%p1345) target = $region76
      $region75: #{transformer_encoder_forward.7} parent=5 // pred_region
        %s1348 = ssub.s32 %s21, 2
        // Predicated region
        $region77: #{transformer_encoder_forward.7} parent=75 // pred_check
          %p1349 = pneg %p340
        $region78: #{transformer_encoder_forward.7} parent=75 // pred_check_branch
          %1351 = sbr.rel (%p1349) target = $region80
        $region79: #{transformer_encoder_forward.7} parent=75 // pred_region
          %s1352 = sand.u32 %s325, 1
          %s1353 = scalar_lea.sflag [#allocation3], %s1352
          %s1354 = sand.u32 %s325, 1
          %s1355 = smul.addr %s1354, 16
          %s1356 = scalar_lea.vmem [#allocation2], %s1355
          %1357 = dma.done %s1353, 256
        $region80: #{transformer_encoder_forward.7} parent=75 // pred_fallthru
          _
      $region76: #{transformer_encoder_forward.7} parent=5 // pred_fallthru
        _
    $region6: #{transformer_encoder_forward.7} parent=1 // loop_footer
      %s25 = sadd.s32 1, %s21
    $region7: #{transformer_encoder_forward.7} parent=1 // loop_footer_branch
      %20 = sbr.rel target = $region3
    $region8: #{transformer_encoder_forward.7} parent=1 // loop_exit
      _
    %1358 = vsyncpa [#allocation3], 1
    %s1359 = scalar_lea.sflag [#allocation3], 1
    %1360 = vsyncpa %s1359, 1

</llo_original>
